<compile_context>
chip_gen: v5e
topology: v5e:2x2
jax: 0.10.0
libtpu: 0.0.40
codegen_flags: <defaults>
</compile_context>

<pallas_src>
import functools

import jax
import jax.numpy as jnp
from jax import lax
from jax.experimental import pallas as pl
from jax.experimental.pallas import tpu as pltpu


# ============================ Pallas kernel ==================================
def _fused_qkv_attn_kernel(q_ref, k_ref, v_ref,
                           wq_ref, bq_ref, wk_ref, bk_ref, wv_ref, bv_ref,
                           wp_ref, bp_ref, o_ref, *, num_heads):
    """One batch element per grid step.

    q_ref/k_ref/v_ref : (1, T, dim)   bf16 token slabs
    w{q,k,v}_ref      : (nh, dim, hd) bf16 per-head projection weights
    b{q,k,v}_ref      : (nh, 1, hd)   f32  per-head projection biases
    wp_ref            : (nh, hd, dim) bf16 per-head slice of output projection
    bp_ref            : (1, dim)      f32
    o_ref             : (1, T, dim)   f32  (lane-dense, heads already merged)
    """
    q_in = q_ref[0]                       # (T, dim) bf16
    k_in = k_ref[0]
    v_in = v_ref[0]
    T = q_in.shape[0]
    dim = wp_ref.shape[2]

    # Start the accumulator at the output-projection bias (single broadcast).
    acc = jnp.zeros((T, dim), jnp.float32) + bp_ref[...]

    # Static unroll over heads; all heads handled in ONE grid step so the
    # (T, dim) output slab is produced lane-dense with no concat/transpose.
    for h in range(num_heads):
        # Per-head projections (1/sqrt(hd) already folded into wq/bq).
        qh = jnp.dot(q_in, wq_ref[h], preferred_element_type=jnp.float32) + bq_ref[h]
        kh = jnp.dot(k_in, wk_ref[h], preferred_element_type=jnp.float32) + bk_ref[h]
        vh = jnp.dot(v_in, wv_ref[h], preferred_element_type=jnp.float32) + bv_ref[h]

        # Scores: q @ k^T (bf16 MXU, f32 accumulate).
        s = lax.dot_general(qh.astype(jnp.bfloat16), kh.astype(jnp.bfloat16),
                            (((1,), (1,)), ((), ())),
                            preferred_element_type=jnp.float32)          # (T, T)

        # Softmax in f32; divide via EUP approximate reciprocal.
        s = s - jnp.max(s, axis=-1, keepdims=True)
        p = jnp.exp(s)
        p = p * pl.reciprocal(jnp.sum(p, axis=-1, keepdims=True), approx=True)

        # attn @ V  -> (T, hd)
        oh = jnp.dot(p.astype(jnp.bfloat16), vh.astype(jnp.bfloat16),
                     preferred_element_type=jnp.float32)

        # Fold this head straight into the lane-dense output via its slice of
        # the output projection: sum_h (P_h V_h) Wp_h  ==  concat_h(...) @ Wp.
        acc = acc + jnp.dot(oh.astype(jnp.bfloat16), wp_ref[h],
                            preferred_element_type=jnp.float32)          # (T, dim)

    o_ref[0] = acc.astype(o_ref.dtype)


# ============================ wrapper ========================================
def qkv_attention(params, q, k, v, *, num_heads):
    """Fused qkvAttention forward. q, k, v: (B, H, W, dim) float32.

    params: wq/wk/wv/wp of shape (dim, dim) applied as x @ W + b (i.e. already
    the transpose of the torch nn.Linear weight), biases of shape (dim,).
    """
    B, H, W, dim = q.shape
    T = H * W
    hd = dim // num_heads
    scale = hd ** -0.5
    bf = lambda a: a.astype(jnp.bfloat16)

    # Fold the attention scale into the q projection; pre-split weights per
    # head (trace-time reshapes on tiny (dim, dim) params — negligible).
    wq = (params["wq"] * scale).reshape(dim, num_heads, hd).transpose(1, 0, 2)
    wk = params["wk"].reshape(dim, num_heads, hd).transpose(1, 0, 2)
    wv = params["wv"].reshape(dim, num_heads, hd).transpose(1, 0, 2)
    bq = (params["bq"] * scale).reshape(num_heads, 1, hd).astype(jnp.float32)
    bk = params["bk"].reshape(num_heads, 1, hd).astype(jnp.float32)
    bv = params["bv"].reshape(num_heads, 1, hd).astype(jnp.float32)
    wp = params["wp"].reshape(num_heads, hd, dim)
    bp = params["bp"].reshape(1, dim).astype(jnp.float32)

    q2 = bf(q.reshape(B, T, dim))
    k2 = bf(k.reshape(B, T, dim))
    v2 = bf(v.reshape(B, T, dim))

    tok = pl.BlockSpec((1, T, dim), lambda b: (b, 0, 0))

    def full(shape):
        n = len(shape)
        return pl.BlockSpec(shape, lambda b, _n=n: (0,) * _n)

    out = pl.pallas_call(
        functools.partial(_fused_qkv_attn_kernel, num_heads=num_heads),
        out_shape=jax.ShapeDtypeStruct((B, T, dim), q.dtype),
        grid=(B,),
        in_specs=[tok, tok, tok,
                  full((num_heads, dim, hd)), full((num_heads, 1, hd)),
                  full((num_heads, dim, hd)), full((num_heads, 1, hd)),
                  full((num_heads, dim, hd)), full((num_heads, 1, hd)),
                  full((num_heads, hd, dim)), full((1, dim))],
        out_specs=tok,
        compiler_params=pltpu.CompilerParams(
            dimension_semantics=("parallel",)),
    )(q2, k2, v2, bf(wq), bq, bf(wk), bk, bf(wv), bv, bf(wp), bp)

    return out.reshape(B, H, W, dim)


# ============================ pure-JAX reference =============================
def qkv_attention_ref(params, q, k, v, *, num_heads):
    B, H, W, dim = q.shape
    T = H * W
    hd = dim // num_heads
    scale = hd ** -0.5

    def proj(x, w, b):
        return x.reshape(B, T, dim) @ w + b

    qp = proj(q, params["wq"], params["bq"]).reshape(B, T, num_heads, hd).transpose(0, 2, 1, 3)
    kp = proj(k, params["wk"], params["bk"]).reshape(B, T, num_heads, hd).transpose(0, 2, 1, 3)
    vp = proj(v, params["wv"], params["bv"]).reshape(B, T, num_heads, hd).transpose(0, 2, 1, 3)
    attn = jnp.einsum("bhqd,bhkd->bhqk", qp * scale, kp)
    attn = jax.nn.softmax(attn, axis=-1)
    o = jnp.einsum("bhqk,bhkd->bhqd", attn, vp)
    o = o.transpose(0, 2, 1, 3).reshape(B, T, dim)
    o = o @ params["wp"] + params["bp"]
    return o.reshape(B, H, W, dim)


# ================================= main ======================================
if __name__ == "__main__":
    B, H, W, DIM, NUM_HEADS = 2, 8, 8, 128, 8   # T = 64 tokens, head_dim = 16

    key = jax.random.PRNGKey(0)
    ks = jax.random.split(key, 12)

    def init(k_, shape, s=0.05):
        return s * jax.random.normal(k_, shape, jnp.float32)

    params = {
        "wq": init(ks[0], (DIM, DIM)), "bq": init(ks[1], (DIM,), 0.01),
        "wk": init(ks[2], (DIM, DIM)), "bk": init(ks[3], (DIM,), 0.01),
        "wv": init(ks[4], (DIM, DIM)), "bv": init(ks[5], (DIM,), 0.01),
        "wp": init(ks[6], (DIM, DIM)), "bp": init(ks[7], (DIM,), 0.01),
    }
    q = jax.random.normal(ks[8], (B, H, W, DIM), jnp.float32)
    k = jax.random.normal(ks[9], (B, H, W, DIM), jnp.float32)
    v = jax.random.normal(ks[10], (B, H, W, DIM), jnp.float32)

    fwd = jax.jit(functools.partial(qkv_attention, num_heads=NUM_HEADS))
    out = fwd(params, q, k, v)
    jax.block_until_ready(out)

    assert out.shape == (B, H, W, DIM), out.shape
    assert bool(jnp.all(jnp.isfinite(out)))

    ref = qkv_attention_ref(params, q, k, v, num_heads=NUM_HEADS)
    max_err = float(jnp.max(jnp.abs(out - ref)))
    assert max_err < 3e-2, f"max abs err vs f32 reference = {max_err}"

    print("KERNEL_OK")
</pallas_src>

<mosaic_0001>
module attributes {stable_mosaic.version = 11 : i64} {
  func.func @_fused_qkv_attn_kernel(%arg0: i32, %arg1: memref<1x64x128xbf16, #tpu.memory_space<vmem>>, %arg2: memref<1x64x128xbf16, #tpu.memory_space<vmem>>, %arg3: memref<1x64x128xbf16, #tpu.memory_space<vmem>>, %arg4: memref<8x128x16xbf16, #tpu.memory_space<vmem>>, %arg5: memref<8x1x16xf32, #tpu.memory_space<vmem>>, %arg6: memref<8x128x16xbf16, #tpu.memory_space<vmem>>, %arg7: memref<8x1x16xf32, #tpu.memory_space<vmem>>, %arg8: memref<8x128x16xbf16, #tpu.memory_space<vmem>>, %arg9: memref<8x1x16xf32, #tpu.memory_space<vmem>>, %arg10: memref<8x16x128xbf16, #tpu.memory_space<vmem>>, %arg11: memref<1x128xf32, #tpu.memory_space<vmem>>, %arg12: memref<1x64x128xf32, #tpu.memory_space<vmem>>) attributes {dimension_semantics = [#tpu.dimension_semantics<parallel>], iteration_bounds = array<i64: 2>, scalar_prefetch = 0 : i64, scratch_operands = 0 : i64, tpu.core_type = #tpu.core_type<tc>, window_params = [{transform_indices = @transform_0, window_bounds = array<i64: 1, 64, 128>}, {transform_indices = @transform_1, window_bounds = array<i64: 1, 64, 128>}, {transform_indices = @transform_2, window_bounds = array<i64: 1, 64, 128>}, {pipeline_mode = #tpu.pipeline_mode<synchronous>, transform_indices = @transform_3, window_bounds = array<i64: 8, 128, 16>}, {pipeline_mode = #tpu.pipeline_mode<synchronous>, transform_indices = @transform_4, window_bounds = array<i64: 8, 1, 16>}, {pipeline_mode = #tpu.pipeline_mode<synchronous>, transform_indices = @transform_5, window_bounds = array<i64: 8, 128, 16>}, {pipeline_mode = #tpu.pipeline_mode<synchronous>, transform_indices = @transform_6, window_bounds = array<i64: 8, 1, 16>}, {pipeline_mode = #tpu.pipeline_mode<synchronous>, transform_indices = @transform_7, window_bounds = array<i64: 8, 128, 16>}, {pipeline_mode = #tpu.pipeline_mode<synchronous>, transform_indices = @transform_8, window_bounds = array<i64: 8, 1, 16>}, {pipeline_mode = #tpu.pipeline_mode<synchronous>, transform_indices = @transform_9, window_bounds = array<i64: 8, 16, 128>}, {pipeline_mode = #tpu.pipeline_mode<synchronous>, transform_indices = @transform_10, window_bounds = array<i64: 1, 128>}, {transform_indices = @transform_11, window_bounds = array<i64: 1, 64, 128>}]} {
    %c0 = arith.constant 0 : index
    %c0_0 = arith.constant 0 : index
    %c0_1 = arith.constant 0 : index
    %0 = vector.load %arg1[%c0, %c0_0, %c0_1] : memref<1x64x128xbf16, #tpu.memory_space<vmem>>, vector<1x64x128xbf16>
    %1 = vector.shape_cast %0 : vector<1x64x128xbf16> to vector<64x128xbf16>
    %c0_2 = arith.constant 0 : index
    %c0_3 = arith.constant 0 : index
    %c0_4 = arith.constant 0 : index
    %2 = vector.load %arg2[%c0_2, %c0_3, %c0_4] : memref<1x64x128xbf16, #tpu.memory_space<vmem>>, vector<1x64x128xbf16>
    %3 = vector.shape_cast %2 : vector<1x64x128xbf16> to vector<64x128xbf16>
    %c0_5 = arith.constant 0 : index
    %c0_6 = arith.constant 0 : index
    %c0_7 = arith.constant 0 : index
    %4 = vector.load %arg3[%c0_5, %c0_6, %c0_7] : memref<1x64x128xbf16, #tpu.memory_space<vmem>>, vector<1x64x128xbf16>
    %5 = vector.shape_cast %4 : vector<1x64x128xbf16> to vector<64x128xbf16>
    %cst = arith.constant 0.000000e+00 : f32
    %6 = vector.broadcast %cst : f32 to vector<64x128xf32>
    %c0_8 = arith.constant 0 : index
    %c0_9 = arith.constant 0 : index
    %7 = vector.load %arg11[%c0_8, %c0_9] : memref<1x128xf32, #tpu.memory_space<vmem>>, vector<1x128xf32>
    %8 = vector.broadcast %7 : vector<1x128xf32> to vector<64x128xf32>
    %9 = arith.addf %6, %8 : vector<64x128xf32>
    %c0_10 = arith.constant 0 : index
    %c0_11 = arith.constant 0 : index
    %c0_12 = arith.constant 0 : index
    %10 = vector.load %arg4[%c0_10, %c0_11, %c0_12] : memref<8x128x16xbf16, #tpu.memory_space<vmem>>, vector<1x128x16xbf16>
    %11 = vector.shape_cast %10 : vector<1x128x16xbf16> to vector<128x16xbf16>
    %cst_13 = arith.constant dense<0.000000e+00> : vector<64x16xf32>
    %12 = tpu.matmul %1, %11, %cst_13 {dimension_numbers = #tpu.dot_dimension_numbers<[1], [0], [0], [1], [0, 0, 1, 1], [], []>} : vector<64x128xbf16>, vector<128x16xbf16>, vector<64x16xf32> -> vector<64x16xf32>
    %c0_14 = arith.constant 0 : index
    %c0_15 = arith.constant 0 : index
    %c0_16 = arith.constant 0 : index
    %13 = vector.load %arg5[%c0_14, %c0_15, %c0_16] : memref<8x1x16xf32, #tpu.memory_space<vmem>>, vector<1x1x16xf32>
    %14 = vector.shape_cast %13 : vector<1x1x16xf32> to vector<1x16xf32>
    %15 = vector.broadcast %14 : vector<1x16xf32> to vector<64x16xf32>
    %16 = arith.addf %12, %15 : vector<64x16xf32>
    %c0_17 = arith.constant 0 : index
    %c0_18 = arith.constant 0 : index
    %c0_19 = arith.constant 0 : index
    %17 = vector.load %arg6[%c0_17, %c0_18, %c0_19] : memref<8x128x16xbf16, #tpu.memory_space<vmem>>, vector<1x128x16xbf16>
    %18 = vector.shape_cast %17 : vector<1x128x16xbf16> to vector<128x16xbf16>
    %cst_20 = arith.constant dense<0.000000e+00> : vector<64x16xf32>
    %19 = tpu.matmul %3, %18, %cst_20 {dimension_numbers = #tpu.dot_dimension_numbers<[1], [0], [0], [1], [0, 0, 1, 1], [], []>} : vector<64x128xbf16>, vector<128x16xbf16>, vector<64x16xf32> -> vector<64x16xf32>
    %c0_21 = arith.constant 0 : index
    %c0_22 = arith.constant 0 : index
    %c0_23 = arith.constant 0 : index
    %20 = vector.load %arg7[%c0_21, %c0_22, %c0_23] : memref<8x1x16xf32, #tpu.memory_space<vmem>>, vector<1x1x16xf32>
    %21 = vector.shape_cast %20 : vector<1x1x16xf32> to vector<1x16xf32>
    %22 = vector.broadcast %21 : vector<1x16xf32> to vector<64x16xf32>
    %23 = arith.addf %19, %22 : vector<64x16xf32>
    %c0_24 = arith.constant 0 : index
    %c0_25 = arith.constant 0 : index
    %c0_26 = arith.constant 0 : index
    %24 = vector.load %arg8[%c0_24, %c0_25, %c0_26] : memref<8x128x16xbf16, #tpu.memory_space<vmem>>, vector<1x128x16xbf16>
    %25 = vector.shape_cast %24 : vector<1x128x16xbf16> to vector<128x16xbf16>
    %cst_27 = arith.constant dense<0.000000e+00> : vector<64x16xf32>
    %26 = tpu.matmul %5, %25, %cst_27 {dimension_numbers = #tpu.dot_dimension_numbers<[1], [0], [0], [1], [0, 0, 1, 1], [], []>} : vector<64x128xbf16>, vector<128x16xbf16>, vector<64x16xf32> -> vector<64x16xf32>
    %c0_28 = arith.constant 0 : index
    %c0_29 = arith.constant 0 : index
    %c0_30 = arith.constant 0 : index
    %27 = vector.load %arg9[%c0_28, %c0_29, %c0_30] : memref<8x1x16xf32, #tpu.memory_space<vmem>>, vector<1x1x16xf32>
    %28 = vector.shape_cast %27 : vector<1x1x16xf32> to vector<1x16xf32>
    %29 = vector.broadcast %28 : vector<1x16xf32> to vector<64x16xf32>
    %30 = arith.addf %26, %29 : vector<64x16xf32>
    %31 = arith.truncf %16 : vector<64x16xf32> to vector<64x16xbf16>
    %32 = arith.truncf %23 : vector<64x16xf32> to vector<64x16xbf16>
    %cst_31 = arith.constant dense<0.000000e+00> : vector<64x64xf32>
    %33 = tpu.matmul %31, %32, %cst_31 {dimension_numbers = #tpu.dot_dimension_numbers<[1], [1], [0], [0], [0, 0, 1, 0], [], []>} : vector<64x16xbf16>, vector<64x16xbf16>, vector<64x64xf32> -> vector<64x64xf32>
    %cst_32 = arith.constant dense<0xFF800000> : vector<64xf32>
    %34 = vector.multi_reduction <maximumf>, %33, %cst_32 [1] : vector<64x64xf32> to vector<64xf32>
    %35 = vector.shape_cast %34 : vector<64xf32> to vector<64x1xf32>
    %36 = vector.broadcast %35 : vector<64x1xf32> to vector<64x64xf32>
    %37 = arith.subf %33, %36 : vector<64x64xf32>
    %38 = math.exp %37 : vector<64x64xf32>
    %cst_33 = arith.constant dense<0.000000e+00> : vector<64xf32>
    %39 = vector.multi_reduction <add>, %38, %cst_33 [1] : vector<64x64xf32> to vector<64xf32>
    %40 = vector.shape_cast %39 : vector<64xf32> to vector<64x1xf32>
    %41 = tpu.reciprocal %40 {approx = true} : vector<64x1xf32> -> vector<64x1xf32>
    %42 = vector.broadcast %41 : vector<64x1xf32> to vector<64x64xf32>
    %43 = arith.mulf %38, %42 : vector<64x64xf32>
    %44 = arith.truncf %43 : vector<64x64xf32> to vector<64x64xbf16>
    %45 = arith.truncf %30 : vector<64x16xf32> to vector<64x16xbf16>
    %cst_34 = arith.constant dense<0.000000e+00> : vector<64x16xf32>
    %46 = tpu.matmul %44, %45, %cst_34 {dimension_numbers = #tpu.dot_dimension_numbers<[1], [0], [0], [1], [0, 0, 1, 1], [], []>} : vector<64x64xbf16>, vector<64x16xbf16>, vector<64x16xf32> -> vector<64x16xf32>
    %47 = arith.truncf %46 : vector<64x16xf32> to vector<64x16xbf16>
    %c0_35 = arith.constant 0 : index
    %c0_36 = arith.constant 0 : index
    %c0_37 = arith.constant 0 : index
    %48 = vector.load %arg10[%c0_35, %c0_36, %c0_37] : memref<8x16x128xbf16, #tpu.memory_space<vmem>>, vector<1x16x128xbf16>
    %49 = vector.shape_cast %48 : vector<1x16x128xbf16> to vector<16x128xbf16>
    %cst_38 = arith.constant dense<0.000000e+00> : vector<64x128xf32>
    %50 = tpu.matmul %47, %49, %cst_38 {dimension_numbers = #tpu.dot_dimension_numbers<[1], [0], [0], [1], [0, 0, 1, 1], [], []>} : vector<64x16xbf16>, vector<16x128xbf16>, vector<64x128xf32> -> vector<64x128xf32>
    %51 = arith.addf %9, %50 : vector<64x128xf32>
    %c1 = arith.constant 1 : index
    %c0_39 = arith.constant 0 : index
    %c0_40 = arith.constant 0 : index
    %52 = vector.load %arg4[%c1, %c0_39, %c0_40] : memref<8x128x16xbf16, #tpu.memory_space<vmem>>, vector<1x128x16xbf16>
    %53 = vector.shape_cast %52 : vector<1x128x16xbf16> to vector<128x16xbf16>
    %cst_41 = arith.constant dense<0.000000e+00> : vector<64x16xf32>
    %54 = tpu.matmul %1, %53, %cst_41 {dimension_numbers = #tpu.dot_dimension_numbers<[1], [0], [0], [1], [0, 0, 1, 1], [], []>} : vector<64x128xbf16>, vector<128x16xbf16>, vector<64x16xf32> -> vector<64x16xf32>
    %c1_42 = arith.constant 1 : index
    %c0_43 = arith.constant 0 : index
    %c0_44 = arith.constant 0 : index
    %55 = vector.load %arg5[%c1_42, %c0_43, %c0_44] : memref<8x1x16xf32, #tpu.memory_space<vmem>>, vector<1x1x16xf32>
    %56 = vector.shape_cast %55 : vector<1x1x16xf32> to vector<1x16xf32>
    %57 = vector.broadcast %56 : vector<1x16xf32> to vector<64x16xf32>
    %58 = arith.addf %54, %57 : vector<64x16xf32>
    %c1_45 = arith.constant 1 : index
    %c0_46 = arith.constant 0 : index
    %c0_47 = arith.constant 0 : index
    %59 = vector.load %arg6[%c1_45, %c0_46, %c0_47] : memref<8x128x16xbf16, #tpu.memory_space<vmem>>, vector<1x128x16xbf16>
    %60 = vector.shape_cast %59 : vector<1x128x16xbf16> to vector<128x16xbf16>
    %cst_48 = arith.constant dense<0.000000e+00> : vector<64x16xf32>
    %61 = tpu.matmul %3, %60, %cst_48 {dimension_numbers = #tpu.dot_dimension_numbers<[1], [0], [0], [1], [0, 0, 1, 1], [], []>} : vector<64x128xbf16>, vector<128x16xbf16>, vector<64x16xf32> -> vector<64x16xf32>
    %c1_49 = arith.constant 1 : index
    %c0_50 = arith.constant 0 : index
    %c0_51 = arith.constant 0 : index
    %62 = vector.load %arg7[%c1_49, %c0_50, %c0_51] : memref<8x1x16xf32, #tpu.memory_space<vmem>>, vector<1x1x16xf32>
    %63 = vector.shape_cast %62 : vector<1x1x16xf32> to vector<1x16xf32>
    %64 = vector.broadcast %63 : vector<1x16xf32> to vector<64x16xf32>
    %65 = arith.addf %61, %64 : vector<64x16xf32>
    %c1_52 = arith.constant 1 : index
    %c0_53 = arith.constant 0 : index
    %c0_54 = arith.constant 0 : index
    %66 = vector.load %arg8[%c1_52, %c0_53, %c0_54] : memref<8x128x16xbf16, #tpu.memory_space<vmem>>, vector<1x128x16xbf16>
    %67 = vector.shape_cast %66 : vector<1x128x16xbf16> to vector<128x16xbf16>
    %cst_55 = arith.constant dense<0.000000e+00> : vector<64x16xf32>
    %68 = tpu.matmul %5, %67, %cst_55 {dimension_numbers = #tpu.dot_dimension_numbers<[1], [0], [0], [1], [0, 0, 1, 1], [], []>} : vector<64x128xbf16>, vector<128x16xbf16>, vector<64x16xf32> -> vector<64x16xf32>
    %c1_56 = arith.constant 1 : index
    %c0_57 = arith.constant 0 : index
    %c0_58 = arith.constant 0 : index
    %69 = vector.load %arg9[%c1_56, %c0_57, %c0_58] : memref<8x1x16xf32, #tpu.memory_space<vmem>>, vector<1x1x16xf32>
    %70 = vector.shape_cast %69 : vector<1x1x16xf32> to vector<1x16xf32>
    %71 = vector.broadcast %70 : vector<1x16xf32> to vector<64x16xf32>
    %72 = arith.addf %68, %71 : vector<64x16xf32>
    %73 = arith.truncf %58 : vector<64x16xf32> to vector<64x16xbf16>
    %74 = arith.truncf %65 : vector<64x16xf32> to vector<64x16xbf16>
    %cst_59 = arith.constant dense<0.000000e+00> : vector<64x64xf32>
    %75 = tpu.matmul %73, %74, %cst_59 {dimension_numbers = #tpu.dot_dimension_numbers<[1], [1], [0], [0], [0, 0, 1, 0], [], []>} : vector<64x16xbf16>, vector<64x16xbf16>, vector<64x64xf32> -> vector<64x64xf32>
    %cst_60 = arith.constant dense<0xFF800000> : vector<64xf32>
    %76 = vector.multi_reduction <maximumf>, %75, %cst_60 [1] : vector<64x64xf32> to vector<64xf32>
    %77 = vector.shape_cast %76 : vector<64xf32> to vector<64x1xf32>
    %78 = vector.broadcast %77 : vector<64x1xf32> to vector<64x64xf32>
    %79 = arith.subf %75, %78 : vector<64x64xf32>
    %80 = math.exp %79 : vector<64x64xf32>
    %cst_61 = arith.constant dense<0.000000e+00> : vector<64xf32>
    %81 = vector.multi_reduction <add>, %80, %cst_61 [1] : vector<64x64xf32> to vector<64xf32>
    %82 = vector.shape_cast %81 : vector<64xf32> to vector<64x1xf32>
    %83 = tpu.reciprocal %82 {approx = true} : vector<64x1xf32> -> vector<64x1xf32>
    %84 = vector.broadcast %83 : vector<64x1xf32> to vector<64x64xf32>
    %85 = arith.mulf %80, %84 : vector<64x64xf32>
    %86 = arith.truncf %85 : vector<64x64xf32> to vector<64x64xbf16>
    %87 = arith.truncf %72 : vector<64x16xf32> to vector<64x16xbf16>
    %cst_62 = arith.constant dense<0.000000e+00> : vector<64x16xf32>
    %88 = tpu.matmul %86, %87, %cst_62 {dimension_numbers = #tpu.dot_dimension_numbers<[1], [0], [0], [1], [0, 0, 1, 1], [], []>} : vector<64x64xbf16>, vector<64x16xbf16>, vector<64x16xf32> -> vector<64x16xf32>
    %89 = arith.truncf %88 : vector<64x16xf32> to vector<64x16xbf16>
    %c1_63 = arith.constant 1 : index
    %c0_64 = arith.constant 0 : index
    %c0_65 = arith.constant 0 : index
    %90 = vector.load %arg10[%c1_63, %c0_64, %c0_65] : memref<8x16x128xbf16, #tpu.memory_space<vmem>>, vector<1x16x128xbf16>
    %91 = vector.shape_cast %90 : vector<1x16x128xbf16> to vector<16x128xbf16>
    %cst_66 = arith.constant dense<0.000000e+00> : vector<64x128xf32>
    %92 = tpu.matmul %89, %91, %cst_66 {dimension_numbers = #tpu.dot_dimension_numbers<[1], [0], [0], [1], [0, 0, 1, 1], [], []>} : vector<64x16xbf16>, vector<16x128xbf16>, vector<64x128xf32> -> vector<64x128xf32>
    %93 = arith.addf %51, %92 : vector<64x128xf32>
    %c2 = arith.constant 2 : index
    %c0_67 = arith.constant 0 : index
    %c0_68 = arith.constant 0 : index
    %94 = vector.load %arg4[%c2, %c0_67, %c0_68] : memref<8x128x16xbf16, #tpu.memory_space<vmem>>, vector<1x128x16xbf16>
    %95 = vector.shape_cast %94 : vector<1x128x16xbf16> to vector<128x16xbf16>
    %cst_69 = arith.constant dense<0.000000e+00> : vector<64x16xf32>
    %96 = tpu.matmul %1, %95, %cst_69 {dimension_numbers = #tpu.dot_dimension_numbers<[1], [0], [0], [1], [0, 0, 1, 1], [], []>} : vector<64x128xbf16>, vector<128x16xbf16>, vector<64x16xf32> -> vector<64x16xf32>
    %c2_70 = arith.constant 2 : index
    %c0_71 = arith.constant 0 : index
    %c0_72 = arith.constant 0 : index
    %97 = vector.load %arg5[%c2_70, %c0_71, %c0_72] : memref<8x1x16xf32, #tpu.memory_space<vmem>>, vector<1x1x16xf32>
    %98 = vector.shape_cast %97 : vector<1x1x16xf32> to vector<1x16xf32>
    %99 = vector.broadcast %98 : vector<1x16xf32> to vector<64x16xf32>
    %100 = arith.addf %96, %99 : vector<64x16xf32>
    %c2_73 = arith.constant 2 : index
    %c0_74 = arith.constant 0 : index
    %c0_75 = arith.constant 0 : index
    %101 = vector.load %arg6[%c2_73, %c0_74, %c0_75] : memref<8x128x16xbf16, #tpu.memory_space<vmem>>, vector<1x128x16xbf16>
    %102 = vector.shape_cast %101 : vector<1x128x16xbf16> to vector<128x16xbf16>
    %cst_76 = arith.constant dense<0.000000e+00> : vector<64x16xf32>
    %103 = tpu.matmul %3, %102, %cst_76 {dimension_numbers = #tpu.dot_dimension_numbers<[1], [0], [0], [1], [0, 0, 1, 1], [], []>} : vector<64x128xbf16>, vector<128x16xbf16>, vector<64x16xf32> -> vector<64x16xf32>
    %c2_77 = arith.constant 2 : index
    %c0_78 = arith.constant 0 : index
    %c0_79 = arith.constant 0 : index
    %104 = vector.load %arg7[%c2_77, %c0_78, %c0_79] : memref<8x1x16xf32, #tpu.memory_space<vmem>>, vector<1x1x16xf32>
    %105 = vector.shape_cast %104 : vector<1x1x16xf32> to vector<1x16xf32>
    %106 = vector.broadcast %105 : vector<1x16xf32> to vector<64x16xf32>
    %107 = arith.addf %103, %106 : vector<64x16xf32>
    %c2_80 = arith.constant 2 : index
    %c0_81 = arith.constant 0 : index
    %c0_82 = arith.constant 0 : index
    %108 = vector.load %arg8[%c2_80, %c0_81, %c0_82] : memref<8x128x16xbf16, #tpu.memory_space<vmem>>, vector<1x128x16xbf16>
    %109 = vector.shape_cast %108 : vector<1x128x16xbf16> to vector<128x16xbf16>
    %cst_83 = arith.constant dense<0.000000e+00> : vector<64x16xf32>
    %110 = tpu.matmul %5, %109, %cst_83 {dimension_numbers = #tpu.dot_dimension_numbers<[1], [0], [0], [1], [0, 0, 1, 1], [], []>} : vector<64x128xbf16>, vector<128x16xbf16>, vector<64x16xf32> -> vector<64x16xf32>
    %c2_84 = arith.constant 2 : index
    %c0_85 = arith.constant 0 : index
    %c0_86 = arith.constant 0 : index
    %111 = vector.load %arg9[%c2_84, %c0_85, %c0_86] : memref<8x1x16xf32, #tpu.memory_space<vmem>>, vector<1x1x16xf32>
    %112 = vector.shape_cast %111 : vector<1x1x16xf32> to vector<1x16xf32>
    %113 = vector.broadcast %112 : vector<1x16xf32> to vector<64x16xf32>
    %114 = arith.addf %110, %113 : vector<64x16xf32>
    %115 = arith.truncf %100 : vector<64x16xf32> to vector<64x16xbf16>
    %116 = arith.truncf %107 : vector<64x16xf32> to vector<64x16xbf16>
    %cst_87 = arith.constant dense<0.000000e+00> : vector<64x64xf32>
    %117 = tpu.matmul %115, %116, %cst_87 {dimension_numbers = #tpu.dot_dimension_numbers<[1], [1], [0], [0], [0, 0, 1, 0], [], []>} : vector<64x16xbf16>, vector<64x16xbf16>, vector<64x64xf32> -> vector<64x64xf32>
    %cst_88 = arith.constant dense<0xFF800000> : vector<64xf32>
    %118 = vector.multi_reduction <maximumf>, %117, %cst_88 [1] : vector<64x64xf32> to vector<64xf32>
    %119 = vector.shape_cast %118 : vector<64xf32> to vector<64x1xf32>
    %120 = vector.broadcast %119 : vector<64x1xf32> to vector<64x64xf32>
    %121 = arith.subf %117, %120 : vector<64x64xf32>
    %122 = math.exp %121 : vector<64x64xf32>
    %cst_89 = arith.constant dense<0.000000e+00> : vector<64xf32>
    %123 = vector.multi_reduction <add>, %122, %cst_89 [1] : vector<64x64xf32> to vector<64xf32>
    %124 = vector.shape_cast %123 : vector<64xf32> to vector<64x1xf32>
    %125 = tpu.reciprocal %124 {approx = true} : vector<64x1xf32> -> vector<64x1xf32>
    %126 = vector.broadcast %125 : vector<64x1xf32> to vector<64x64xf32>
    %127 = arith.mulf %122, %126 : vector<64x64xf32>
    %128 = arith.truncf %127 : vector<64x64xf32> to vector<64x64xbf16>
    %129 = arith.truncf %114 : vector<64x16xf32> to vector<64x16xbf16>
    %cst_90 = arith.constant dense<0.000000e+00> : vector<64x16xf32>
    %130 = tpu.matmul %128, %129, %cst_90 {dimension_numbers = #tpu.dot_dimension_numbers<[1], [0], [0], [1], [0, 0, 1, 1], [], []>} : vector<64x64xbf16>, vector<64x16xbf16>, vector<64x16xf32> -> vector<64x16xf32>
    %131 = arith.truncf %130 : vector<64x16xf32> to vector<64x16xbf16>
    %c2_91 = arith.constant 2 : index
    %c0_92 = arith.constant 0 : index
    %c0_93 = arith.constant 0 : index
    %132 = vector.load %arg10[%c2_91, %c0_92, %c0_93] : memref<8x16x128xbf16, #tpu.memory_space<vmem>>, vector<1x16x128xbf16>
    %133 = vector.shape_cast %132 : vector<1x16x128xbf16> to vector<16x128xbf16>
    %cst_94 = arith.constant dense<0.000000e+00> : vector<64x128xf32>
    %134 = tpu.matmul %131, %133, %cst_94 {dimension_numbers = #tpu.dot_dimension_numbers<[1], [0], [0], [1], [0, 0, 1, 1], [], []>} : vector<64x16xbf16>, vector<16x128xbf16>, vector<64x128xf32> -> vector<64x128xf32>
    %135 = arith.addf %93, %134 : vector<64x128xf32>
    %c3 = arith.constant 3 : index
    %c0_95 = arith.constant 0 : index
    %c0_96 = arith.constant 0 : index
    %136 = vector.load %arg4[%c3, %c0_95, %c0_96] : memref<8x128x16xbf16, #tpu.memory_space<vmem>>, vector<1x128x16xbf16>
    %137 = vector.shape_cast %136 : vector<1x128x16xbf16> to vector<128x16xbf16>
    %cst_97 = arith.constant dense<0.000000e+00> : vector<64x16xf32>
    %138 = tpu.matmul %1, %137, %cst_97 {dimension_numbers = #tpu.dot_dimension_numbers<[1], [0], [0], [1], [0, 0, 1, 1], [], []>} : vector<64x128xbf16>, vector<128x16xbf16>, vector<64x16xf32> -> vector<64x16xf32>
    %c3_98 = arith.constant 3 : index
    %c0_99 = arith.constant 0 : index
    %c0_100 = arith.constant 0 : index
    %139 = vector.load %arg5[%c3_98, %c0_99, %c0_100] : memref<8x1x16xf32, #tpu.memory_space<vmem>>, vector<1x1x16xf32>
    %140 = vector.shape_cast %139 : vector<1x1x16xf32> to vector<1x16xf32>
    %141 = vector.broadcast %140 : vector<1x16xf32> to vector<64x16xf32>
    %142 = arith.addf %138, %141 : vector<64x16xf32>
    %c3_101 = arith.constant 3 : index
    %c0_102 = arith.constant 0 : index
    %c0_103 = arith.constant 0 : index
    %143 = vector.load %arg6[%c3_101, %c0_102, %c0_103] : memref<8x128x16xbf16, #tpu.memory_space<vmem>>, vector<1x128x16xbf16>
    %144 = vector.shape_cast %143 : vector<1x128x16xbf16> to vector<128x16xbf16>
    %cst_104 = arith.constant dense<0.000000e+00> : vector<64x16xf32>
    %145 = tpu.matmul %3, %144, %cst_104 {dimension_numbers = #tpu.dot_dimension_numbers<[1], [0], [0], [1], [0, 0, 1, 1], [], []>} : vector<64x128xbf16>, vector<128x16xbf16>, vector<64x16xf32> -> vector<64x16xf32>
    %c3_105 = arith.constant 3 : index
    %c0_106 = arith.constant 0 : index
    %c0_107 = arith.constant 0 : index
    %146 = vector.load %arg7[%c3_105, %c0_106, %c0_107] : memref<8x1x16xf32, #tpu.memory_space<vmem>>, vector<1x1x16xf32>
    %147 = vector.shape_cast %146 : vector<1x1x16xf32> to vector<1x16xf32>
    %148 = vector.broadcast %147 : vector<1x16xf32> to vector<64x16xf32>
    %149 = arith.addf %145, %148 : vector<64x16xf32>
    %c3_108 = arith.constant 3 : index
    %c0_109 = arith.constant 0 : index
    %c0_110 = arith.constant 0 : index
    %150 = vector.load %arg8[%c3_108, %c0_109, %c0_110] : memref<8x128x16xbf16, #tpu.memory_space<vmem>>, vector<1x128x16xbf16>
    %151 = vector.shape_cast %150 : vector<1x128x16xbf16> to vector<128x16xbf16>
    %cst_111 = arith.constant dense<0.000000e+00> : vector<64x16xf32>
    %152 = tpu.matmul %5, %151, %cst_111 {dimension_numbers = #tpu.dot_dimension_numbers<[1], [0], [0], [1], [0, 0, 1, 1], [], []>} : vector<64x128xbf16>, vector<128x16xbf16>, vector<64x16xf32> -> vector<64x16xf32>
    %c3_112 = arith.constant 3 : index
    %c0_113 = arith.constant 0 : index
    %c0_114 = arith.constant 0 : index
    %153 = vector.load %arg9[%c3_112, %c0_113, %c0_114] : memref<8x1x16xf32, #tpu.memory_space<vmem>>, vector<1x1x16xf32>
    %154 = vector.shape_cast %153 : vector<1x1x16xf32> to vector<1x16xf32>
    %155 = vector.broadcast %154 : vector<1x16xf32> to vector<64x16xf32>
    %156 = arith.addf %152, %155 : vector<64x16xf32>
    %157 = arith.truncf %142 : vector<64x16xf32> to vector<64x16xbf16>
    %158 = arith.truncf %149 : vector<64x16xf32> to vector<64x16xbf16>
    %cst_115 = arith.constant dense<0.000000e+00> : vector<64x64xf32>
    %159 = tpu.matmul %157, %158, %cst_115 {dimension_numbers = #tpu.dot_dimension_numbers<[1], [1], [0], [0], [0, 0, 1, 0], [], []>} : vector<64x16xbf16>, vector<64x16xbf16>, vector<64x64xf32> -> vector<64x64xf32>
    %cst_116 = arith.constant dense<0xFF800000> : vector<64xf32>
    %160 = vector.multi_reduction <maximumf>, %159, %cst_116 [1] : vector<64x64xf32> to vector<64xf32>
    %161 = vector.shape_cast %160 : vector<64xf32> to vector<64x1xf32>
    %162 = vector.broadcast %161 : vector<64x1xf32> to vector<64x64xf32>
    %163 = arith.subf %159, %162 : vector<64x64xf32>
    %164 = math.exp %163 : vector<64x64xf32>
    %cst_117 = arith.constant dense<0.000000e+00> : vector<64xf32>
    %165 = vector.multi_reduction <add>, %164, %cst_117 [1] : vector<64x64xf32> to vector<64xf32>
    %166 = vector.shape_cast %165 : vector<64xf32> to vector<64x1xf32>
    %167 = tpu.reciprocal %166 {approx = true} : vector<64x1xf32> -> vector<64x1xf32>
    %168 = vector.broadcast %167 : vector<64x1xf32> to vector<64x64xf32>
    %169 = arith.mulf %164, %168 : vector<64x64xf32>
    %170 = arith.truncf %169 : vector<64x64xf32> to vector<64x64xbf16>
    %171 = arith.truncf %156 : vector<64x16xf32> to vector<64x16xbf16>
    %cst_118 = arith.constant dense<0.000000e+00> : vector<64x16xf32>
    %172 = tpu.matmul %170, %171, %cst_118 {dimension_numbers = #tpu.dot_dimension_numbers<[1], [0], [0], [1], [0, 0, 1, 1], [], []>} : vector<64x64xbf16>, vector<64x16xbf16>, vector<64x16xf32> -> vector<64x16xf32>
    %173 = arith.truncf %172 : vector<64x16xf32> to vector<64x16xbf16>
    %c3_119 = arith.constant 3 : index
    %c0_120 = arith.constant 0 : index
    %c0_121 = arith.constant 0 : index
    %174 = vector.load %arg10[%c3_119, %c0_120, %c0_121] : memref<8x16x128xbf16, #tpu.memory_space<vmem>>, vector<1x16x128xbf16>
    %175 = vector.shape_cast %174 : vector<1x16x128xbf16> to vector<16x128xbf16>
    %cst_122 = arith.constant dense<0.000000e+00> : vector<64x128xf32>
    %176 = tpu.matmul %173, %175, %cst_122 {dimension_numbers = #tpu.dot_dimension_numbers<[1], [0], [0], [1], [0, 0, 1, 1], [], []>} : vector<64x16xbf16>, vector<16x128xbf16>, vector<64x128xf32> -> vector<64x128xf32>
    %177 = arith.addf %135, %176 : vector<64x128xf32>
    %c4 = arith.constant 4 : index
    %c0_123 = arith.constant 0 : index
    %c0_124 = arith.constant 0 : index
    %178 = vector.load %arg4[%c4, %c0_123, %c0_124] : memref<8x128x16xbf16, #tpu.memory_space<vmem>>, vector<1x128x16xbf16>
    %179 = vector.shape_cast %178 : vector<1x128x16xbf16> to vector<128x16xbf16>
    %cst_125 = arith.constant dense<0.000000e+00> : vector<64x16xf32>
    %180 = tpu.matmul %1, %179, %cst_125 {dimension_numbers = #tpu.dot_dimension_numbers<[1], [0], [0], [1], [0, 0, 1, 1], [], []>} : vector<64x128xbf16>, vector<128x16xbf16>, vector<64x16xf32> -> vector<64x16xf32>
    %c4_126 = arith.constant 4 : index
    %c0_127 = arith.constant 0 : index
    %c0_128 = arith.constant 0 : index
    %181 = vector.load %arg5[%c4_126, %c0_127, %c0_128] : memref<8x1x16xf32, #tpu.memory_space<vmem>>, vector<1x1x16xf32>
    %182 = vector.shape_cast %181 : vector<1x1x16xf32> to vector<1x16xf32>
    %183 = vector.broadcast %182 : vector<1x16xf32> to vector<64x16xf32>
    %184 = arith.addf %180, %183 : vector<64x16xf32>
    %c4_129 = arith.constant 4 : index
    %c0_130 = arith.constant 0 : index
    %c0_131 = arith.constant 0 : index
    %185 = vector.load %arg6[%c4_129, %c0_130, %c0_131] : memref<8x128x16xbf16, #tpu.memory_space<vmem>>, vector<1x128x16xbf16>
    %186 = vector.shape_cast %185 : vector<1x128x16xbf16> to vector<128x16xbf16>
    %cst_132 = arith.constant dense<0.000000e+00> : vector<64x16xf32>
    %187 = tpu.matmul %3, %186, %cst_132 {dimension_numbers = #tpu.dot_dimension_numbers<[1], [0], [0], [1], [0, 0, 1, 1], [], []>} : vector<64x128xbf16>, vector<128x16xbf16>, vector<64x16xf32> -> vector<64x16xf32>
    %c4_133 = arith.constant 4 : index
    %c0_134 = arith.constant 0 : index
    %c0_135 = arith.constant 0 : index
    %188 = vector.load %arg7[%c4_133, %c0_134, %c0_135] : memref<8x1x16xf32, #tpu.memory_space<vmem>>, vector<1x1x16xf32>
    %189 = vector.shape_cast %188 : vector<1x1x16xf32> to vector<1x16xf32>
    %190 = vector.broadcast %189 : vector<1x16xf32> to vector<64x16xf32>
    %191 = arith.addf %187, %190 : vector<64x16xf32>
    %c4_136 = arith.constant 4 : index
    %c0_137 = arith.constant 0 : index
    %c0_138 = arith.constant 0 : index
    %192 = vector.load %arg8[%c4_136, %c0_137, %c0_138] : memref<8x128x16xbf16, #tpu.memory_space<vmem>>, vector<1x128x16xbf16>
    %193 = vector.shape_cast %192 : vector<1x128x16xbf16> to vector<128x16xbf16>
    %cst_139 = arith.constant dense<0.000000e+00> : vector<64x16xf32>
    %194 = tpu.matmul %5, %193, %cst_139 {dimension_numbers = #tpu.dot_dimension_numbers<[1], [0], [0], [1], [0, 0, 1, 1], [], []>} : vector<64x128xbf16>, vector<128x16xbf16>, vector<64x16xf32> -> vector<64x16xf32>
    %c4_140 = arith.constant 4 : index
    %c0_141 = arith.constant 0 : index
    %c0_142 = arith.constant 0 : index
    %195 = vector.load %arg9[%c4_140, %c0_141, %c0_142] : memref<8x1x16xf32, #tpu.memory_space<vmem>>, vector<1x1x16xf32>
    %196 = vector.shape_cast %195 : vector<1x1x16xf32> to vector<1x16xf32>
    %197 = vector.broadcast %196 : vector<1x16xf32> to vector<64x16xf32>
    %198 = arith.addf %194, %197 : vector<64x16xf32>
    %199 = arith.truncf %184 : vector<64x16xf32> to vector<64x16xbf16>
    %200 = arith.truncf %191 : vector<64x16xf32> to vector<64x16xbf16>
    %cst_143 = arith.constant dense<0.000000e+00> : vector<64x64xf32>
    %201 = tpu.matmul %199, %200, %cst_143 {dimension_numbers = #tpu.dot_dimension_numbers<[1], [1], [0], [0], [0, 0, 1, 0], [], []>} : vector<64x16xbf16>, vector<64x16xbf16>, vector<64x64xf32> -> vector<64x64xf32>
    %cst_144 = arith.constant dense<0xFF800000> : vector<64xf32>
    %202 = vector.multi_reduction <maximumf>, %201, %cst_144 [1] : vector<64x64xf32> to vector<64xf32>
    %203 = vector.shape_cast %202 : vector<64xf32> to vector<64x1xf32>
    %204 = vector.broadcast %203 : vector<64x1xf32> to vector<64x64xf32>
    %205 = arith.subf %201, %204 : vector<64x64xf32>
    %206 = math.exp %205 : vector<64x64xf32>
    %cst_145 = arith.constant dense<0.000000e+00> : vector<64xf32>
    %207 = vector.multi_reduction <add>, %206, %cst_145 [1] : vector<64x64xf32> to vector<64xf32>
    %208 = vector.shape_cast %207 : vector<64xf32> to vector<64x1xf32>
    %209 = tpu.reciprocal %208 {approx = true} : vector<64x1xf32> -> vector<64x1xf32>
    %210 = vector.broadcast %209 : vector<64x1xf32> to vector<64x64xf32>
    %211 = arith.mulf %206, %210 : vector<64x64xf32>
    %212 = arith.truncf %211 : vector<64x64xf32> to vector<64x64xbf16>
    %213 = arith.truncf %198 : vector<64x16xf32> to vector<64x16xbf16>
    %cst_146 = arith.constant dense<0.000000e+00> : vector<64x16xf32>
    %214 = tpu.matmul %212, %213, %cst_146 {dimension_numbers = #tpu.dot_dimension_numbers<[1], [0], [0], [1], [0, 0, 1, 1], [], []>} : vector<64x64xbf16>, vector<64x16xbf16>, vector<64x16xf32> -> vector<64x16xf32>
    %215 = arith.truncf %214 : vector<64x16xf32> to vector<64x16xbf16>
    %c4_147 = arith.constant 4 : index
    %c0_148 = arith.constant 0 : index
    %c0_149 = arith.constant 0 : index
    %216 = vector.load %arg10[%c4_147, %c0_148, %c0_149] : memref<8x16x128xbf16, #tpu.memory_space<vmem>>, vector<1x16x128xbf16>
    %217 = vector.shape_cast %216 : vector<1x16x128xbf16> to vector<16x128xbf16>
    %cst_150 = arith.constant dense<0.000000e+00> : vector<64x128xf32>
    %218 = tpu.matmul %215, %217, %cst_150 {dimension_numbers = #tpu.dot_dimension_numbers<[1], [0], [0], [1], [0, 0, 1, 1], [], []>} : vector<64x16xbf16>, vector<16x128xbf16>, vector<64x128xf32> -> vector<64x128xf32>
    %219 = arith.addf %177, %218 : vector<64x128xf32>
    %c5 = arith.constant 5 : index
    %c0_151 = arith.constant 0 : index
    %c0_152 = arith.constant 0 : index
    %220 = vector.load %arg4[%c5, %c0_151, %c0_152] : memref<8x128x16xbf16, #tpu.memory_space<vmem>>, vector<1x128x16xbf16>
    %221 = vector.shape_cast %220 : vector<1x128x16xbf16> to vector<128x16xbf16>
    %cst_153 = arith.constant dense<0.000000e+00> : vector<64x16xf32>
    %222 = tpu.matmul %1, %221, %cst_153 {dimension_numbers = #tpu.dot_dimension_numbers<[1], [0], [0], [1], [0, 0, 1, 1], [], []>} : vector<64x128xbf16>, vector<128x16xbf16>, vector<64x16xf32> -> vector<64x16xf32>
    %c5_154 = arith.constant 5 : index
    %c0_155 = arith.constant 0 : index
    %c0_156 = arith.constant 0 : index
    %223 = vector.load %arg5[%c5_154, %c0_155, %c0_156] : memref<8x1x16xf32, #tpu.memory_space<vmem>>, vector<1x1x16xf32>
    %224 = vector.shape_cast %223 : vector<1x1x16xf32> to vector<1x16xf32>
    %225 = vector.broadcast %224 : vector<1x16xf32> to vector<64x16xf32>
    %226 = arith.addf %222, %225 : vector<64x16xf32>
    %c5_157 = arith.constant 5 : index
    %c0_158 = arith.constant 0 : index
    %c0_159 = arith.constant 0 : index
    %227 = vector.load %arg6[%c5_157, %c0_158, %c0_159] : memref<8x128x16xbf16, #tpu.memory_space<vmem>>, vector<1x128x16xbf16>
    %228 = vector.shape_cast %227 : vector<1x128x16xbf16> to vector<128x16xbf16>
    %cst_160 = arith.constant dense<0.000000e+00> : vector<64x16xf32>
    %229 = tpu.matmul %3, %228, %cst_160 {dimension_numbers = #tpu.dot_dimension_numbers<[1], [0], [0], [1], [0, 0, 1, 1], [], []>} : vector<64x128xbf16>, vector<128x16xbf16>, vector<64x16xf32> -> vector<64x16xf32>
    %c5_161 = arith.constant 5 : index
    %c0_162 = arith.constant 0 : index
    %c0_163 = arith.constant 0 : index
    %230 = vector.load %arg7[%c5_161, %c0_162, %c0_163] : memref<8x1x16xf32, #tpu.memory_space<vmem>>, vector<1x1x16xf32>
    %231 = vector.shape_cast %230 : vector<1x1x16xf32> to vector<1x16xf32>
    %232 = vector.broadcast %231 : vector<1x16xf32> to vector<64x16xf32>
    %233 = arith.addf %229, %232 : vector<64x16xf32>
    %c5_164 = arith.constant 5 : index
    %c0_165 = arith.constant 0 : index
    %c0_166 = arith.constant 0 : index
    %234 = vector.load %arg8[%c5_164, %c0_165, %c0_166] : memref<8x128x16xbf16, #tpu.memory_space<vmem>>, vector<1x128x16xbf16>
    %235 = vector.shape_cast %234 : vector<1x128x16xbf16> to vector<128x16xbf16>
    %cst_167 = arith.constant dense<0.000000e+00> : vector<64x16xf32>
    %236 = tpu.matmul %5, %235, %cst_167 {dimension_numbers = #tpu.dot_dimension_numbers<[1], [0], [0], [1], [0, 0, 1, 1], [], []>} : vector<64x128xbf16>, vector<128x16xbf16>, vector<64x16xf32> -> vector<64x16xf32>
    %c5_168 = arith.constant 5 : index
    %c0_169 = arith.constant 0 : index
    %c0_170 = arith.constant 0 : index
    %237 = vector.load %arg9[%c5_168, %c0_169, %c0_170] : memref<8x1x16xf32, #tpu.memory_space<vmem>>, vector<1x1x16xf32>
    %238 = vector.shape_cast %237 : vector<1x1x16xf32> to vector<1x16xf32>
    %239 = vector.broadcast %238 : vector<1x16xf32> to vector<64x16xf32>
    %240 = arith.addf %236, %239 : vector<64x16xf32>
    %241 = arith.truncf %226 : vector<64x16xf32> to vector<64x16xbf16>
    %242 = arith.truncf %233 : vector<64x16xf32> to vector<64x16xbf16>
    %cst_171 = arith.constant dense<0.000000e+00> : vector<64x64xf32>
    %243 = tpu.matmul %241, %242, %cst_171 {dimension_numbers = #tpu.dot_dimension_numbers<[1], [1], [0], [0], [0, 0, 1, 0], [], []>} : vector<64x16xbf16>, vector<64x16xbf16>, vector<64x64xf32> -> vector<64x64xf32>
    %cst_172 = arith.constant dense<0xFF800000> : vector<64xf32>
    %244 = vector.multi_reduction <maximumf>, %243, %cst_172 [1] : vector<64x64xf32> to vector<64xf32>
    %245 = vector.shape_cast %244 : vector<64xf32> to vector<64x1xf32>
    %246 = vector.broadcast %245 : vector<64x1xf32> to vector<64x64xf32>
    %247 = arith.subf %243, %246 : vector<64x64xf32>
    %248 = math.exp %247 : vector<64x64xf32>
    %cst_173 = arith.constant dense<0.000000e+00> : vector<64xf32>
    %249 = vector.multi_reduction <add>, %248, %cst_173 [1] : vector<64x64xf32> to vector<64xf32>
    %250 = vector.shape_cast %249 : vector<64xf32> to vector<64x1xf32>
    %251 = tpu.reciprocal %250 {approx = true} : vector<64x1xf32> -> vector<64x1xf32>
    %252 = vector.broadcast %251 : vector<64x1xf32> to vector<64x64xf32>
    %253 = arith.mulf %248, %252 : vector<64x64xf32>
    %254 = arith.truncf %253 : vector<64x64xf32> to vector<64x64xbf16>
    %255 = arith.truncf %240 : vector<64x16xf32> to vector<64x16xbf16>
    %cst_174 = arith.constant dense<0.000000e+00> : vector<64x16xf32>
    %256 = tpu.matmul %254, %255, %cst_174 {dimension_numbers = #tpu.dot_dimension_numbers<[1], [0], [0], [1], [0, 0, 1, 1], [], []>} : vector<64x64xbf16>, vector<64x16xbf16>, vector<64x16xf32> -> vector<64x16xf32>
    %257 = arith.truncf %256 : vector<64x16xf32> to vector<64x16xbf16>
    %c5_175 = arith.constant 5 : index
    %c0_176 = arith.constant 0 : index
    %c0_177 = arith.constant 0 : index
    %258 = vector.load %arg10[%c5_175, %c0_176, %c0_177] : memref<8x16x128xbf16, #tpu.memory_space<vmem>>, vector<1x16x128xbf16>
    %259 = vector.shape_cast %258 : vector<1x16x128xbf16> to vector<16x128xbf16>
    %cst_178 = arith.constant dense<0.000000e+00> : vector<64x128xf32>
    %260 = tpu.matmul %257, %259, %cst_178 {dimension_numbers = #tpu.dot_dimension_numbers<[1], [0], [0], [1], [0, 0, 1, 1], [], []>} : vector<64x16xbf16>, vector<16x128xbf16>, vector<64x128xf32> -> vector<64x128xf32>
    %261 = arith.addf %219, %260 : vector<64x128xf32>
    %c6 = arith.constant 6 : index
    %c0_179 = arith.constant 0 : index
    %c0_180 = arith.constant 0 : index
    %262 = vector.load %arg4[%c6, %c0_179, %c0_180] : memref<8x128x16xbf16, #tpu.memory_space<vmem>>, vector<1x128x16xbf16>
    %263 = vector.shape_cast %262 : vector<1x128x16xbf16> to vector<128x16xbf16>
    %cst_181 = arith.constant dense<0.000000e+00> : vector<64x16xf32>
    %264 = tpu.matmul %1, %263, %cst_181 {dimension_numbers = #tpu.dot_dimension_numbers<[1], [0], [0], [1], [0, 0, 1, 1], [], []>} : vector<64x128xbf16>, vector<128x16xbf16>, vector<64x16xf32> -> vector<64x16xf32>
    %c6_182 = arith.constant 6 : index
    %c0_183 = arith.constant 0 : index
    %c0_184 = arith.constant 0 : index
    %265 = vector.load %arg5[%c6_182, %c0_183, %c0_184] : memref<8x1x16xf32, #tpu.memory_space<vmem>>, vector<1x1x16xf32>
    %266 = vector.shape_cast %265 : vector<1x1x16xf32> to vector<1x16xf32>
    %267 = vector.broadcast %266 : vector<1x16xf32> to vector<64x16xf32>
    %268 = arith.addf %264, %267 : vector<64x16xf32>
    %c6_185 = arith.constant 6 : index
    %c0_186 = arith.constant 0 : index
    %c0_187 = arith.constant 0 : index
    %269 = vector.load %arg6[%c6_185, %c0_186, %c0_187] : memref<8x128x16xbf16, #tpu.memory_space<vmem>>, vector<1x128x16xbf16>
    %270 = vector.shape_cast %269 : vector<1x128x16xbf16> to vector<128x16xbf16>
    %cst_188 = arith.constant dense<0.000000e+00> : vector<64x16xf32>
    %271 = tpu.matmul %3, %270, %cst_188 {dimension_numbers = #tpu.dot_dimension_numbers<[1], [0], [0], [1], [0, 0, 1, 1], [], []>} : vector<64x128xbf16>, vector<128x16xbf16>, vector<64x16xf32> -> vector<64x16xf32>
    %c6_189 = arith.constant 6 : index
    %c0_190 = arith.constant 0 : index
    %c0_191 = arith.constant 0 : index
    %272 = vector.load %arg7[%c6_189, %c0_190, %c0_191] : memref<8x1x16xf32, #tpu.memory_space<vmem>>, vector<1x1x16xf32>
    %273 = vector.shape_cast %272 : vector<1x1x16xf32> to vector<1x16xf32>
    %274 = vector.broadcast %273 : vector<1x16xf32> to vector<64x16xf32>
    %275 = arith.addf %271, %274 : vector<64x16xf32>
    %c6_192 = arith.constant 6 : index
    %c0_193 = arith.constant 0 : index
    %c0_194 = arith.constant 0 : index
    %276 = vector.load %arg8[%c6_192, %c0_193, %c0_194] : memref<8x128x16xbf16, #tpu.memory_space<vmem>>, vector<1x128x16xbf16>
    %277 = vector.shape_cast %276 : vector<1x128x16xbf16> to vector<128x16xbf16>
    %cst_195 = arith.constant dense<0.000000e+00> : vector<64x16xf32>
    %278 = tpu.matmul %5, %277, %cst_195 {dimension_numbers = #tpu.dot_dimension_numbers<[1], [0], [0], [1], [0, 0, 1, 1], [], []>} : vector<64x128xbf16>, vector<128x16xbf16>, vector<64x16xf32> -> vector<64x16xf32>
    %c6_196 = arith.constant 6 : index
    %c0_197 = arith.constant 0 : index
    %c0_198 = arith.constant 0 : index
    %279 = vector.load %arg9[%c6_196, %c0_197, %c0_198] : memref<8x1x16xf32, #tpu.memory_space<vmem>>, vector<1x1x16xf32>
    %280 = vector.shape_cast %279 : vector<1x1x16xf32> to vector<1x16xf32>
    %281 = vector.broadcast %280 : vector<1x16xf32> to vector<64x16xf32>
    %282 = arith.addf %278, %281 : vector<64x16xf32>
    %283 = arith.truncf %268 : vector<64x16xf32> to vector<64x16xbf16>
    %284 = arith.truncf %275 : vector<64x16xf32> to vector<64x16xbf16>
    %cst_199 = arith.constant dense<0.000000e+00> : vector<64x64xf32>
    %285 = tpu.matmul %283, %284, %cst_199 {dimension_numbers = #tpu.dot_dimension_numbers<[1], [1], [0], [0], [0, 0, 1, 0], [], []>} : vector<64x16xbf16>, vector<64x16xbf16>, vector<64x64xf32> -> vector<64x64xf32>
    %cst_200 = arith.constant dense<0xFF800000> : vector<64xf32>
    %286 = vector.multi_reduction <maximumf>, %285, %cst_200 [1] : vector<64x64xf32> to vector<64xf32>
    %287 = vector.shape_cast %286 : vector<64xf32> to vector<64x1xf32>
    %288 = vector.broadcast %287 : vector<64x1xf32> to vector<64x64xf32>
    %289 = arith.subf %285, %288 : vector<64x64xf32>
    %290 = math.exp %289 : vector<64x64xf32>
    %cst_201 = arith.constant dense<0.000000e+00> : vector<64xf32>
    %291 = vector.multi_reduction <add>, %290, %cst_201 [1] : vector<64x64xf32> to vector<64xf32>
    %292 = vector.shape_cast %291 : vector<64xf32> to vector<64x1xf32>
    %293 = tpu.reciprocal %292 {approx = true} : vector<64x1xf32> -> vector<64x1xf32>
    %294 = vector.broadcast %293 : vector<64x1xf32> to vector<64x64xf32>
    %295 = arith.mulf %290, %294 : vector<64x64xf32>
    %296 = arith.truncf %295 : vector<64x64xf32> to vector<64x64xbf16>
    %297 = arith.truncf %282 : vector<64x16xf32> to vector<64x16xbf16>
    %cst_202 = arith.constant dense<0.000000e+00> : vector<64x16xf32>
    %298 = tpu.matmul %296, %297, %cst_202 {dimension_numbers = #tpu.dot_dimension_numbers<[1], [0], [0], [1], [0, 0, 1, 1], [], []>} : vector<64x64xbf16>, vector<64x16xbf16>, vector<64x16xf32> -> vector<64x16xf32>
    %299 = arith.truncf %298 : vector<64x16xf32> to vector<64x16xbf16>
    %c6_203 = arith.constant 6 : index
    %c0_204 = arith.constant 0 : index
    %c0_205 = arith.constant 0 : index
    %300 = vector.load %arg10[%c6_203, %c0_204, %c0_205] : memref<8x16x128xbf16, #tpu.memory_space<vmem>>, vector<1x16x128xbf16>
    %301 = vector.shape_cast %300 : vector<1x16x128xbf16> to vector<16x128xbf16>
    %cst_206 = arith.constant dense<0.000000e+00> : vector<64x128xf32>
    %302 = tpu.matmul %299, %301, %cst_206 {dimension_numbers = #tpu.dot_dimension_numbers<[1], [0], [0], [1], [0, 0, 1, 1], [], []>} : vector<64x16xbf16>, vector<16x128xbf16>, vector<64x128xf32> -> vector<64x128xf32>
    %303 = arith.addf %261, %302 : vector<64x128xf32>
    %c7 = arith.constant 7 : index
    %c0_207 = arith.constant 0 : index
    %c0_208 = arith.constant 0 : index
    %304 = vector.load %arg4[%c7, %c0_207, %c0_208] : memref<8x128x16xbf16, #tpu.memory_space<vmem>>, vector<1x128x16xbf16>
    %305 = vector.shape_cast %304 : vector<1x128x16xbf16> to vector<128x16xbf16>
    %cst_209 = arith.constant dense<0.000000e+00> : vector<64x16xf32>
    %306 = tpu.matmul %1, %305, %cst_209 {dimension_numbers = #tpu.dot_dimension_numbers<[1], [0], [0], [1], [0, 0, 1, 1], [], []>} : vector<64x128xbf16>, vector<128x16xbf16>, vector<64x16xf32> -> vector<64x16xf32>
    %c7_210 = arith.constant 7 : index
    %c0_211 = arith.constant 0 : index
    %c0_212 = arith.constant 0 : index
    %307 = vector.load %arg5[%c7_210, %c0_211, %c0_212] : memref<8x1x16xf32, #tpu.memory_space<vmem>>, vector<1x1x16xf32>
    %308 = vector.shape_cast %307 : vector<1x1x16xf32> to vector<1x16xf32>
    %309 = vector.broadcast %308 : vector<1x16xf32> to vector<64x16xf32>
    %310 = arith.addf %306, %309 : vector<64x16xf32>
    %c7_213 = arith.constant 7 : index
    %c0_214 = arith.constant 0 : index
    %c0_215 = arith.constant 0 : index
    %311 = vector.load %arg6[%c7_213, %c0_214, %c0_215] : memref<8x128x16xbf16, #tpu.memory_space<vmem>>, vector<1x128x16xbf16>
    %312 = vector.shape_cast %311 : vector<1x128x16xbf16> to vector<128x16xbf16>
    %cst_216 = arith.constant dense<0.000000e+00> : vector<64x16xf32>
    %313 = tpu.matmul %3, %312, %cst_216 {dimension_numbers = #tpu.dot_dimension_numbers<[1], [0], [0], [1], [0, 0, 1, 1], [], []>} : vector<64x128xbf16>, vector<128x16xbf16>, vector<64x16xf32> -> vector<64x16xf32>
    %c7_217 = arith.constant 7 : index
    %c0_218 = arith.constant 0 : index
    %c0_219 = arith.constant 0 : index
    %314 = vector.load %arg7[%c7_217, %c0_218, %c0_219] : memref<8x1x16xf32, #tpu.memory_space<vmem>>, vector<1x1x16xf32>
    %315 = vector.shape_cast %314 : vector<1x1x16xf32> to vector<1x16xf32>
    %316 = vector.broadcast %315 : vector<1x16xf32> to vector<64x16xf32>
    %317 = arith.addf %313, %316 : vector<64x16xf32>
    %c7_220 = arith.constant 7 : index
    %c0_221 = arith.constant 0 : index
    %c0_222 = arith.constant 0 : index
    %318 = vector.load %arg8[%c7_220, %c0_221, %c0_222] : memref<8x128x16xbf16, #tpu.memory_space<vmem>>, vector<1x128x16xbf16>
    %319 = vector.shape_cast %318 : vector<1x128x16xbf16> to vector<128x16xbf16>
    %cst_223 = arith.constant dense<0.000000e+00> : vector<64x16xf32>
    %320 = tpu.matmul %5, %319, %cst_223 {dimension_numbers = #tpu.dot_dimension_numbers<[1], [0], [0], [1], [0, 0, 1, 1], [], []>} : vector<64x128xbf16>, vector<128x16xbf16>, vector<64x16xf32> -> vector<64x16xf32>
    %c7_224 = arith.constant 7 : index
    %c0_225 = arith.constant 0 : index
    %c0_226 = arith.constant 0 : index
    %321 = vector.load %arg9[%c7_224, %c0_225, %c0_226] : memref<8x1x16xf32, #tpu.memory_space<vmem>>, vector<1x1x16xf32>
    %322 = vector.shape_cast %321 : vector<1x1x16xf32> to vector<1x16xf32>
    %323 = vector.broadcast %322 : vector<1x16xf32> to vector<64x16xf32>
    %324 = arith.addf %320, %323 : vector<64x16xf32>
    %325 = arith.truncf %310 : vector<64x16xf32> to vector<64x16xbf16>
    %326 = arith.truncf %317 : vector<64x16xf32> to vector<64x16xbf16>
    %cst_227 = arith.constant dense<0.000000e+00> : vector<64x64xf32>
    %327 = tpu.matmul %325, %326, %cst_227 {dimension_numbers = #tpu.dot_dimension_numbers<[1], [1], [0], [0], [0, 0, 1, 0], [], []>} : vector<64x16xbf16>, vector<64x16xbf16>, vector<64x64xf32> -> vector<64x64xf32>
    %cst_228 = arith.constant dense<0xFF800000> : vector<64xf32>
    %328 = vector.multi_reduction <maximumf>, %327, %cst_228 [1] : vector<64x64xf32> to vector<64xf32>
    %329 = vector.shape_cast %328 : vector<64xf32> to vector<64x1xf32>
    %330 = vector.broadcast %329 : vector<64x1xf32> to vector<64x64xf32>
    %331 = arith.subf %327, %330 : vector<64x64xf32>
    %332 = math.exp %331 : vector<64x64xf32>
    %cst_229 = arith.constant dense<0.000000e+00> : vector<64xf32>
    %333 = vector.multi_reduction <add>, %332, %cst_229 [1] : vector<64x64xf32> to vector<64xf32>
    %334 = vector.shape_cast %333 : vector<64xf32> to vector<64x1xf32>
    %335 = tpu.reciprocal %334 {approx = true} : vector<64x1xf32> -> vector<64x1xf32>
    %336 = vector.broadcast %335 : vector<64x1xf32> to vector<64x64xf32>
    %337 = arith.mulf %332, %336 : vector<64x64xf32>
    %338 = arith.truncf %337 : vector<64x64xf32> to vector<64x64xbf16>
    %339 = arith.truncf %324 : vector<64x16xf32> to vector<64x16xbf16>
    %cst_230 = arith.constant dense<0.000000e+00> : vector<64x16xf32>
    %340 = tpu.matmul %338, %339, %cst_230 {dimension_numbers = #tpu.dot_dimension_numbers<[1], [0], [0], [1], [0, 0, 1, 1], [], []>} : vector<64x64xbf16>, vector<64x16xbf16>, vector<64x16xf32> -> vector<64x16xf32>
    %341 = arith.truncf %340 : vector<64x16xf32> to vector<64x16xbf16>
    %c7_231 = arith.constant 7 : index
    %c0_232 = arith.constant 0 : index
    %c0_233 = arith.constant 0 : index
    %342 = vector.load %arg10[%c7_231, %c0_232, %c0_233] : memref<8x16x128xbf16, #tpu.memory_space<vmem>>, vector<1x16x128xbf16>
    %343 = vector.shape_cast %342 : vector<1x16x128xbf16> to vector<16x128xbf16>
    %cst_234 = arith.constant dense<0.000000e+00> : vector<64x128xf32>
    %344 = tpu.matmul %341, %343, %cst_234 {dimension_numbers = #tpu.dot_dimension_numbers<[1], [0], [0], [1], [0, 0, 1, 1], [], []>} : vector<64x16xbf16>, vector<16x128xbf16>, vector<64x128xf32> -> vector<64x128xf32>
    %345 = arith.addf %303, %344 : vector<64x128xf32>
    %c0_235 = arith.constant 0 : index
    %c0_236 = arith.constant 0 : index
    %c0_237 = arith.constant 0 : index
    %346 = vector.load %arg12[%c0_235, %c0_236, %c0_237] : memref<1x64x128xf32, #tpu.memory_space<vmem>>, vector<1x64x128xf32>
    %347 = vector.shape_cast %346 : vector<1x64x128xf32> to vector<64x128xf32>
    %348 = vector.shape_cast %345 : vector<64x128xf32> to vector<1x64x128xf32>
    tpu.vector_store %arg12[%c0_235, %c0_236, %c0_237], %348 {strides = array<i32>} : memref<1x64x128xf32, #tpu.memory_space<vmem>>, vector<1x64x128xf32>,
    return
  }
  func.func @transform_0(%arg0: i32) -> (i32, i32, i32) {
    %c0_i32 = arith.constant 0 : i32
    %c0_i32_0 = arith.constant 0 : i32
    %c0_i32_1 = arith.constant 0 : i32
    return %arg0, %c0_i32, %c0_i32_0 : i32, i32, i32
  }
  func.func @transform_1(%arg0: i32) -> (i32, i32, i32) {
    %c0_i32 = arith.constant 0 : i32
    %c0_i32_0 = arith.constant 0 : i32
    %c0_i32_1 = arith.constant 0 : i32
    return %arg0, %c0_i32, %c0_i32_0 : i32, i32, i32
  }
  func.func @transform_2(%arg0: i32) -> (i32, i32, i32) {
    %c0_i32 = arith.constant 0 : i32
    %c0_i32_0 = arith.constant 0 : i32
    %c0_i32_1 = arith.constant 0 : i32
    return %arg0, %c0_i32, %c0_i32_0 : i32, i32, i32
  }
  func.func @transform_3(%arg0: i32) -> (i32, i32, i32) {
    %c0_i32 = arith.constant 0 : i32
    %c0_i32_0 = arith.constant 0 : i32
    %c0_i32_1 = arith.constant 0 : i32
    %c0_i32_2 = arith.constant 0 : i32
    return %c0_i32, %c0_i32_0, %c0_i32_1 : i32, i32, i32
  }
  func.func @transform_4(%arg0: i32) -> (i32, i32, i32) {
    %c0_i32 = arith.constant 0 : i32
    %c0_i32_0 = arith.constant 0 : i32
    %c0_i32_1 = arith.constant 0 : i32
    %c0_i32_2 = arith.constant 0 : i32
    return %c0_i32, %c0_i32_0, %c0_i32_1 : i32, i32, i32
  }
  func.func @transform_5(%arg0: i32) -> (i32, i32, i32) {
    %c0_i32 = arith.constant 0 : i32
    %c0_i32_0 = arith.constant 0 : i32
    %c0_i32_1 = arith.constant 0 : i32
    %c0_i32_2 = arith.constant 0 : i32
    return %c0_i32, %c0_i32_0, %c0_i32_1 : i32, i32, i32
  }
  func.func @transform_6(%arg0: i32) -> (i32, i32, i32) {
    %c0_i32 = arith.constant 0 : i32
    %c0_i32_0 = arith.constant 0 : i32
    %c0_i32_1 = arith.constant 0 : i32
    %c0_i32_2 = arith.constant 0 : i32
    return %c0_i32, %c0_i32_0, %c0_i32_1 : i32, i32, i32
  }
  func.func @transform_7(%arg0: i32) -> (i32, i32, i32) {
    %c0_i32 = arith.constant 0 : i32
    %c0_i32_0 = arith.constant 0 : i32
    %c0_i32_1 = arith.constant 0 : i32
    %c0_i32_2 = arith.constant 0 : i32
    return %c0_i32, %c0_i32_0, %c0_i32_1 : i32, i32, i32
  }
  func.func @transform_8(%arg0: i32) -> (i32, i32, i32) {
    %c0_i32 = arith.constant 0 : i32
    %c0_i32_0 = arith.constant 0 : i32
    %c0_i32_1 = arith.constant 0 : i32
    %c0_i32_2 = arith.constant 0 : i32
    return %c0_i32, %c0_i32_0, %c0_i32_1 : i32, i32, i32
  }
  func.func @transform_9(%arg0: i32) -> (i32, i32, i32) {
    %c0_i32 = arith.constant 0 : i32
    %c0_i32_0 = arith.constant 0 : i32
    %c0_i32_1 = arith.constant 0 : i32
    %c0_i32_2 = arith.constant 0 : i32
    return %c0_i32, %c0_i32_0, %c0_i32_1 : i32, i32, i32
  }
  func.func @transform_10(%arg0: i32) -> (i32, i32) {
    %c0_i32 = arith.constant 0 : i32
    %c0_i32_0 = arith.constant 0 : i32
    %c0_i32_1 = arith.constant 0 : i32
    return %c0_i32, %c0_i32_0 : i32, i32
  }
  func.func @transform_11(%arg0: i32) -> (i32, i32, i32) {
    %c0_i32 = arith.constant 0 : i32
    %c0_i32_0 = arith.constant 0 : i32
    %c0_i32_1 = arith.constant 0 : i32
    return %arg0, %c0_i32, %c0_i32_0 : i32, i32, i32
  }
}

</mosaic_0001>

<llo_original>
// kernel: qkv_attention.1
$region0: #{qkv_attention.1}
  #allocation0 [shape = 'u32[]', space=smem, size = 0x4, offset = 0x4, fixed_abs, tag = 'smem constant byte address 0x4 - core index']
  #allocation1 [shape = 'u32[72,128]{1,0:T(1,128)}', space=vmem, size = 0x9000, scoped, tag = 'internal scratch']
  %s0 = inlined_call_operand.vmem [shape: bf16[2,64,128], index: 0, kind: input, shape index: {}]
  %s1 = inlined_call_operand.vmem [shape: bf16[2,64,128], index: 1, kind: input, shape index: {}]
  %s2 = inlined_call_operand.vmem [shape: bf16[2,64,128], index: 2, kind: input, shape index: {}]
  %s3 = inlined_call_operand.vmem [shape: bf16[8,128,16], index: 3, kind: input, shape index: {}]
  %s4 = inlined_call_operand.vmem [shape: f32[8,1,16], index: 4, kind: input, shape index: {}]
  %s5 = inlined_call_operand.vmem [shape: bf16[8,128,16], index: 5, kind: input, shape index: {}]
  %s6 = inlined_call_operand.vmem [shape: f32[8,1,16], index: 6, kind: input, shape index: {}]
  %s7 = inlined_call_operand.vmem [shape: bf16[8,128,16], index: 7, kind: input, shape index: {}]
  %s8 = inlined_call_operand.vmem [shape: f32[8,1,16], index: 8, kind: input, shape index: {}]
  %s9 = inlined_call_operand.vmem [shape: bf16[8,16,128], index: 9, kind: input, shape index: {}]
  %s10 = inlined_call_operand.vmem [shape: f32[1,128], index: 10, kind: input, shape index: {}]
  %s11 = inlined_call_operand.hbm [shape: f32[2,64,128], index: 11, kind: output, shape index: {}]
  %s12 = sld [smem:[#allocation0]]
  $region77: #{qkv_attention.1} parent=0
    _
  %s14 = ssub.s32 1, %s12
  %s15 = scalar_select 0, %s14, %s12
  $region1: #{qkv_attention.1} parent=0
    #allocation2 [shape = 'u8[65536]{0}', space=vmem, size = 0x10000, scoped, tag = 'output window, operand 0']
    #allocation3 [shape = 's32[2]{0}', space=sflag, size = 0x8, scoped, tag = 'scoped memory for qkv_attention.1']
    %16 = vsyncpa [#allocation3], 0
    %s17 = scalar_lea.sflag [#allocation3], 1
    %18 = vsyncpa %s17, 0
    loop: start=0, step=1, limit=4
    $region2: #{qkv_attention.1} parent=1 // loop_pre_header
      _
    $region3: #{qkv_attention.1} parent=1 // loop_header
      %s20 = sphi 0, %s24
      %p21 = scmp.ge.s32.totalorder %s20, 4
      %s30 = sphi 0, %s32
      %s33 = sphi 0, %s30
      %s34 = sphi 0, %s33
      %s50 = sphi 0, %s34
      %s56 = sphi 0, %s58
      %s59 = sphi 0, %s56
      %s60 = sphi 0, %s59
      %s76 = sphi 0, %s60
      %s82 = sphi 0, %s84
      %s85 = sphi 0, %s82
      %s86 = sphi 0, %s85
      %s102 = sphi 0, %s86
      %s106 = sphi 0, %s106
      %s108 = sphi 0, %s106
      %s109 = sphi 0, %s108
      %s123 = sphi 0, %s109
      %s127 = sphi 0, %s127
      %s129 = sphi 0, %s127
      %s130 = sphi 0, %s129
      %s144 = sphi 0, %s130
      %s148 = sphi 0, %s148
      %s150 = sphi 0, %s148
      %s151 = sphi 0, %s150
      %s165 = sphi 0, %s151
      %s169 = sphi 0, %s169
      %s171 = sphi 0, %s169
      %s172 = sphi 0, %s171
      %s186 = sphi 0, %s172
      %s190 = sphi 0, %s190
      %s192 = sphi 0, %s190
      %s193 = sphi 0, %s192
      %s207 = sphi 0, %s193
      %s211 = sphi 0, %s211
      %s213 = sphi 0, %s211
      %s214 = sphi 0, %s213
      %s228 = sphi 0, %s214
      %s232 = sphi 0, %s232
      %s234 = sphi 0, %s232
      %s235 = sphi 0, %s234
      %s249 = sphi 0, %s235
      %s253 = sphi 0, %s253
      %s255 = sphi 0, %s253
      %s256 = sphi 0, %s255
      %s270 = sphi 0, %s256
      %s276 = sphi 0, %s278
      %s279 = sphi 0, %s276
      %s280 = sphi 0, %s279
      %s296 = sphi 0, %s280
    $region4: #{qkv_attention.1} parent=1 // loop_header_branch
      %23 = sbr.rel (%p21) target = $region8
    $region5: #{qkv_attention.1} parent=1 // loop_body
      %s25 = ssub.s32 %s20, 1
      %s26 = ssub.s32 %s20, 2
      %s27 = sadd.s32 %s20, 1
      %s28 = ssub.s32 %s20, %s27
      %p29 = scmp.eq.s32.totalorder %s28, 0
      %s31 = sadd.s32 %s30, 1
      %s32 = scalar_select %p29, %s30, %s31
      %p35 = pneg %p29
      %p36 = scmp.eq.s32.totalorder %s20, 1
      %p37 = por %p35, %p36
      %p38 = scmp.ne.s32.totalorder %s30, %s33
      %p39 = scmp.eq.s32.totalorder %s20, 0
      %p40 = por %p38, %p39
      %p41 = scmp.ne.s32.totalorder %s30, %s33
      %p42 = scmp.eq.s32.totalorder %s25, 1
      %p43 = por %p41, %p42
      %p44 = scmp.ne.s32.totalorder %s33, %s34
      %p45 = scmp.eq.s32.totalorder %s25, 0
      %p46 = por %p44, %p45
      %p47 = scmp.ne.s32.totalorder %s33, %s34
      %p48 = scmp.eq.s32.totalorder %s26, 1
      %p49 = por %p47, %p48
      %p51 = scmp.ne.s32.totalorder %s34, %s50
      %p52 = scmp.eq.s32.totalorder %s26, 0
      %p53 = por %p51, %p52
      %s54 = ssub.s32 %s20, %s27
      %p55 = scmp.eq.s32.totalorder %s54, 0
      %s57 = sadd.s32 %s56, 1
      %s58 = scalar_select %p55, %s56, %s57
      %p61 = pneg %p55
      %p62 = scmp.eq.s32.totalorder %s20, 1
      %p63 = por %p61, %p62
      %p64 = scmp.ne.s32.totalorder %s56, %s59
      %p65 = scmp.eq.s32.totalorder %s20, 0
      %p66 = por %p64, %p65
      %p67 = scmp.ne.s32.totalorder %s56, %s59
      %p68 = scmp.eq.s32.totalorder %s25, 1
      %p69 = por %p67, %p68
      %p70 = scmp.ne.s32.totalorder %s59, %s60
      %p71 = scmp.eq.s32.totalorder %s25, 0
      %p72 = por %p70, %p71
      %p73 = scmp.ne.s32.totalorder %s59, %s60
      %p74 = scmp.eq.s32.totalorder %s26, 1
      %p75 = por %p73, %p74
      %p77 = scmp.ne.s32.totalorder %s60, %s76
      %p78 = scmp.eq.s32.totalorder %s26, 0
      %p79 = por %p77, %p78
      %s80 = ssub.s32 %s20, %s27
      %p81 = scmp.eq.s32.totalorder %s80, 0
      %s83 = sadd.s32 %s82, 1
      %s84 = scalar_select %p81, %s82, %s83
      %p87 = pneg %p81
      %p88 = scmp.eq.s32.totalorder %s20, 1
      %p89 = por %p87, %p88
      %p90 = scmp.ne.s32.totalorder %s82, %s85
      %p91 = scmp.eq.s32.totalorder %s20, 0
      %p92 = por %p90, %p91
      %p93 = scmp.ne.s32.totalorder %s82, %s85
      %p94 = scmp.eq.s32.totalorder %s25, 1
      %p95 = por %p93, %p94
      %p96 = scmp.ne.s32.totalorder %s85, %s86
      %p97 = scmp.eq.s32.totalorder %s25, 0
      %p98 = por %p96, %p97
      %p99 = scmp.ne.s32.totalorder %s85, %s86
      %p100 = scmp.eq.s32.totalorder %s26, 1
      %p101 = por %p99, %p100
      %p103 = scmp.ne.s32.totalorder %s86, %s102
      %p104 = scmp.eq.s32.totalorder %s26, 0
      %p105 = por %p103, %p104
      %s107 = sadd.s32 %s106, 1
      %p110 = scmp.eq.s32.totalorder %s20, 1
      %p111 = scmp.ne.s32.totalorder %s106, %s108
      %p112 = scmp.eq.s32.totalorder %s20, 0
      %p113 = por %p111, %p112
      %p114 = scmp.ne.s32.totalorder %s106, %s108
      %p115 = scmp.eq.s32.totalorder %s25, 1
      %p116 = por %p114, %p115
      %p117 = scmp.ne.s32.totalorder %s108, %s109
      %p118 = scmp.eq.s32.totalorder %s25, 0
      %p119 = por %p117, %p118
      %p120 = scmp.ne.s32.totalorder %s108, %s109
      %p121 = scmp.eq.s32.totalorder %s26, 1
      %p122 = por %p120, %p121
      %p124 = scmp.ne.s32.totalorder %s109, %s123
      %p125 = scmp.eq.s32.totalorder %s26, 0
      %p126 = por %p124, %p125
      %s128 = sadd.s32 %s127, 1
      %p131 = scmp.eq.s32.totalorder %s20, 1
      %p132 = scmp.ne.s32.totalorder %s127, %s129
      %p133 = scmp.eq.s32.totalorder %s20, 0
      %p134 = por %p132, %p133
      %p135 = scmp.ne.s32.totalorder %s127, %s129
      %p136 = scmp.eq.s32.totalorder %s25, 1
      %p137 = por %p135, %p136
      %p138 = scmp.ne.s32.totalorder %s129, %s130
      %p139 = scmp.eq.s32.totalorder %s25, 0
      %p140 = por %p138, %p139
      %p141 = scmp.ne.s32.totalorder %s129, %s130
      %p142 = scmp.eq.s32.totalorder %s26, 1
      %p143 = por %p141, %p142
      %p145 = scmp.ne.s32.totalorder %s130, %s144
      %p146 = scmp.eq.s32.totalorder %s26, 0
      %p147 = por %p145, %p146
      %s149 = sadd.s32 %s148, 1
      %p152 = scmp.eq.s32.totalorder %s20, 1
      %p153 = scmp.ne.s32.totalorder %s148, %s150
      %p154 = scmp.eq.s32.totalorder %s20, 0
      %p155 = por %p153, %p154
      %p156 = scmp.ne.s32.totalorder %s148, %s150
      %p157 = scmp.eq.s32.totalorder %s25, 1
      %p158 = por %p156, %p157
      %p159 = scmp.ne.s32.totalorder %s150, %s151
      %p160 = scmp.eq.s32.totalorder %s25, 0
      %p161 = por %p159, %p160
      %p162 = scmp.ne.s32.totalorder %s150, %s151
      %p163 = scmp.eq.s32.totalorder %s26, 1
      %p164 = por %p162, %p163
      %p166 = scmp.ne.s32.totalorder %s151, %s165
      %p167 = scmp.eq.s32.totalorder %s26, 0
      %p168 = por %p166, %p167
      %s170 = sadd.s32 %s169, 1
      %p173 = scmp.eq.s32.totalorder %s20, 1
      %p174 = scmp.ne.s32.totalorder %s169, %s171
      %p175 = scmp.eq.s32.totalorder %s20, 0
      %p176 = por %p174, %p175
      %p177 = scmp.ne.s32.totalorder %s169, %s171
      %p178 = scmp.eq.s32.totalorder %s25, 1
      %p179 = por %p177, %p178
      %p180 = scmp.ne.s32.totalorder %s171, %s172
      %p181 = scmp.eq.s32.totalorder %s25, 0
      %p182 = por %p180, %p181
      %p183 = scmp.ne.s32.totalorder %s171, %s172
      %p184 = scmp.eq.s32.totalorder %s26, 1
      %p185 = por %p183, %p184
      %p187 = scmp.ne.s32.totalorder %s172, %s186
      %p188 = scmp.eq.s32.totalorder %s26, 0
      %p189 = por %p187, %p188
      %s191 = sadd.s32 %s190, 1
      %p194 = scmp.eq.s32.totalorder %s20, 1
      %p195 = scmp.ne.s32.totalorder %s190, %s192
      %p196 = scmp.eq.s32.totalorder %s20, 0
      %p197 = por %p195, %p196
      %p198 = scmp.ne.s32.totalorder %s190, %s192
      %p199 = scmp.eq.s32.totalorder %s25, 1
      %p200 = por %p198, %p199
      %p201 = scmp.ne.s32.totalorder %s192, %s193
      %p202 = scmp.eq.s32.totalorder %s25, 0
      %p203 = por %p201, %p202
      %p204 = scmp.ne.s32.totalorder %s192, %s193
      %p205 = scmp.eq.s32.totalorder %s26, 1
      %p206 = por %p204, %p205
      %p208 = scmp.ne.s32.totalorder %s193, %s207
      %p209 = scmp.eq.s32.totalorder %s26, 0
      %p210 = por %p208, %p209
      %s212 = sadd.s32 %s211, 1
      %p215 = scmp.eq.s32.totalorder %s20, 1
      %p216 = scmp.ne.s32.totalorder %s211, %s213
      %p217 = scmp.eq.s32.totalorder %s20, 0
      %p218 = por %p216, %p217
      %p219 = scmp.ne.s32.totalorder %s211, %s213
      %p220 = scmp.eq.s32.totalorder %s25, 1
      %p221 = por %p219, %p220
      %p222 = scmp.ne.s32.totalorder %s213, %s214
      %p223 = scmp.eq.s32.totalorder %s25, 0
      %p224 = por %p222, %p223
      %p225 = scmp.ne.s32.totalorder %s213, %s214
      %p226 = scmp.eq.s32.totalorder %s26, 1
      %p227 = por %p225, %p226
      %p229 = scmp.ne.s32.totalorder %s214, %s228
      %p230 = scmp.eq.s32.totalorder %s26, 0
      %p231 = por %p229, %p230
      %s233 = sadd.s32 %s232, 1
      %p236 = scmp.eq.s32.totalorder %s20, 1
      %p237 = scmp.ne.s32.totalorder %s232, %s234
      %p238 = scmp.eq.s32.totalorder %s20, 0
      %p239 = por %p237, %p238
      %p240 = scmp.ne.s32.totalorder %s232, %s234
      %p241 = scmp.eq.s32.totalorder %s25, 1
      %p242 = por %p240, %p241
      %p243 = scmp.ne.s32.totalorder %s234, %s235
      %p244 = scmp.eq.s32.totalorder %s25, 0
      %p245 = por %p243, %p244
      %p246 = scmp.ne.s32.totalorder %s234, %s235
      %p247 = scmp.eq.s32.totalorder %s26, 1
      %p248 = por %p246, %p247
      %p250 = scmp.ne.s32.totalorder %s235, %s249
      %p251 = scmp.eq.s32.totalorder %s26, 0
      %p252 = por %p250, %p251
      %s254 = sadd.s32 %s253, 1
      %p257 = scmp.eq.s32.totalorder %s20, 1
      %p258 = scmp.ne.s32.totalorder %s253, %s255
      %p259 = scmp.eq.s32.totalorder %s20, 0
      %p260 = por %p258, %p259
      %p261 = scmp.ne.s32.totalorder %s253, %s255
      %p262 = scmp.eq.s32.totalorder %s25, 1
      %p263 = por %p261, %p262
      %p264 = scmp.ne.s32.totalorder %s255, %s256
      %p265 = scmp.eq.s32.totalorder %s25, 0
      %p266 = por %p264, %p265
      %p267 = scmp.ne.s32.totalorder %s255, %s256
      %p268 = scmp.eq.s32.totalorder %s26, 1
      %p269 = por %p267, %p268
      %p271 = scmp.ne.s32.totalorder %s256, %s270
      %p272 = scmp.eq.s32.totalorder %s26, 0
      %p273 = por %p271, %p272
      %s274 = ssub.s32 %s20, %s27
      %p275 = scmp.eq.s32.totalorder %s274, 0
      %s277 = sadd.s32 %s276, 1
      %s278 = scalar_select %p275, %s276, %s277
      %p281 = pneg %p275
      %p282 = scmp.eq.s32.totalorder %s20, 1
      %p283 = por %p281, %p282
      %p284 = scmp.ne.s32.totalorder %s276, %s279
      %p285 = scmp.eq.s32.totalorder %s20, 0
      %p286 = por %p284, %p285
      %p287 = scmp.ne.s32.totalorder %s276, %s279
      %p288 = scmp.eq.s32.totalorder %s25, 1
      %p289 = por %p287, %p288
      %p290 = scmp.ne.s32.totalorder %s279, %s280
      %p291 = scmp.eq.s32.totalorder %s25, 0
      %p292 = por %p290, %p291
      %p293 = scmp.ne.s32.totalorder %s279, %s280
      %p294 = scmp.eq.s32.totalorder %s26, 1
      %p295 = por %p293, %p294
      %p297 = scmp.ne.s32.totalorder %s280, %s296
      %p298 = scmp.eq.s32.totalorder %s26, 0
      %p299 = por %p297, %p298
      %p300 = scmp.le.s32.totalorder 1, %s20
      %p301 = scmp.lt.s32.totalorder %s20, 3
      %p302 = pnand %p300, %p301
      %p303 = pneg %p302
      // Predicated region
      $region9: #{qkv_attention.1} parent=5 // pred_check
        _
      $region10: #{qkv_attention.1} parent=5 // pred_check_branch
        %305 = sbr.rel (%p302) target = $region12
      $region11: #{qkv_attention.1} parent=5 // pred_region
        %s306 = ssub.s32 %s20, 1
        // Predicated region
        $region13: #{qkv_attention.1} parent=11 // pred_check
          %p307 = pneg %p119
        $region14: #{qkv_attention.1} parent=11 // pred_check_branch
          %309 = sbr.rel (%p307) target = $region16
        $region15: #{qkv_attention.1} parent=11 // pred_region
          _
        $region16: #{qkv_attention.1} parent=11 // pred_fallthru
          _
        // Predicated region
        $region17: #{qkv_attention.1} parent=11 // pred_check
          %p310 = pneg %p140
        $region18: #{qkv_attention.1} parent=11 // pred_check_branch
          %312 = sbr.rel (%p310) target = $region20
        $region19: #{qkv_attention.1} parent=11 // pred_region
          _
        $region20: #{qkv_attention.1} parent=11 // pred_fallthru
          _
        // Predicated region
        $region21: #{qkv_attention.1} parent=11 // pred_check
          %p313 = pneg %p161
        $region22: #{qkv_attention.1} parent=11 // pred_check_branch
          %315 = sbr.rel (%p313) target = $region24
        $region23: #{qkv_attention.1} parent=11 // pred_region
          _
        $region24: #{qkv_attention.1} parent=11 // pred_fallthru
          _
        // Predicated region
        $region25: #{qkv_attention.1} parent=11 // pred_check
          %p316 = pneg %p182
        $region26: #{qkv_attention.1} parent=11 // pred_check_branch
          %318 = sbr.rel (%p316) target = $region28
        $region27: #{qkv_attention.1} parent=11 // pred_region
          _
        $region28: #{qkv_attention.1} parent=11 // pred_fallthru
          _
        // Predicated region
        $region29: #{qkv_attention.1} parent=11 // pred_check
          %p319 = pneg %p203
        $region30: #{qkv_attention.1} parent=11 // pred_check_branch
          %321 = sbr.rel (%p319) target = $region32
        $region31: #{qkv_attention.1} parent=11 // pred_region
          _
        $region32: #{qkv_attention.1} parent=11 // pred_fallthru
          _
        // Predicated region
        $region33: #{qkv_attention.1} parent=11 // pred_check
          %p322 = pneg %p224
        $region34: #{qkv_attention.1} parent=11 // pred_check_branch
          %324 = sbr.rel (%p322) target = $region36
        $region35: #{qkv_attention.1} parent=11 // pred_region
          _
        $region36: #{qkv_attention.1} parent=11 // pred_fallthru
          _
        // Predicated region
        $region37: #{qkv_attention.1} parent=11 // pred_check
          %p325 = pneg %p245
        $region38: #{qkv_attention.1} parent=11 // pred_check_branch
          %327 = sbr.rel (%p325) target = $region40
        $region39: #{qkv_attention.1} parent=11 // pred_region
          _
        $region40: #{qkv_attention.1} parent=11 // pred_fallthru
          _
        // Predicated region
        $region41: #{qkv_attention.1} parent=11 // pred_check
          %p328 = pneg %p266
        $region42: #{qkv_attention.1} parent=11 // pred_check_branch
          %330 = sbr.rel (%p328) target = $region44
        $region43: #{qkv_attention.1} parent=11 // pred_region
          _
        $region44: #{qkv_attention.1} parent=11 // pred_fallthru
          _
      $region12: #{qkv_attention.1} parent=5 // pred_fallthru
        _
      %p331 = scmp.lt.s32.totalorder %s20, 2
      // Predicated region
      $region45: #{qkv_attention.1} parent=5 // pred_check
        %p332 = pneg %p331
      $region46: #{qkv_attention.1} parent=5 // pred_check_branch
        %334 = sbr.rel (%p332) target = $region48
      $region47: #{qkv_attention.1} parent=5 // pred_region
        // Predicated region
        $region49: #{qkv_attention.1} parent=47 // pred_check
          %p335 = pneg %p40
        $region50: #{qkv_attention.1} parent=47 // pred_check_branch
          %337 = sbr.rel (%p335) target = $region52
        $region51: #{qkv_attention.1} parent=47 // pred_region
          %p338 = scmp.lt.s32.totalorder %s20, 1
          %s339 = scalar_select %p338, %s20, 1
          %s340 = smul.addr %s339, 8
          %s341 = smul.addr %s340, 4
          %s342 = scalar_lea.vmem %s0, %s341
        $region52: #{qkv_attention.1} parent=47 // pred_fallthru
          _
        // Predicated region
        $region53: #{qkv_attention.1} parent=47 // pred_check
          %p343 = pneg %p66
        $region54: #{qkv_attention.1} parent=47 // pred_check_branch
          %345 = sbr.rel (%p343) target = $region56
        $region55: #{qkv_attention.1} parent=47 // pred_region
          %p346 = scmp.lt.s32.totalorder %s20, 1
          %s347 = scalar_select %p346, %s20, 1
          %s348 = smul.addr %s347, 8
          %s349 = smul.addr %s348, 4
          %s350 = scalar_lea.vmem %s1, %s349
        $region56: #{qkv_attention.1} parent=47 // pred_fallthru
          _
        // Predicated region
        $region57: #{qkv_attention.1} parent=47 // pred_check
          %p351 = pneg %p92
        $region58: #{qkv_attention.1} parent=47 // pred_check_branch
          %353 = sbr.rel (%p351) target = $region60
        $region59: #{qkv_attention.1} parent=47 // pred_region
          %p354 = scmp.lt.s32.totalorder %s20, 1
          %s355 = scalar_select %p354, %s20, 1
          %s356 = smul.addr %s355, 8
          %s357 = smul.addr %s356, 4
          %s358 = scalar_lea.vmem %s2, %s357
        $region60: #{qkv_attention.1} parent=47 // pred_fallthru
          _
      $region48: #{qkv_attention.1} parent=5 // pred_fallthru
        _
      %p359 = scmp.le.s32.totalorder 1, %s20
      %p360 = scmp.lt.s32.totalorder %s20, 3
      %p361 = pnand %p359, %p360
      %p362 = pneg %p361
      // Predicated region
      $region61: #{qkv_attention.1} parent=5 // pred_check
        _
      $region62: #{qkv_attention.1} parent=5 // pred_check_branch
        %364 = sbr.rel (%p361) target = $region64
      $region63: #{qkv_attention.1} parent=5 // pred_region
        %s365 = ssub.s32 %s20, 1
        %p366 = scmp.lt.s32.totalorder %s25, 1
        %s367 = scalar_select %p366, %s25, 1
        %s368 = smul.addr %s367, 8
        %s369 = smul.addr %s368, 4
        %s370 = scalar_lea.vmem %s0, %s369
        %p371 = pneg %p46
        %p372 = pneg %p43
        %p373 = scmp.lt.s32.totalorder %s25, 1
        %s374 = scalar_select %p373, %s25, 1
        %s375 = smul.addr %s374, 8
        %s376 = smul.addr %s375, 4
        %s377 = scalar_lea.vmem %s1, %s376
        %p378 = pneg %p72
        %p379 = pneg %p69
        %p380 = scmp.lt.s32.totalorder %s25, 1
        %s381 = scalar_select %p380, %s25, 1
        %s382 = smul.addr %s381, 8
        %s383 = smul.addr %s382, 4
        %s384 = scalar_lea.vmem %s2, %s383
        %p385 = pneg %p98
        %p386 = pneg %p95
        %p387 = pneg %p119
        %p388 = pneg %p116
        %p389 = pneg %p140
        %p390 = pneg %p137
        %p391 = pneg %p161
        %p392 = pneg %p158
        %p393 = pneg %p182
        %p394 = pneg %p179
        %p395 = pneg %p203
        %p396 = pneg %p200
        %p397 = pneg %p224
        %p398 = pneg %p221
        %p399 = pneg %p245
        %p400 = pneg %p242
        %p401 = pneg %p266
        %p402 = pneg %p263
        %p403 = pneg %p292
        %p404 = pneg %p289
        %s405 = sand.u32 %s279, 1
        %s406 = scalar_lea.sflag [#allocation3], %s405
        %s407 = sand.u32 %s279, 1
        %s408 = smul.addr %s407, 64
        %s409 = scalar_lea.vmem [#allocation2], %s408
        %p410 = scmp.lt.s32.totalorder %s25, 1
        %s411 = scalar_select %p410, %s25, 1
        %s412 = smul.addr %s411, 8
        %s413 = smul.addr %s412, 4
        %s414 = scalar_lea.vmem %s0, %s413
        %p415 = scmp.lt.s32.totalorder %s25, 1
        %s416 = scalar_select %p415, %s25, 1
        %s417 = smul.addr %s416, 8
        %s418 = smul.addr %s417, 4
        %s419 = scalar_lea.vmem %s1, %s418
        %p420 = scmp.lt.s32.totalorder %s25, 1
        %s421 = scalar_select %p420, %s25, 1
        %s422 = smul.addr %s421, 8
        %s423 = smul.addr %s422, 4
        %s424 = scalar_lea.vmem %s2, %s423
        %v426 = vld [vmem:[%s414] sm:$0xf]
        %v427 = vld [vmem:[%s414 + $0x4] sm:$0xf]
        %v428 = vld [vmem:[%s414 + $0x8] sm:$0xf]
        %v429 = vld [vmem:[%s414 + $0xc] sm:$0xf]
        %v430 = vld [vmem:[%s414 + $0x10] sm:$0xf]
        %v431 = vld [vmem:[%s414 + $0x14] sm:$0xf]
        %v432 = vld [vmem:[%s414 + $0x18] sm:$0xf]
        %v433 = vld [vmem:[%s414 + $0x1c] sm:$0xf]
        %v434 = vld [vmem:[%s419] sm:$0xf]
        %v435 = vld [vmem:[%s419 + $0x4] sm:$0xf]
        %v436 = vld [vmem:[%s419 + $0x8] sm:$0xf]
        %v437 = vld [vmem:[%s419 + $0xc] sm:$0xf]
        %v438 = vld [vmem:[%s419 + $0x10] sm:$0xf]
        %v439 = vld [vmem:[%s419 + $0x14] sm:$0xf]
        %v440 = vld [vmem:[%s419 + $0x18] sm:$0xf]
        %v441 = vld [vmem:[%s419 + $0x1c] sm:$0xf]
        %v442 = vld [vmem:[%s424] sm:$0xf]
        %v443 = vld [vmem:[%s424 + $0x4] sm:$0xf]
        %v444 = vld [vmem:[%s424 + $0x8] sm:$0xf]
        %v445 = vld [vmem:[%s424 + $0xc] sm:$0xf]
        %v446 = vld [vmem:[%s424 + $0x10] sm:$0xf]
        %v447 = vld [vmem:[%s424 + $0x14] sm:$0xf]
        %v448 = vld [vmem:[%s424 + $0x18] sm:$0xf]
        %v449 = vld [vmem:[%s424 + $0x1c] sm:$0xf]
        %v450 = vld [vmem:[%s10] sm:$0x1]
        %v452 = vperm.slane %v450, 0
        %v454 = vadd.f32 %v452, 0.0
        %v455 = vld [vmem:[%s3] sm:$0xf]
        %v456 = vld [vmem:[%s3 + $0x4] sm:$0xf]
        %v457 = vld [vmem:[%s3 + $0x8] sm:$0xf]
        %v458 = vld [vmem:[%s3 + $0xc] sm:$0xf]
        %v459 = vld [vmem:[%s3 + $0x10] sm:$0xf]
        %v460 = vld [vmem:[%s3 + $0x14] sm:$0xf]
        %v461 = vld [vmem:[%s3 + $0x18] sm:$0xf]
        %v462 = vld [vmem:[%s3 + $0x1c] sm:$0xf]
        %v463 = vld [vmem:[%s3 + $0x20] sm:$0xf]
        %v464 = vld [vmem:[%s3 + $0x24] sm:$0xf]
        %v465 = vld [vmem:[%s3 + $0x28] sm:$0xf]
        %v466 = vld [vmem:[%s3 + $0x2c] sm:$0xf]
        %v467 = vld [vmem:[%s3 + $0x30] sm:$0xf]
        %v468 = vld [vmem:[%s3 + $0x34] sm:$0xf]
        %v469 = vld [vmem:[%s3 + $0x38] sm:$0xf]
        %v470 = vld [vmem:[%s3 + $0x3c] sm:$0xf]
        %v471 = vld [vmem:[%s4] sm:$0x1]
        %v473 = vperm.slane %v471, 0
        %v483 = vunpack.c.l.b16 %v426
        %v484 = vunpack.c.l.b16 %v427
        %v485 = vunpack.c.l.b16 %v428
        %v486 = vunpack.c.l.b16 %v429
        %v487 = vunpack.c.l.b16 %v430
        %v488 = vunpack.c.l.b16 %v431
        %v489 = vunpack.c.l.b16 %v432
        %v490 = vunpack.c.l.b16 %v433
        %v491 = vpack.c.b16 %v484, %v483
        %v492 = vpack.c.b16 %v486, %v485
        %v493 = vpack.c.b16 %v488, %v487
        %v494 = vpack.c.b16 %v490, %v489
        %v515 = vunpack.c.l.b16 %v455
        %v516 = vunpack.c.l.b16 %v456
        %v517 = vunpack.c.l.b16 %v457
        %v518 = vunpack.c.l.b16 %v458
        %v519 = vunpack.c.l.b16 %v459
        %v520 = vunpack.c.l.b16 %v460
        %v521 = vunpack.c.l.b16 %v461
        %v522 = vunpack.c.l.b16 %v462
        %v523 = vunpack.c.l.b16 %v463
        %v524 = vunpack.c.l.b16 %v464
        %v525 = vunpack.c.l.b16 %v465
        %v526 = vunpack.c.l.b16 %v466
        %v527 = vunpack.c.l.b16 %v467
        %v528 = vunpack.c.l.b16 %v468
        %v529 = vunpack.c.l.b16 %v469
        %v530 = vunpack.c.l.b16 %v470
        %v531 = vpack.c.b16 %v516, %v515
        %v532 = vpack.c.b16 %v518, %v517
        %v533 = vpack.c.b16 %v520, %v519
        %v534 = vpack.c.b16 %v522, %v521
        %v535 = vpack.c.b16 %v524, %v523
        %v536 = vpack.c.b16 %v526, %v525
        %v537 = vpack.c.b16 %v528, %v527
        %v538 = vpack.c.b16 %v530, %v529
        %547 = vmatpush.bf16.msra.mxu0 %v538
        %548 = vmatpush.bf16.msra.mxu0 %v537
        %549 = vmatpush.bf16.msra.mxu0 %v536
        %550 = vmatpush.bf16.msra.mxu0 %v535
        %551 = vmatpush.bf16.msra.mxu0 %v534
        %552 = vmatpush.bf16.msra.mxu0 %v533
        %553 = vmatpush.bf16.msra.mxu0 %v532
        %554 = vmatpush.bf16.msra.mxu0 %v531
        %555 = vmatmul.bf16.gmra.mxu0 %v491
        %v556 = vpop.f32.mrf.mxu0
        %v557 = vadd.f32 %v473, %v556
        %v558 = vpop.f32.mrf.mxu0
        %v559 = vadd.f32 %v473, %v558
        %560 = vmatmul.bf16.gmra.mxu0 %v492
        %v561 = vpop.f32.mrf.mxu0
        %v562 = vadd.f32 %v473, %v561
        %v563 = vpop.f32.mrf.mxu0
        %v564 = vadd.f32 %v473, %v563
        %565 = vmatmul.bf16.gmra.mxu0 %v493
        %v566 = vpop.f32.mrf.mxu0
        %v567 = vadd.f32 %v473, %v566
        %v568 = vpop.f32.mrf.mxu0
        %v569 = vadd.f32 %v473, %v568
        %570 = vmatmul.bf16.gmra.mxu0 %v494
        %v571 = vpop.f32.mrf.mxu0
        %v572 = vadd.f32 %v473, %v571
        %v573 = vpop.f32.mrf.mxu0
        %v574 = vadd.f32 %v473, %v573
        %575 = vdwg.mxu0
        %v576 = vld [vmem:[%s5] sm:$0xf]
        %v577 = vld [vmem:[%s5 + $0x4] sm:$0xf]
        %v578 = vld [vmem:[%s5 + $0x8] sm:$0xf]
        %v579 = vld [vmem:[%s5 + $0xc] sm:$0xf]
        %v580 = vld [vmem:[%s5 + $0x10] sm:$0xf]
        %v581 = vld [vmem:[%s5 + $0x14] sm:$0xf]
        %v582 = vld [vmem:[%s5 + $0x18] sm:$0xf]
        %v583 = vld [vmem:[%s5 + $0x1c] sm:$0xf]
        %v584 = vld [vmem:[%s5 + $0x20] sm:$0xf]
        %v585 = vld [vmem:[%s5 + $0x24] sm:$0xf]
        %v586 = vld [vmem:[%s5 + $0x28] sm:$0xf]
        %v587 = vld [vmem:[%s5 + $0x2c] sm:$0xf]
        %v588 = vld [vmem:[%s5 + $0x30] sm:$0xf]
        %v589 = vld [vmem:[%s5 + $0x34] sm:$0xf]
        %v590 = vld [vmem:[%s5 + $0x38] sm:$0xf]
        %v591 = vld [vmem:[%s5 + $0x3c] sm:$0xf]
        %v592 = vld [vmem:[%s6] sm:$0x1]
        %v594 = vperm.slane %v592, 0
        %v604 = vunpack.c.l.b16 %v434
        %v605 = vunpack.c.l.b16 %v435
        %v606 = vunpack.c.l.b16 %v436
        %v607 = vunpack.c.l.b16 %v437
        %v608 = vunpack.c.l.b16 %v438
        %v609 = vunpack.c.l.b16 %v439
        %v610 = vunpack.c.l.b16 %v440
        %v611 = vunpack.c.l.b16 %v441
        %v612 = vpack.c.b16 %v605, %v604
        %v613 = vpack.c.b16 %v607, %v606
        %v614 = vpack.c.b16 %v609, %v608
        %v615 = vpack.c.b16 %v611, %v610
        %v636 = vunpack.c.l.b16 %v576
        %v637 = vunpack.c.l.b16 %v577
        %v638 = vunpack.c.l.b16 %v578
        %v639 = vunpack.c.l.b16 %v579
        %v640 = vunpack.c.l.b16 %v580
        %v641 = vunpack.c.l.b16 %v581
        %v642 = vunpack.c.l.b16 %v582
        %v643 = vunpack.c.l.b16 %v583
        %v644 = vunpack.c.l.b16 %v584
        %v645 = vunpack.c.l.b16 %v585
        %v646 = vunpack.c.l.b16 %v586
        %v647 = vunpack.c.l.b16 %v587
        %v648 = vunpack.c.l.b16 %v588
        %v649 = vunpack.c.l.b16 %v589
        %v650 = vunpack.c.l.b16 %v590
        %v651 = vunpack.c.l.b16 %v591
        %v652 = vpack.c.b16 %v637, %v636
        %v653 = vpack.c.b16 %v639, %v638
        %v654 = vpack.c.b16 %v641, %v640
        %v655 = vpack.c.b16 %v643, %v642
        %v656 = vpack.c.b16 %v645, %v644
        %v657 = vpack.c.b16 %v647, %v646
        %v658 = vpack.c.b16 %v649, %v648
        %v659 = vpack.c.b16 %v651, %v650
        %668 = vmatpush.bf16.msra.mxu0 %v659
        %669 = vmatpush.bf16.msra.mxu0 %v658
        %670 = vmatpush.bf16.msra.mxu0 %v657
        %671 = vmatpush.bf16.msra.mxu0 %v656
        %672 = vmatpush.bf16.msra.mxu0 %v655
        %673 = vmatpush.bf16.msra.mxu0 %v654
        %674 = vmatpush.bf16.msra.mxu0 %v653
        %675 = vmatpush.bf16.msra.mxu0 %v652
        %676 = vmatmul.bf16.gmra.mxu0 %v612
        %v677 = vpop.f32.mrf.mxu0
        %v678 = vadd.f32 %v594, %v677
        %v679 = vpop.f32.mrf.mxu0
        %v680 = vadd.f32 %v594, %v679
        %681 = vmatmul.bf16.gmra.mxu0 %v613
        %v682 = vpop.f32.mrf.mxu0
        %v683 = vadd.f32 %v594, %v682
        %v684 = vpop.f32.mrf.mxu0
        %v685 = vadd.f32 %v594, %v684
        %686 = vmatmul.bf16.gmra.mxu0 %v614
        %v687 = vpop.f32.mrf.mxu0
        %v688 = vadd.f32 %v594, %v687
        %v689 = vpop.f32.mrf.mxu0
        %v690 = vadd.f32 %v594, %v689
        %691 = vmatmul.bf16.gmra.mxu0 %v615
        %v692 = vpop.f32.mrf.mxu0
        %v693 = vadd.f32 %v594, %v692
        %v694 = vpop.f32.mrf.mxu0
        %v695 = vadd.f32 %v594, %v694
        %696 = vdwg.mxu0
        %v697 = vld [vmem:[%s7] sm:$0xf]
        %v698 = vld [vmem:[%s7 + $0x4] sm:$0xf]
        %v699 = vld [vmem:[%s7 + $0x8] sm:$0xf]
        %v700 = vld [vmem:[%s7 + $0xc] sm:$0xf]
        %v701 = vld [vmem:[%s7 + $0x10] sm:$0xf]
        %v702 = vld [vmem:[%s7 + $0x14] sm:$0xf]
        %v703 = vld [vmem:[%s7 + $0x18] sm:$0xf]
        %v704 = vld [vmem:[%s7 + $0x1c] sm:$0xf]
        %v705 = vld [vmem:[%s7 + $0x20] sm:$0xf]
        %v706 = vld [vmem:[%s7 + $0x24] sm:$0xf]
        %v707 = vld [vmem:[%s7 + $0x28] sm:$0xf]
        %v708 = vld [vmem:[%s7 + $0x2c] sm:$0xf]
        %v709 = vld [vmem:[%s7 + $0x30] sm:$0xf]
        %v710 = vld [vmem:[%s7 + $0x34] sm:$0xf]
        %v711 = vld [vmem:[%s7 + $0x38] sm:$0xf]
        %v712 = vld [vmem:[%s7 + $0x3c] sm:$0xf]
        %v713 = vld [vmem:[%s8] sm:$0x1]
        %v715 = vperm.slane %v713, 0
        %v725 = vunpack.c.l.b16 %v442
        %v726 = vunpack.c.l.b16 %v443
        %v727 = vunpack.c.l.b16 %v444
        %v728 = vunpack.c.l.b16 %v445
        %v729 = vunpack.c.l.b16 %v446
        %v730 = vunpack.c.l.b16 %v447
        %v731 = vunpack.c.l.b16 %v448
        %v732 = vunpack.c.l.b16 %v449
        %v733 = vpack.c.b16 %v726, %v725
        %v734 = vpack.c.b16 %v728, %v727
        %v735 = vpack.c.b16 %v730, %v729
        %v736 = vpack.c.b16 %v732, %v731
        %v757 = vunpack.c.l.b16 %v697
        %v758 = vunpack.c.l.b16 %v698
        %v759 = vunpack.c.l.b16 %v699
        %v760 = vunpack.c.l.b16 %v700
        %v761 = vunpack.c.l.b16 %v701
        %v762 = vunpack.c.l.b16 %v702
        %v763 = vunpack.c.l.b16 %v703
        %v764 = vunpack.c.l.b16 %v704
        %v765 = vunpack.c.l.b16 %v705
        %v766 = vunpack.c.l.b16 %v706
        %v767 = vunpack.c.l.b16 %v707
        %v768 = vunpack.c.l.b16 %v708
        %v769 = vunpack.c.l.b16 %v709
        %v770 = vunpack.c.l.b16 %v710
        %v771 = vunpack.c.l.b16 %v711
        %v772 = vunpack.c.l.b16 %v712
        %v773 = vpack.c.b16 %v758, %v757
        %v774 = vpack.c.b16 %v760, %v759
        %v775 = vpack.c.b16 %v762, %v761
        %v776 = vpack.c.b16 %v764, %v763
        %v777 = vpack.c.b16 %v766, %v765
        %v778 = vpack.c.b16 %v768, %v767
        %v779 = vpack.c.b16 %v770, %v769
        %v780 = vpack.c.b16 %v772, %v771
        %789 = vmatpush.bf16.msra.mxu0 %v780
        %790 = vmatpush.bf16.msra.mxu0 %v779
        %791 = vmatpush.bf16.msra.mxu0 %v778
        %792 = vmatpush.bf16.msra.mxu0 %v777
        %793 = vmatpush.bf16.msra.mxu0 %v776
        %794 = vmatpush.bf16.msra.mxu0 %v775
        %795 = vmatpush.bf16.msra.mxu0 %v774
        %796 = vmatpush.bf16.msra.mxu0 %v773
        %797 = vmatmul.bf16.gmra.mxu0 %v733
        %v798 = vpop.f32.mrf.mxu0
        %v799 = vadd.f32 %v715, %v798
        %v800 = vpop.f32.mrf.mxu0
        %v801 = vadd.f32 %v715, %v800
        %802 = vmatmul.bf16.gmra.mxu0 %v734
        %v803 = vpop.f32.mrf.mxu0
        %v804 = vadd.f32 %v715, %v803
        %v805 = vpop.f32.mrf.mxu0
        %v806 = vadd.f32 %v715, %v805
        %807 = vmatmul.bf16.gmra.mxu0 %v735
        %v808 = vpop.f32.mrf.mxu0
        %v809 = vadd.f32 %v715, %v808
        %v810 = vpop.f32.mrf.mxu0
        %v811 = vadd.f32 %v715, %v810
        %812 = vmatmul.bf16.gmra.mxu0 %v736
        %v813 = vpop.f32.mrf.mxu0
        %v814 = vadd.f32 %v715, %v813
        %v815 = vpop.f32.mrf.mxu0
        %v816 = vadd.f32 %v715, %v815
        %817 = vdwg.mxu0
        %v818 = vpack.c.bf16 %v559, %v557
        %v819 = vpack.c.bf16 %v564, %v562
        %v820 = vpack.c.bf16 %v569, %v567
        %v821 = vpack.c.bf16 %v574, %v572
        %v822 = vpack.c.bf16 %v680, %v678
        %v823 = vpack.c.bf16 %v685, %v683
        %v824 = vpack.c.bf16 %v690, %v688
        %v825 = vpack.c.bf16 %v695, %v693
        %vm826 = vcmask 130048
        %v828 = vsel %vm826, %v818, 0
        %v831 = vsel %vm826, %v819, 0
        %v834 = vsel %vm826, %v820, 0
        %v837 = vsel %vm826, %v821, 0
        %v840 = vsel %vm826, %v822, 0
        %v843 = vsel %vm826, %v823, 0
        %v846 = vsel %vm826, %v824, 0
        %v849 = vsel %vm826, %v825, 0
        %851 = vmatpush.bf16.xpose.msra.mxu0 0
        %852 = vmatpush.bf16.xpose.msra.mxu0 0
        %853 = vmatpush.bf16.xpose.msra.mxu0 0
        %854 = vmatpush.bf16.xpose.msra.mxu0 0
        %855 = vmatpush.bf16.xpose.msra.mxu0 %v849
        %856 = vmatpush.bf16.xpose.msra.mxu0 %v846
        %857 = vmatpush.bf16.xpose.msra.mxu0 %v843
        %858 = vmatpush.bf16.xpose.msra.mxu0 %v840
        %859 = vmatmul.bf16.gmra.mxu0 %v828
        %v860 = vpop.f32.mrf.mxu0
        %v861 = vadd.f32 0.0, %v860
        %v862 = vpop.f32.mrf.mxu0
        %v863 = vadd.f32 0.0, %v862
        %864 = vmatmul.bf16.gmra.mxu0 %v831
        %v865 = vpop.f32.mrf.mxu0
        %v866 = vadd.f32 0.0, %v865
        %v867 = vpop.f32.mrf.mxu0
        %v868 = vadd.f32 0.0, %v867
        %869 = vmatmul.bf16.gmra.mxu0 %v834
        %v870 = vpop.f32.mrf.mxu0
        %v871 = vadd.f32 0.0, %v870
        %v872 = vpop.f32.mrf.mxu0
        %v873 = vadd.f32 0.0, %v872
        %874 = vmatmul.bf16.gmra.mxu0 %v837
        %v875 = vpop.f32.mrf.mxu0
        %v876 = vadd.f32 0.0, %v875
        %v877 = vpop.f32.mrf.mxu0
        %v878 = vadd.f32 0.0, %v877
        %879 = vdwg.mxu0
        %vm880 = vcmask 523264
        %v881 = vsel %vm880, %v861, -inf
        %882 = vmax.xlane.f32.xlu0 %v881
        %v883 = vpop.xlane.xlu0 %882
        %v884 = vsel %vm880, %v863, -inf
        %885 = vmax.xlane.f32.xlu0 %v884
        %v886 = vpop.xlane.xlu0 %885
        %v887 = vsel %vm880, %v866, -inf
        %888 = vmax.xlane.f32.xlu0 %v887
        %v889 = vpop.xlane.xlu0 %888
        %v890 = vsel %vm880, %v868, -inf
        %891 = vmax.xlane.f32.xlu0 %v890
        %v892 = vpop.xlane.xlu0 %891
        %v893 = vsel %vm880, %v871, -inf
        %894 = vmax.xlane.f32.xlu0 %v893
        %v895 = vpop.xlane.xlu0 %894
        %v896 = vsel %vm880, %v873, -inf
        %897 = vmax.xlane.f32.xlu0 %v896
        %v898 = vpop.xlane.xlu0 %897
        %v899 = vsel %vm880, %v876, -inf
        %900 = vmax.xlane.f32.xlu0 %v899
        %v901 = vpop.xlane.xlu0 %900
        %v902 = vsel %vm880, %v878, -inf
        %903 = vmax.xlane.f32.xlu0 %v902
        %v904 = vpop.xlane.xlu0 %903
        %v905 = vsub.f32 %v861, %v883
        %v906 = vsub.f32 %v863, %v886
        %v907 = vsub.f32 %v866, %v889
        %v908 = vsub.f32 %v868, %v892
        %v909 = vsub.f32 %v871, %v895
        %v910 = vsub.f32 %v873, %v898
        %v911 = vsub.f32 %v876, %v901
        %v912 = vsub.f32 %v878, %v904
        %v913 = vmul.f32 %v905, 1.442695
        %v914 = vpow.pop %v913
        %v915 = vmul.f32 %v906, 1.442695
        %v916 = vpow.pop %v915
        %v917 = vmul.f32 %v907, 1.442695
        %v918 = vpow.pop %v917
        %v919 = vmul.f32 %v908, 1.442695
        %v920 = vpow.pop %v919
        %v921 = vmul.f32 %v909, 1.442695
        %v922 = vpow.pop %v921
        %v923 = vmul.f32 %v910, 1.442695
        %v924 = vpow.pop %v923
        %v925 = vmul.f32 %v911, 1.442695
        %v926 = vpow.pop %v925
        %v927 = vmul.f32 %v912, 1.442695
        %v928 = vpow.pop %v927
        %v929 = vsel %vm880, %v914, 0.0
        %930 = vadd.xlane.f32.xlu0 %v929
        %v931 = vpop.xlane.xlu0 %930
        %v932 = vsel %vm880, %v916, 0.0
        %933 = vadd.xlane.f32.xlu0 %v932
        %v934 = vpop.xlane.xlu0 %933
        %v935 = vsel %vm880, %v918, 0.0
        %936 = vadd.xlane.f32.xlu0 %v935
        %v937 = vpop.xlane.xlu0 %936
        %v938 = vsel %vm880, %v920, 0.0
        %939 = vadd.xlane.f32.xlu0 %v938
        %v940 = vpop.xlane.xlu0 %939
        %v941 = vsel %vm880, %v922, 0.0
        %942 = vadd.xlane.f32.xlu0 %v941
        %v943 = vpop.xlane.xlu0 %942
        %v944 = vsel %vm880, %v924, 0.0
        %945 = vadd.xlane.f32.xlu0 %v944
        %v946 = vpop.xlane.xlu0 %945
        %v947 = vsel %vm880, %v926, 0.0
        %948 = vadd.xlane.f32.xlu0 %v947
        %v949 = vpop.xlane.xlu0 %948
        %v950 = vsel %vm880, %v928, 0.0
        %951 = vadd.xlane.f32.xlu0 %v950
        %v952 = vpop.xlane.xlu0 %951
        %v953 = vrcp.pop %v931
        %v954 = vrcp.pop %v934
        %v955 = vrcp.pop %v937
        %v956 = vrcp.pop %v940
        %v957 = vrcp.pop %v943
        %v958 = vrcp.pop %v946
        %v959 = vrcp.pop %v949
        %v960 = vrcp.pop %v952
        %v961 = vmul.f32 %v914, %v953
        %v962 = vmul.f32 %v916, %v954
        %v963 = vmul.f32 %v918, %v955
        %v964 = vmul.f32 %v920, %v956
        %v965 = vmul.f32 %v922, %v957
        %v966 = vmul.f32 %v924, %v958
        %v967 = vmul.f32 %v926, %v959
        %v968 = vmul.f32 %v928, %v960
        %v969 = vpack.c.bf16 %v962, %v961
        %v970 = vpack.c.bf16 %v964, %v963
        %v971 = vpack.c.bf16 %v966, %v965
        %v972 = vpack.c.bf16 %v968, %v967
        %v973 = vpack.c.bf16 %v801, %v799
        %v974 = vpack.c.bf16 %v806, %v804
        %v975 = vpack.c.bf16 %v811, %v809
        %v976 = vpack.c.bf16 %v816, %v814
        %v978 = vsel %vm880, %v969, 0
        %v981 = vsel %vm880, %v970, 0
        %v984 = vsel %vm880, %v971, 0
        %v987 = vsel %vm880, %v972, 0
        %989 = vmatpush.bf16.msra.mxu0 0
        %990 = vmatpush.bf16.msra.mxu0 0
        %991 = vmatpush.bf16.msra.mxu0 0
        %992 = vmatpush.bf16.msra.mxu0 0
        %993 = vmatpush.bf16.msra.mxu0 %v976
        %994 = vmatpush.bf16.msra.mxu0 %v975
        %995 = vmatpush.bf16.msra.mxu0 %v974
        %996 = vmatpush.bf16.msra.mxu0 %v973
        %997 = vmatmul.bf16.gmra.mxu0 %v978
        %v998 = vpop.f32.mrf.mxu0
        %v999 = vadd.f32 0.0, %v998
        %v1000 = vpop.f32.mrf.mxu0
        %v1001 = vadd.f32 0.0, %v1000
        %1002 = vmatmul.bf16.gmra.mxu0 %v981
        %v1003 = vpop.f32.mrf.mxu0
        %v1004 = vadd.f32 0.0, %v1003
        %v1005 = vpop.f32.mrf.mxu0
        %v1006 = vadd.f32 0.0, %v1005
        %1007 = vmatmul.bf16.gmra.mxu0 %v984
        %v1008 = vpop.f32.mrf.mxu0
        %v1009 = vadd.f32 0.0, %v1008
        %v1010 = vpop.f32.mrf.mxu0
        %v1011 = vadd.f32 0.0, %v1010
        %1012 = vmatmul.bf16.gmra.mxu0 %v987
        %v1013 = vpop.f32.mrf.mxu0
        %v1014 = vadd.f32 0.0, %v1013
        %v1015 = vpop.f32.mrf.mxu0
        %v1016 = vadd.f32 0.0, %v1015
        %1017 = vdwg.mxu0
        %v1018 = vpack.c.bf16 %v1001, %v999
        %v1019 = vpack.c.bf16 %v1006, %v1004
        %v1020 = vpack.c.bf16 %v1011, %v1009
        %v1021 = vpack.c.bf16 %v1016, %v1014
        %v1022 = vld [vmem:[%s9] sm:$0xf]
        %v1023 = vld [vmem:[%s9 + $0x4] sm:$0xf]
        %v1026 = vunpack.c.l.b16 %v1022
        %v1027 = vunpack.c.l.b16 %v1023
        %v1028 = vpack.c.b16 %v1027, %v1026
        %v1031 = vsel %vm826, %v1018, 0
        %v1034 = vsel %vm826, %v1019, 0
        %v1037 = vsel %vm826, %v1020, 0
        %v1040 = vsel %vm826, %v1021, 0
        %1042 = vmatpush.bf16.msra.mxu0 0
        %1043 = vmatpush.bf16.msra.mxu0 0
        %1044 = vmatpush.bf16.msra.mxu0 0
        %1045 = vmatpush.bf16.msra.mxu0 0
        %1046 = vmatpush.bf16.msra.mxu0 0
        %1047 = vmatpush.bf16.msra.mxu0 0
        %1048 = vmatpush.bf16.msra.mxu0 0
        %1049 = vmatpush.bf16.msra.mxu0 %v1028
        %1050 = vmatmul.bf16.gmra.mxu0 %v1031
        %v1051 = vpop.f32.mrf.mxu0
        %v1052 = vadd.f32 0.0, %v1051
        %v1053 = vpop.f32.mrf.mxu0
        %v1054 = vadd.f32 0.0, %v1053
        %1055 = vmatmul.bf16.gmra.mxu0 %v1034
        %v1056 = vpop.f32.mrf.mxu0
        %v1057 = vadd.f32 0.0, %v1056
        %v1058 = vpop.f32.mrf.mxu0
        %v1059 = vadd.f32 0.0, %v1058
        %1060 = vmatmul.bf16.gmra.mxu0 %v1037
        %v1061 = vpop.f32.mrf.mxu0
        %v1062 = vadd.f32 0.0, %v1061
        %v1063 = vpop.f32.mrf.mxu0
        %v1064 = vadd.f32 0.0, %v1063
        %1065 = vmatmul.bf16.gmra.mxu0 %v1040
        %v1066 = vpop.f32.mrf.mxu0
        %v1067 = vadd.f32 0.0, %v1066
        %v1068 = vpop.f32.mrf.mxu0
        %v1069 = vadd.f32 0.0, %v1068
        %1070 = vdwg.mxu0
        %v1071 = vadd.f32 %v454, %v1052
        %v1072 = vadd.f32 %v454, %v1054
        %v1073 = vadd.f32 %v454, %v1057
        %v1074 = vadd.f32 %v454, %v1059
        %v1075 = vadd.f32 %v454, %v1062
        %v1076 = vadd.f32 %v454, %v1064
        %v1077 = vadd.f32 %v454, %v1067
        %v1078 = vadd.f32 %v454, %v1069
        %s1079 = scalar_lea.vmem %s3, 64
        %v1080 = vld [vmem:[%s1079] sm:$0xf]
        %v1081 = vld [vmem:[%s1079 + $0x4] sm:$0xf]
        %v1082 = vld [vmem:[%s1079 + $0x8] sm:$0xf]
        %v1083 = vld [vmem:[%s1079 + $0xc] sm:$0xf]
        %v1084 = vld [vmem:[%s1079 + $0x10] sm:$0xf]
        %v1085 = vld [vmem:[%s1079 + $0x14] sm:$0xf]
        %v1086 = vld [vmem:[%s1079 + $0x18] sm:$0xf]
        %v1087 = vld [vmem:[%s1079 + $0x1c] sm:$0xf]
        %v1088 = vld [vmem:[%s1079 + $0x20] sm:$0xf]
        %v1089 = vld [vmem:[%s1079 + $0x24] sm:$0xf]
        %v1090 = vld [vmem:[%s1079 + $0x28] sm:$0xf]
        %v1091 = vld [vmem:[%s1079 + $0x2c] sm:$0xf]
        %v1092 = vld [vmem:[%s1079 + $0x30] sm:$0xf]
        %v1093 = vld [vmem:[%s1079 + $0x34] sm:$0xf]
        %v1094 = vld [vmem:[%s1079 + $0x38] sm:$0xf]
        %v1095 = vld [vmem:[%s1079 + $0x3c] sm:$0xf]
        %s1096 = scalar_lea.vmem %s4, 1
        %v1097 = vld [vmem:[%s1096] sm:$0x1]
        %v1099 = vperm.slane %v1097, 0
        %v1117 = vunpack.c.l.b16 %v1080
        %v1118 = vunpack.c.l.b16 %v1081
        %v1119 = vunpack.c.l.b16 %v1082
        %v1120 = vunpack.c.l.b16 %v1083
        %v1121 = vunpack.c.l.b16 %v1084
        %v1122 = vunpack.c.l.b16 %v1085
        %v1123 = vunpack.c.l.b16 %v1086
        %v1124 = vunpack.c.l.b16 %v1087
        %v1125 = vunpack.c.l.b16 %v1088
        %v1126 = vunpack.c.l.b16 %v1089
        %v1127 = vunpack.c.l.b16 %v1090
        %v1128 = vunpack.c.l.b16 %v1091
        %v1129 = vunpack.c.l.b16 %v1092
        %v1130 = vunpack.c.l.b16 %v1093
        %v1131 = vunpack.c.l.b16 %v1094
        %v1132 = vunpack.c.l.b16 %v1095
        %v1133 = vpack.c.b16 %v1118, %v1117
        %v1134 = vpack.c.b16 %v1120, %v1119
        %v1135 = vpack.c.b16 %v1122, %v1121
        %v1136 = vpack.c.b16 %v1124, %v1123
        %v1137 = vpack.c.b16 %v1126, %v1125
        %v1138 = vpack.c.b16 %v1128, %v1127
        %v1139 = vpack.c.b16 %v1130, %v1129
        %v1140 = vpack.c.b16 %v1132, %v1131
        %1149 = vmatpush.bf16.msra.mxu0 %v1140
        %1150 = vmatpush.bf16.msra.mxu0 %v1139
        %1151 = vmatpush.bf16.msra.mxu0 %v1138
        %1152 = vmatpush.bf16.msra.mxu0 %v1137
        %1153 = vmatpush.bf16.msra.mxu0 %v1136
        %1154 = vmatpush.bf16.msra.mxu0 %v1135
        %1155 = vmatpush.bf16.msra.mxu0 %v1134
        %1156 = vmatpush.bf16.msra.mxu0 %v1133
        %1157 = vmatmul.bf16.gmra.mxu0 %v491
        %v1158 = vpop.f32.mrf.mxu0
        %v1159 = vadd.f32 %v1099, %v1158
        %v1160 = vpop.f32.mrf.mxu0
        %v1161 = vadd.f32 %v1099, %v1160
        %1162 = vmatmul.bf16.gmra.mxu0 %v492
        %v1163 = vpop.f32.mrf.mxu0
        %v1164 = vadd.f32 %v1099, %v1163
        %v1165 = vpop.f32.mrf.mxu0
        %v1166 = vadd.f32 %v1099, %v1165
        %1167 = vmatmul.bf16.gmra.mxu0 %v493
        %v1168 = vpop.f32.mrf.mxu0
        %v1169 = vadd.f32 %v1099, %v1168
        %v1170 = vpop.f32.mrf.mxu0
        %v1171 = vadd.f32 %v1099, %v1170
        %1172 = vmatmul.bf16.gmra.mxu0 %v494
        %v1173 = vpop.f32.mrf.mxu0
        %v1174 = vadd.f32 %v1099, %v1173
        %v1175 = vpop.f32.mrf.mxu0
        %v1176 = vadd.f32 %v1099, %v1175
        %1177 = vdwg.mxu0
        %s1178 = scalar_lea.vmem %s5, 64
        %v1179 = vld [vmem:[%s1178] sm:$0xf]
        %v1180 = vld [vmem:[%s1178 + $0x4] sm:$0xf]
        %v1181 = vld [vmem:[%s1178 + $0x8] sm:$0xf]
        %v1182 = vld [vmem:[%s1178 + $0xc] sm:$0xf]
        %v1183 = vld [vmem:[%s1178 + $0x10] sm:$0xf]
        %v1184 = vld [vmem:[%s1178 + $0x14] sm:$0xf]
        %v1185 = vld [vmem:[%s1178 + $0x18] sm:$0xf]
        %v1186 = vld [vmem:[%s1178 + $0x1c] sm:$0xf]
        %v1187 = vld [vmem:[%s1178 + $0x20] sm:$0xf]
        %v1188 = vld [vmem:[%s1178 + $0x24] sm:$0xf]
        %v1189 = vld [vmem:[%s1178 + $0x28] sm:$0xf]
        %v1190 = vld [vmem:[%s1178 + $0x2c] sm:$0xf]
        %v1191 = vld [vmem:[%s1178 + $0x30] sm:$0xf]
        %v1192 = vld [vmem:[%s1178 + $0x34] sm:$0xf]
        %v1193 = vld [vmem:[%s1178 + $0x38] sm:$0xf]
        %v1194 = vld [vmem:[%s1178 + $0x3c] sm:$0xf]
        %s1195 = scalar_lea.vmem %s6, 1
        %v1196 = vld [vmem:[%s1195] sm:$0x1]
        %v1198 = vperm.slane %v1196, 0
        %v1216 = vunpack.c.l.b16 %v1179
        %v1217 = vunpack.c.l.b16 %v1180
        %v1218 = vunpack.c.l.b16 %v1181
        %v1219 = vunpack.c.l.b16 %v1182
        %v1220 = vunpack.c.l.b16 %v1183
        %v1221 = vunpack.c.l.b16 %v1184
        %v1222 = vunpack.c.l.b16 %v1185
        %v1223 = vunpack.c.l.b16 %v1186
        %v1224 = vunpack.c.l.b16 %v1187
        %v1225 = vunpack.c.l.b16 %v1188
        %v1226 = vunpack.c.l.b16 %v1189
        %v1227 = vunpack.c.l.b16 %v1190
        %v1228 = vunpack.c.l.b16 %v1191
        %v1229 = vunpack.c.l.b16 %v1192
        %v1230 = vunpack.c.l.b16 %v1193
        %v1231 = vunpack.c.l.b16 %v1194
        %v1232 = vpack.c.b16 %v1217, %v1216
        %v1233 = vpack.c.b16 %v1219, %v1218
        %v1234 = vpack.c.b16 %v1221, %v1220
        %v1235 = vpack.c.b16 %v1223, %v1222
        %v1236 = vpack.c.b16 %v1225, %v1224
        %v1237 = vpack.c.b16 %v1227, %v1226
        %v1238 = vpack.c.b16 %v1229, %v1228
        %v1239 = vpack.c.b16 %v1231, %v1230
        %1248 = vmatpush.bf16.msra.mxu0 %v1239
        %1249 = vmatpush.bf16.msra.mxu0 %v1238
        %1250 = vmatpush.bf16.msra.mxu0 %v1237
        %1251 = vmatpush.bf16.msra.mxu0 %v1236
        %1252 = vmatpush.bf16.msra.mxu0 %v1235
        %1253 = vmatpush.bf16.msra.mxu0 %v1234
        %1254 = vmatpush.bf16.msra.mxu0 %v1233
        %1255 = vmatpush.bf16.msra.mxu0 %v1232
        %1256 = vmatmul.bf16.gmra.mxu0 %v612
        %v1257 = vpop.f32.mrf.mxu0
        %v1258 = vadd.f32 %v1198, %v1257
        %v1259 = vpop.f32.mrf.mxu0
        %v1260 = vadd.f32 %v1198, %v1259
        %1261 = vmatmul.bf16.gmra.mxu0 %v613
        %v1262 = vpop.f32.mrf.mxu0
        %v1263 = vadd.f32 %v1198, %v1262
        %v1264 = vpop.f32.mrf.mxu0
        %v1265 = vadd.f32 %v1198, %v1264
        %1266 = vmatmul.bf16.gmra.mxu0 %v614
        %v1267 = vpop.f32.mrf.mxu0
        %v1268 = vadd.f32 %v1198, %v1267
        %v1269 = vpop.f32.mrf.mxu0
        %v1270 = vadd.f32 %v1198, %v1269
        %1271 = vmatmul.bf16.gmra.mxu0 %v615
        %v1272 = vpop.f32.mrf.mxu0
        %v1273 = vadd.f32 %v1198, %v1272
        %v1274 = vpop.f32.mrf.mxu0
        %v1275 = vadd.f32 %v1198, %v1274
        %1276 = vdwg.mxu0
        %s1277 = scalar_lea.vmem %s7, 64
        %v1278 = vld [vmem:[%s1277] sm:$0xf]
        %v1279 = vld [vmem:[%s1277 + $0x4] sm:$0xf]
        %v1280 = vld [vmem:[%s1277 + $0x8] sm:$0xf]
        %v1281 = vld [vmem:[%s1277 + $0xc] sm:$0xf]
        %v1282 = vld [vmem:[%s1277 + $0x10] sm:$0xf]
        %v1283 = vld [vmem:[%s1277 + $0x14] sm:$0xf]
        %v1284 = vld [vmem:[%s1277 + $0x18] sm:$0xf]
        %v1285 = vld [vmem:[%s1277 + $0x1c] sm:$0xf]
        %v1286 = vld [vmem:[%s1277 + $0x20] sm:$0xf]
        %v1287 = vld [vmem:[%s1277 + $0x24] sm:$0xf]
        %v1288 = vld [vmem:[%s1277 + $0x28] sm:$0xf]
        %v1289 = vld [vmem:[%s1277 + $0x2c] sm:$0xf]
        %v1290 = vld [vmem:[%s1277 + $0x30] sm:$0xf]
        %v1291 = vld [vmem:[%s1277 + $0x34] sm:$0xf]
        %v1292 = vld [vmem:[%s1277 + $0x38] sm:$0xf]
        %v1293 = vld [vmem:[%s1277 + $0x3c] sm:$0xf]
        %s1294 = scalar_lea.vmem %s8, 1
        %v1295 = vld [vmem:[%s1294] sm:$0x1]
        %v1297 = vperm.slane %v1295, 0
        %v1315 = vunpack.c.l.b16 %v1278
        %v1316 = vunpack.c.l.b16 %v1279
        %v1317 = vunpack.c.l.b16 %v1280
        %v1318 = vunpack.c.l.b16 %v1281
        %v1319 = vunpack.c.l.b16 %v1282
        %v1320 = vunpack.c.l.b16 %v1283
        %v1321 = vunpack.c.l.b16 %v1284
        %v1322 = vunpack.c.l.b16 %v1285
        %v1323 = vunpack.c.l.b16 %v1286
        %v1324 = vunpack.c.l.b16 %v1287
        %v1325 = vunpack.c.l.b16 %v1288
        %v1326 = vunpack.c.l.b16 %v1289
        %v1327 = vunpack.c.l.b16 %v1290
        %v1328 = vunpack.c.l.b16 %v1291
        %v1329 = vunpack.c.l.b16 %v1292
        %v1330 = vunpack.c.l.b16 %v1293
        %v1331 = vpack.c.b16 %v1316, %v1315
        %v1332 = vpack.c.b16 %v1318, %v1317
        %v1333 = vpack.c.b16 %v1320, %v1319
        %v1334 = vpack.c.b16 %v1322, %v1321
        %v1335 = vpack.c.b16 %v1324, %v1323
        %v1336 = vpack.c.b16 %v1326, %v1325
        %v1337 = vpack.c.b16 %v1328, %v1327
        %v1338 = vpack.c.b16 %v1330, %v1329
        %1347 = vmatpush.bf16.msra.mxu0 %v1338
        %1348 = vmatpush.bf16.msra.mxu0 %v1337
        %1349 = vmatpush.bf16.msra.mxu0 %v1336
        %1350 = vmatpush.bf16.msra.mxu0 %v1335
        %1351 = vmatpush.bf16.msra.mxu0 %v1334
        %1352 = vmatpush.bf16.msra.mxu0 %v1333
        %1353 = vmatpush.bf16.msra.mxu0 %v1332
        %1354 = vmatpush.bf16.msra.mxu0 %v1331
        %1355 = vmatmul.bf16.gmra.mxu0 %v733
        %v1356 = vpop.f32.mrf.mxu0
        %v1357 = vadd.f32 %v1297, %v1356
        %v1358 = vpop.f32.mrf.mxu0
        %v1359 = vadd.f32 %v1297, %v1358
        %1360 = vmatmul.bf16.gmra.mxu0 %v734
        %v1361 = vpop.f32.mrf.mxu0
        %v1362 = vadd.f32 %v1297, %v1361
        %v1363 = vpop.f32.mrf.mxu0
        %v1364 = vadd.f32 %v1297, %v1363
        %1365 = vmatmul.bf16.gmra.mxu0 %v735
        %v1366 = vpop.f32.mrf.mxu0
        %v1367 = vadd.f32 %v1297, %v1366
        %v1368 = vpop.f32.mrf.mxu0
        %v1369 = vadd.f32 %v1297, %v1368
        %1370 = vmatmul.bf16.gmra.mxu0 %v736
        %v1371 = vpop.f32.mrf.mxu0
        %v1372 = vadd.f32 %v1297, %v1371
        %v1373 = vpop.f32.mrf.mxu0
        %v1374 = vadd.f32 %v1297, %v1373
        %1375 = vdwg.mxu0
        %v1376 = vpack.c.bf16 %v1161, %v1159
        %v1377 = vpack.c.bf16 %v1166, %v1164
        %v1378 = vpack.c.bf16 %v1171, %v1169
        %v1379 = vpack.c.bf16 %v1176, %v1174
        %v1380 = vpack.c.bf16 %v1260, %v1258
        %v1381 = vpack.c.bf16 %v1265, %v1263
        %v1382 = vpack.c.bf16 %v1270, %v1268
        %v1383 = vpack.c.bf16 %v1275, %v1273
        %v1385 = vsel %vm826, %v1376, 0
        %v1388 = vsel %vm826, %v1377, 0
        %v1391 = vsel %vm826, %v1378, 0
        %v1394 = vsel %vm826, %v1379, 0
        %v1397 = vsel %vm826, %v1380, 0
        %v1400 = vsel %vm826, %v1381, 0
        %v1403 = vsel %vm826, %v1382, 0
        %v1406 = vsel %vm826, %v1383, 0
        %1408 = vmatpush.bf16.xpose.msra.mxu0 0
        %1409 = vmatpush.bf16.xpose.msra.mxu0 0
        %1410 = vmatpush.bf16.xpose.msra.mxu0 0
        %1411 = vmatpush.bf16.xpose.msra.mxu0 0
        %1412 = vmatpush.bf16.xpose.msra.mxu0 %v1406
        %1413 = vmatpush.bf16.xpose.msra.mxu0 %v1403
        %1414 = vmatpush.bf16.xpose.msra.mxu0 %v1400
        %1415 = vmatpush.bf16.xpose.msra.mxu0 %v1397
        %1416 = vmatmul.bf16.gmra.mxu0 %v1385
        %v1417 = vpop.f32.mrf.mxu0
        %v1418 = vadd.f32 0.0, %v1417
        %v1419 = vpop.f32.mrf.mxu0
        %v1420 = vadd.f32 0.0, %v1419
        %1421 = vmatmul.bf16.gmra.mxu0 %v1388
        %v1422 = vpop.f32.mrf.mxu0
        %v1423 = vadd.f32 0.0, %v1422
        %v1424 = vpop.f32.mrf.mxu0
        %v1425 = vadd.f32 0.0, %v1424
        %1426 = vmatmul.bf16.gmra.mxu0 %v1391
        %v1427 = vpop.f32.mrf.mxu0
        %v1428 = vadd.f32 0.0, %v1427
        %v1429 = vpop.f32.mrf.mxu0
        %v1430 = vadd.f32 0.0, %v1429
        %1431 = vmatmul.bf16.gmra.mxu0 %v1394
        %v1432 = vpop.f32.mrf.mxu0
        %v1433 = vadd.f32 0.0, %v1432
        %v1434 = vpop.f32.mrf.mxu0
        %v1435 = vadd.f32 0.0, %v1434
        %1436 = vdwg.mxu0
        %v1437 = vsel %vm880, %v1418, -inf
        %1438 = vmax.xlane.f32.xlu0 %v1437
        %v1439 = vpop.xlane.xlu0 %1438
        %v1440 = vsel %vm880, %v1420, -inf
        %1441 = vmax.xlane.f32.xlu0 %v1440
        %v1442 = vpop.xlane.xlu0 %1441
        %v1443 = vsel %vm880, %v1423, -inf
        %1444 = vmax.xlane.f32.xlu0 %v1443
        %v1445 = vpop.xlane.xlu0 %1444
        %v1446 = vsel %vm880, %v1425, -inf
        %1447 = vmax.xlane.f32.xlu0 %v1446
        %v1448 = vpop.xlane.xlu0 %1447
        %v1449 = vsel %vm880, %v1428, -inf
        %1450 = vmax.xlane.f32.xlu0 %v1449
        %v1451 = vpop.xlane.xlu0 %1450
        %v1452 = vsel %vm880, %v1430, -inf
        %1453 = vmax.xlane.f32.xlu0 %v1452
        %v1454 = vpop.xlane.xlu0 %1453
        %v1455 = vsel %vm880, %v1433, -inf
        %1456 = vmax.xlane.f32.xlu0 %v1455
        %v1457 = vpop.xlane.xlu0 %1456
        %v1458 = vsel %vm880, %v1435, -inf
        %1459 = vmax.xlane.f32.xlu0 %v1458
        %v1460 = vpop.xlane.xlu0 %1459
        %v1461 = vsub.f32 %v1418, %v1439
        %v1462 = vsub.f32 %v1420, %v1442
        %v1463 = vsub.f32 %v1423, %v1445
        %v1464 = vsub.f32 %v1425, %v1448
        %v1465 = vsub.f32 %v1428, %v1451
        %v1466 = vsub.f32 %v1430, %v1454
        %v1467 = vsub.f32 %v1433, %v1457
        %v1468 = vsub.f32 %v1435, %v1460
        %v1469 = vmul.f32 %v1461, 1.442695
        %v1470 = vpow.pop %v1469
        %v1471 = vmul.f32 %v1462, 1.442695
        %v1472 = vpow.pop %v1471
        %v1473 = vmul.f32 %v1463, 1.442695
        %v1474 = vpow.pop %v1473
        %v1475 = vmul.f32 %v1464, 1.442695
        %v1476 = vpow.pop %v1475
        %v1477 = vmul.f32 %v1465, 1.442695
        %v1478 = vpow.pop %v1477
        %v1479 = vmul.f32 %v1466, 1.442695
        %v1480 = vpow.pop %v1479
        %v1481 = vmul.f32 %v1467, 1.442695
        %v1482 = vpow.pop %v1481
        %v1483 = vmul.f32 %v1468, 1.442695
        %v1484 = vpow.pop %v1483
        %v1485 = vsel %vm880, %v1470, 0.0
        %1486 = vadd.xlane.f32.xlu0 %v1485
        %v1487 = vpop.xlane.xlu0 %1486
        %v1488 = vsel %vm880, %v1472, 0.0
        %1489 = vadd.xlane.f32.xlu0 %v1488
        %v1490 = vpop.xlane.xlu0 %1489
        %v1491 = vsel %vm880, %v1474, 0.0
        %1492 = vadd.xlane.f32.xlu0 %v1491
        %v1493 = vpop.xlane.xlu0 %1492
        %v1494 = vsel %vm880, %v1476, 0.0
        %1495 = vadd.xlane.f32.xlu0 %v1494
        %v1496 = vpop.xlane.xlu0 %1495
        %v1497 = vsel %vm880, %v1478, 0.0
        %1498 = vadd.xlane.f32.xlu0 %v1497
        %v1499 = vpop.xlane.xlu0 %1498
        %v1500 = vsel %vm880, %v1480, 0.0
        %1501 = vadd.xlane.f32.xlu0 %v1500
        %v1502 = vpop.xlane.xlu0 %1501
        %v1503 = vsel %vm880, %v1482, 0.0
        %1504 = vadd.xlane.f32.xlu0 %v1503
        %v1505 = vpop.xlane.xlu0 %1504
        %v1506 = vsel %vm880, %v1484, 0.0
        %1507 = vadd.xlane.f32.xlu0 %v1506
        %v1508 = vpop.xlane.xlu0 %1507
        %v1509 = vrcp.pop %v1487
        %v1510 = vrcp.pop %v1490
        %v1511 = vrcp.pop %v1493
        %v1512 = vrcp.pop %v1496
        %v1513 = vrcp.pop %v1499
        %v1514 = vrcp.pop %v1502
        %v1515 = vrcp.pop %v1505
        %v1516 = vrcp.pop %v1508
        %v1517 = vmul.f32 %v1470, %v1509
        %v1518 = vmul.f32 %v1472, %v1510
        %v1519 = vmul.f32 %v1474, %v1511
        %v1520 = vmul.f32 %v1476, %v1512
        %v1521 = vmul.f32 %v1478, %v1513
        %v1522 = vmul.f32 %v1480, %v1514
        %v1523 = vmul.f32 %v1482, %v1515
        %v1524 = vmul.f32 %v1484, %v1516
        %v1525 = vpack.c.bf16 %v1518, %v1517
        %v1526 = vpack.c.bf16 %v1520, %v1519
        %v1527 = vpack.c.bf16 %v1522, %v1521
        %v1528 = vpack.c.bf16 %v1524, %v1523
        %v1529 = vpack.c.bf16 %v1359, %v1357
        %v1530 = vpack.c.bf16 %v1364, %v1362
        %v1531 = vpack.c.bf16 %v1369, %v1367
        %v1532 = vpack.c.bf16 %v1374, %v1372
        %v1534 = vsel %vm880, %v1525, 0
        %v1537 = vsel %vm880, %v1526, 0
        %v1540 = vsel %vm880, %v1527, 0
        %v1543 = vsel %vm880, %v1528, 0
        %1545 = vmatpush.bf16.msra.mxu0 0
        %1546 = vmatpush.bf16.msra.mxu0 0
        %1547 = vmatpush.bf16.msra.mxu0 0
        %1548 = vmatpush.bf16.msra.mxu0 0
        %1549 = vmatpush.bf16.msra.mxu0 %v1532
        %1550 = vmatpush.bf16.msra.mxu0 %v1531
        %1551 = vmatpush.bf16.msra.mxu0 %v1530
        %1552 = vmatpush.bf16.msra.mxu0 %v1529
        %1553 = vmatmul.bf16.gmra.mxu0 %v1534
        %v1554 = vpop.f32.mrf.mxu0
        %v1555 = vadd.f32 0.0, %v1554
        %v1556 = vpop.f32.mrf.mxu0
        %v1557 = vadd.f32 0.0, %v1556
        %1558 = vmatmul.bf16.gmra.mxu0 %v1537
        %v1559 = vpop.f32.mrf.mxu0
        %v1560 = vadd.f32 0.0, %v1559
        %v1561 = vpop.f32.mrf.mxu0
        %v1562 = vadd.f32 0.0, %v1561
        %1563 = vmatmul.bf16.gmra.mxu0 %v1540
        %v1564 = vpop.f32.mrf.mxu0
        %v1565 = vadd.f32 0.0, %v1564
        %v1566 = vpop.f32.mrf.mxu0
        %v1567 = vadd.f32 0.0, %v1566
        %1568 = vmatmul.bf16.gmra.mxu0 %v1543
        %v1569 = vpop.f32.mrf.mxu0
        %v1570 = vadd.f32 0.0, %v1569
        %v1571 = vpop.f32.mrf.mxu0
        %v1572 = vadd.f32 0.0, %v1571
        %1573 = vdwg.mxu0
        %v1574 = vpack.c.bf16 %v1557, %v1555
        %v1575 = vpack.c.bf16 %v1562, %v1560
        %v1576 = vpack.c.bf16 %v1567, %v1565
        %v1577 = vpack.c.bf16 %v1572, %v1570
        %s1578 = scalar_lea.vmem %s9, 8
        %v1579 = vld [vmem:[%s1578] sm:$0xf]
        %v1580 = vld [vmem:[%s1578 + $0x4] sm:$0xf]
        %v1583 = vunpack.c.l.b16 %v1579
        %v1584 = vunpack.c.l.b16 %v1580
        %v1585 = vpack.c.b16 %v1584, %v1583
        %v1588 = vsel %vm826, %v1574, 0
        %v1591 = vsel %vm826, %v1575, 0
        %v1594 = vsel %vm826, %v1576, 0
        %v1597 = vsel %vm826, %v1577, 0
        %1599 = vmatpush.bf16.msra.mxu0 0
        %1600 = vmatpush.bf16.msra.mxu0 0
        %1601 = vmatpush.bf16.msra.mxu0 0
        %1602 = vmatpush.bf16.msra.mxu0 0
        %1603 = vmatpush.bf16.msra.mxu0 0
        %1604 = vmatpush.bf16.msra.mxu0 0
        %1605 = vmatpush.bf16.msra.mxu0 0
        %1606 = vmatpush.bf16.msra.mxu0 %v1585
        %1607 = vmatmul.bf16.gmra.mxu0 %v1588
        %v1608 = vpop.f32.mrf.mxu0
        %v1609 = vadd.f32 0.0, %v1608
        %v1610 = vpop.f32.mrf.mxu0
        %v1611 = vadd.f32 0.0, %v1610
        %1612 = vmatmul.bf16.gmra.mxu0 %v1591
        %v1613 = vpop.f32.mrf.mxu0
        %v1614 = vadd.f32 0.0, %v1613
        %v1615 = vpop.f32.mrf.mxu0
        %v1616 = vadd.f32 0.0, %v1615
        %1617 = vmatmul.bf16.gmra.mxu0 %v1594
        %v1618 = vpop.f32.mrf.mxu0
        %v1619 = vadd.f32 0.0, %v1618
        %v1620 = vpop.f32.mrf.mxu0
        %v1621 = vadd.f32 0.0, %v1620
        %1622 = vmatmul.bf16.gmra.mxu0 %v1597
        %v1623 = vpop.f32.mrf.mxu0
        %v1624 = vadd.f32 0.0, %v1623
        %v1625 = vpop.f32.mrf.mxu0
        %v1626 = vadd.f32 0.0, %v1625
        %1627 = vdwg.mxu0
        %v1628 = vadd.f32 %v1071, %v1609
        %v1629 = vadd.f32 %v1072, %v1611
        %v1630 = vadd.f32 %v1073, %v1614
        %v1631 = vadd.f32 %v1074, %v1616
        %v1632 = vadd.f32 %v1075, %v1619
        %v1633 = vadd.f32 %v1076, %v1621
        %v1634 = vadd.f32 %v1077, %v1624
        %v1635 = vadd.f32 %v1078, %v1626
        %s1636 = scalar_lea.vmem %s3, 128
        %v1637 = vld [vmem:[%s1636] sm:$0xf]
        %v1638 = vld [vmem:[%s1636 + $0x4] sm:$0xf]
        %v1639 = vld [vmem:[%s1636 + $0x8] sm:$0xf]
        %v1640 = vld [vmem:[%s1636 + $0xc] sm:$0xf]
        %v1641 = vld [vmem:[%s1636 + $0x10] sm:$0xf]
        %v1642 = vld [vmem:[%s1636 + $0x14] sm:$0xf]
        %v1643 = vld [vmem:[%s1636 + $0x18] sm:$0xf]
        %v1644 = vld [vmem:[%s1636 + $0x1c] sm:$0xf]
        %v1645 = vld [vmem:[%s1636 + $0x20] sm:$0xf]
        %v1646 = vld [vmem:[%s1636 + $0x24] sm:$0xf]
        %v1647 = vld [vmem:[%s1636 + $0x28] sm:$0xf]
        %v1648 = vld [vmem:[%s1636 + $0x2c] sm:$0xf]
        %v1649 = vld [vmem:[%s1636 + $0x30] sm:$0xf]
        %v1650 = vld [vmem:[%s1636 + $0x34] sm:$0xf]
        %v1651 = vld [vmem:[%s1636 + $0x38] sm:$0xf]
        %v1652 = vld [vmem:[%s1636 + $0x3c] sm:$0xf]
        %s1653 = scalar_lea.vmem %s4, 2
        %v1654 = vld [vmem:[%s1653] sm:$0x1]
        %v1656 = vperm.slane %v1654, 0
        %v1674 = vunpack.c.l.b16 %v1637
        %v1675 = vunpack.c.l.b16 %v1638
        %v1676 = vunpack.c.l.b16 %v1639
        %v1677 = vunpack.c.l.b16 %v1640
        %v1678 = vunpack.c.l.b16 %v1641
        %v1679 = vunpack.c.l.b16 %v1642
        %v1680 = vunpack.c.l.b16 %v1643
        %v1681 = vunpack.c.l.b16 %v1644
        %v1682 = vunpack.c.l.b16 %v1645
        %v1683 = vunpack.c.l.b16 %v1646
        %v1684 = vunpack.c.l.b16 %v1647
        %v1685 = vunpack.c.l.b16 %v1648
        %v1686 = vunpack.c.l.b16 %v1649
        %v1687 = vunpack.c.l.b16 %v1650
        %v1688 = vunpack.c.l.b16 %v1651
        %v1689 = vunpack.c.l.b16 %v1652
        %v1690 = vpack.c.b16 %v1675, %v1674
        %v1691 = vpack.c.b16 %v1677, %v1676
        %v1692 = vpack.c.b16 %v1679, %v1678
        %v1693 = vpack.c.b16 %v1681, %v1680
        %v1694 = vpack.c.b16 %v1683, %v1682
        %v1695 = vpack.c.b16 %v1685, %v1684
        %v1696 = vpack.c.b16 %v1687, %v1686
        %v1697 = vpack.c.b16 %v1689, %v1688
        %1706 = vmatpush.bf16.msra.mxu0 %v1697
        %1707 = vmatpush.bf16.msra.mxu0 %v1696
        %1708 = vmatpush.bf16.msra.mxu0 %v1695
        %1709 = vmatpush.bf16.msra.mxu0 %v1694
        %1710 = vmatpush.bf16.msra.mxu0 %v1693
        %1711 = vmatpush.bf16.msra.mxu0 %v1692
        %1712 = vmatpush.bf16.msra.mxu0 %v1691
        %1713 = vmatpush.bf16.msra.mxu0 %v1690
        %1714 = vmatmul.bf16.gmra.mxu0 %v491
        %v1715 = vpop.f32.mrf.mxu0
        %v1716 = vadd.f32 %v1656, %v1715
        %v1717 = vpop.f32.mrf.mxu0
        %v1718 = vadd.f32 %v1656, %v1717
        %1719 = vmatmul.bf16.gmra.mxu0 %v492
        %v1720 = vpop.f32.mrf.mxu0
        %v1721 = vadd.f32 %v1656, %v1720
        %v1722 = vpop.f32.mrf.mxu0
        %v1723 = vadd.f32 %v1656, %v1722
        %1724 = vmatmul.bf16.gmra.mxu0 %v493
        %v1725 = vpop.f32.mrf.mxu0
        %v1726 = vadd.f32 %v1656, %v1725
        %v1727 = vpop.f32.mrf.mxu0
        %v1728 = vadd.f32 %v1656, %v1727
        %1729 = vmatmul.bf16.gmra.mxu0 %v494
        %v1730 = vpop.f32.mrf.mxu0
        %v1731 = vadd.f32 %v1656, %v1730
        %v1732 = vpop.f32.mrf.mxu0
        %v1733 = vadd.f32 %v1656, %v1732
        %1734 = vdwg.mxu0
        %s1735 = scalar_lea.vmem %s5, 128
        %v1736 = vld [vmem:[%s1735] sm:$0xf]
        %v1737 = vld [vmem:[%s1735 + $0x4] sm:$0xf]
        %v1738 = vld [vmem:[%s1735 + $0x8] sm:$0xf]
        %v1739 = vld [vmem:[%s1735 + $0xc] sm:$0xf]
        %v1740 = vld [vmem:[%s1735 + $0x10] sm:$0xf]
        %v1741 = vld [vmem:[%s1735 + $0x14] sm:$0xf]
        %v1742 = vld [vmem:[%s1735 + $0x18] sm:$0xf]
        %v1743 = vld [vmem:[%s1735 + $0x1c] sm:$0xf]
        %v1744 = vld [vmem:[%s1735 + $0x20] sm:$0xf]
        %v1745 = vld [vmem:[%s1735 + $0x24] sm:$0xf]
        %v1746 = vld [vmem:[%s1735 + $0x28] sm:$0xf]
        %v1747 = vld [vmem:[%s1735 + $0x2c] sm:$0xf]
        %v1748 = vld [vmem:[%s1735 + $0x30] sm:$0xf]
        %v1749 = vld [vmem:[%s1735 + $0x34] sm:$0xf]
        %v1750 = vld [vmem:[%s1735 + $0x38] sm:$0xf]
        %v1751 = vld [vmem:[%s1735 + $0x3c] sm:$0xf]
        %s1752 = scalar_lea.vmem %s6, 2
        %v1753 = vld [vmem:[%s1752] sm:$0x1]
        %v1755 = vperm.slane %v1753, 0
        %v1773 = vunpack.c.l.b16 %v1736
        %v1774 = vunpack.c.l.b16 %v1737
        %v1775 = vunpack.c.l.b16 %v1738
        %v1776 = vunpack.c.l.b16 %v1739
        %v1777 = vunpack.c.l.b16 %v1740
        %v1778 = vunpack.c.l.b16 %v1741
        %v1779 = vunpack.c.l.b16 %v1742
        %v1780 = vunpack.c.l.b16 %v1743
        %v1781 = vunpack.c.l.b16 %v1744
        %v1782 = vunpack.c.l.b16 %v1745
        %v1783 = vunpack.c.l.b16 %v1746
        %v1784 = vunpack.c.l.b16 %v1747
        %v1785 = vunpack.c.l.b16 %v1748
        %v1786 = vunpack.c.l.b16 %v1749
        %v1787 = vunpack.c.l.b16 %v1750
        %v1788 = vunpack.c.l.b16 %v1751
        %v1789 = vpack.c.b16 %v1774, %v1773
        %v1790 = vpack.c.b16 %v1776, %v1775
        %v1791 = vpack.c.b16 %v1778, %v1777
        %v1792 = vpack.c.b16 %v1780, %v1779
        %v1793 = vpack.c.b16 %v1782, %v1781
        %v1794 = vpack.c.b16 %v1784, %v1783
        %v1795 = vpack.c.b16 %v1786, %v1785
        %v1796 = vpack.c.b16 %v1788, %v1787
        %1805 = vmatpush.bf16.msra.mxu0 %v1796
        %1806 = vmatpush.bf16.msra.mxu0 %v1795
        %1807 = vmatpush.bf16.msra.mxu0 %v1794
        %1808 = vmatpush.bf16.msra.mxu0 %v1793
        %1809 = vmatpush.bf16.msra.mxu0 %v1792
        %1810 = vmatpush.bf16.msra.mxu0 %v1791
        %1811 = vmatpush.bf16.msra.mxu0 %v1790
        %1812 = vmatpush.bf16.msra.mxu0 %v1789
        %1813 = vmatmul.bf16.gmra.mxu0 %v612
        %v1814 = vpop.f32.mrf.mxu0
        %v1815 = vadd.f32 %v1755, %v1814
        %v1816 = vpop.f32.mrf.mxu0
        %v1817 = vadd.f32 %v1755, %v1816
        %1818 = vmatmul.bf16.gmra.mxu0 %v613
        %v1819 = vpop.f32.mrf.mxu0
        %v1820 = vadd.f32 %v1755, %v1819
        %v1821 = vpop.f32.mrf.mxu0
        %v1822 = vadd.f32 %v1755, %v1821
        %1823 = vmatmul.bf16.gmra.mxu0 %v614
        %v1824 = vpop.f32.mrf.mxu0
        %v1825 = vadd.f32 %v1755, %v1824
        %v1826 = vpop.f32.mrf.mxu0
        %v1827 = vadd.f32 %v1755, %v1826
        %1828 = vmatmul.bf16.gmra.mxu0 %v615
        %v1829 = vpop.f32.mrf.mxu0
        %v1830 = vadd.f32 %v1755, %v1829
        %v1831 = vpop.f32.mrf.mxu0
        %v1832 = vadd.f32 %v1755, %v1831
        %1833 = vdwg.mxu0
        %s1834 = scalar_lea.vmem %s7, 128
        %v1835 = vld [vmem:[%s1834] sm:$0xf]
        %v1836 = vld [vmem:[%s1834 + $0x4] sm:$0xf]
        %v1837 = vld [vmem:[%s1834 + $0x8] sm:$0xf]
        %v1838 = vld [vmem:[%s1834 + $0xc] sm:$0xf]
        %v1839 = vld [vmem:[%s1834 + $0x10] sm:$0xf]
        %v1840 = vld [vmem:[%s1834 + $0x14] sm:$0xf]
        %v1841 = vld [vmem:[%s1834 + $0x18] sm:$0xf]
        %v1842 = vld [vmem:[%s1834 + $0x1c] sm:$0xf]
        %v1843 = vld [vmem:[%s1834 + $0x20] sm:$0xf]
        %v1844 = vld [vmem:[%s1834 + $0x24] sm:$0xf]
        %v1845 = vld [vmem:[%s1834 + $0x28] sm:$0xf]
        %v1846 = vld [vmem:[%s1834 + $0x2c] sm:$0xf]
        %v1847 = vld [vmem:[%s1834 + $0x30] sm:$0xf]
        %v1848 = vld [vmem:[%s1834 + $0x34] sm:$0xf]
        %v1849 = vld [vmem:[%s1834 + $0x38] sm:$0xf]
        %v1850 = vld [vmem:[%s1834 + $0x3c] sm:$0xf]
        %s1851 = scalar_lea.vmem %s8, 2
        %v1852 = vld [vmem:[%s1851] sm:$0x1]
        %v1854 = vperm.slane %v1852, 0
        %v1872 = vunpack.c.l.b16 %v1835
        %v1873 = vunpack.c.l.b16 %v1836
        %v1874 = vunpack.c.l.b16 %v1837
        %v1875 = vunpack.c.l.b16 %v1838
        %v1876 = vunpack.c.l.b16 %v1839
        %v1877 = vunpack.c.l.b16 %v1840
        %v1878 = vunpack.c.l.b16 %v1841
        %v1879 = vunpack.c.l.b16 %v1842
        %v1880 = vunpack.c.l.b16 %v1843
        %v1881 = vunpack.c.l.b16 %v1844
        %v1882 = vunpack.c.l.b16 %v1845
        %v1883 = vunpack.c.l.b16 %v1846
        %v1884 = vunpack.c.l.b16 %v1847
        %v1885 = vunpack.c.l.b16 %v1848
        %v1886 = vunpack.c.l.b16 %v1849
        %v1887 = vunpack.c.l.b16 %v1850
        %v1888 = vpack.c.b16 %v1873, %v1872
        %v1889 = vpack.c.b16 %v1875, %v1874
        %v1890 = vpack.c.b16 %v1877, %v1876
        %v1891 = vpack.c.b16 %v1879, %v1878
        %v1892 = vpack.c.b16 %v1881, %v1880
        %v1893 = vpack.c.b16 %v1883, %v1882
        %v1894 = vpack.c.b16 %v1885, %v1884
        %v1895 = vpack.c.b16 %v1887, %v1886
        %1904 = vmatpush.bf16.msra.mxu0 %v1895
        %1905 = vmatpush.bf16.msra.mxu0 %v1894
        %1906 = vmatpush.bf16.msra.mxu0 %v1893
        %1907 = vmatpush.bf16.msra.mxu0 %v1892
        %1908 = vmatpush.bf16.msra.mxu0 %v1891
        %1909 = vmatpush.bf16.msra.mxu0 %v1890
        %1910 = vmatpush.bf16.msra.mxu0 %v1889
        %1911 = vmatpush.bf16.msra.mxu0 %v1888
        %1912 = vmatmul.bf16.gmra.mxu0 %v733
        %v1913 = vpop.f32.mrf.mxu0
        %v1914 = vadd.f32 %v1854, %v1913
        %v1915 = vpop.f32.mrf.mxu0
        %v1916 = vadd.f32 %v1854, %v1915
        %1917 = vmatmul.bf16.gmra.mxu0 %v734
        %v1918 = vpop.f32.mrf.mxu0
        %v1919 = vadd.f32 %v1854, %v1918
        %v1920 = vpop.f32.mrf.mxu0
        %v1921 = vadd.f32 %v1854, %v1920
        %1922 = vmatmul.bf16.gmra.mxu0 %v735
        %v1923 = vpop.f32.mrf.mxu0
        %v1924 = vadd.f32 %v1854, %v1923
        %v1925 = vpop.f32.mrf.mxu0
        %v1926 = vadd.f32 %v1854, %v1925
        %1927 = vmatmul.bf16.gmra.mxu0 %v736
        %v1928 = vpop.f32.mrf.mxu0
        %v1929 = vadd.f32 %v1854, %v1928
        %v1930 = vpop.f32.mrf.mxu0
        %v1931 = vadd.f32 %v1854, %v1930
        %1932 = vdwg.mxu0
        %v1933 = vpack.c.bf16 %v1718, %v1716
        %v1934 = vpack.c.bf16 %v1723, %v1721
        %v1935 = vpack.c.bf16 %v1728, %v1726
        %v1936 = vpack.c.bf16 %v1733, %v1731
        %v1937 = vpack.c.bf16 %v1817, %v1815
        %v1938 = vpack.c.bf16 %v1822, %v1820
        %v1939 = vpack.c.bf16 %v1827, %v1825
        %v1940 = vpack.c.bf16 %v1832, %v1830
        %v1942 = vsel %vm826, %v1933, 0
        %v1945 = vsel %vm826, %v1934, 0
        %v1948 = vsel %vm826, %v1935, 0
        %v1951 = vsel %vm826, %v1936, 0
        %v1954 = vsel %vm826, %v1937, 0
        %v1957 = vsel %vm826, %v1938, 0
        %v1960 = vsel %vm826, %v1939, 0
        %v1963 = vsel %vm826, %v1940, 0
        %1965 = vmatpush.bf16.xpose.msra.mxu0 0
        %1966 = vmatpush.bf16.xpose.msra.mxu0 0
        %1967 = vmatpush.bf16.xpose.msra.mxu0 0
        %1968 = vmatpush.bf16.xpose.msra.mxu0 0
        %1969 = vmatpush.bf16.xpose.msra.mxu0 %v1963
        %1970 = vmatpush.bf16.xpose.msra.mxu0 %v1960
        %1971 = vmatpush.bf16.xpose.msra.mxu0 %v1957
        %1972 = vmatpush.bf16.xpose.msra.mxu0 %v1954
        %1973 = vmatmul.bf16.gmra.mxu0 %v1942
        %v1974 = vpop.f32.mrf.mxu0
        %v1975 = vadd.f32 0.0, %v1974
        %v1976 = vpop.f32.mrf.mxu0
        %v1977 = vadd.f32 0.0, %v1976
        %1978 = vmatmul.bf16.gmra.mxu0 %v1945
        %v1979 = vpop.f32.mrf.mxu0
        %v1980 = vadd.f32 0.0, %v1979
        %v1981 = vpop.f32.mrf.mxu0
        %v1982 = vadd.f32 0.0, %v1981
        %1983 = vmatmul.bf16.gmra.mxu0 %v1948
        %v1984 = vpop.f32.mrf.mxu0
        %v1985 = vadd.f32 0.0, %v1984
        %v1986 = vpop.f32.mrf.mxu0
        %v1987 = vadd.f32 0.0, %v1986
        %1988 = vmatmul.bf16.gmra.mxu0 %v1951
        %v1989 = vpop.f32.mrf.mxu0
        %v1990 = vadd.f32 0.0, %v1989
        %v1991 = vpop.f32.mrf.mxu0
        %v1992 = vadd.f32 0.0, %v1991
        %1993 = vdwg.mxu0
        %v1994 = vsel %vm880, %v1975, -inf
        %1995 = vmax.xlane.f32.xlu0 %v1994
        %v1996 = vpop.xlane.xlu0 %1995
        %v1997 = vsel %vm880, %v1977, -inf
        %1998 = vmax.xlane.f32.xlu0 %v1997
        %v1999 = vpop.xlane.xlu0 %1998
        %v2000 = vsel %vm880, %v1980, -inf
        %2001 = vmax.xlane.f32.xlu0 %v2000
        %v2002 = vpop.xlane.xlu0 %2001
        %v2003 = vsel %vm880, %v1982, -inf
        %2004 = vmax.xlane.f32.xlu0 %v2003
        %v2005 = vpop.xlane.xlu0 %2004
        %v2006 = vsel %vm880, %v1985, -inf
        %2007 = vmax.xlane.f32.xlu0 %v2006
        %v2008 = vpop.xlane.xlu0 %2007
        %v2009 = vsel %vm880, %v1987, -inf
        %2010 = vmax.xlane.f32.xlu0 %v2009
        %v2011 = vpop.xlane.xlu0 %2010
        %v2012 = vsel %vm880, %v1990, -inf
        %2013 = vmax.xlane.f32.xlu0 %v2012
        %v2014 = vpop.xlane.xlu0 %2013
        %v2015 = vsel %vm880, %v1992, -inf
        %2016 = vmax.xlane.f32.xlu0 %v2015
        %v2017 = vpop.xlane.xlu0 %2016
        %v2018 = vsub.f32 %v1975, %v1996
        %v2019 = vsub.f32 %v1977, %v1999
        %v2020 = vsub.f32 %v1980, %v2002
        %v2021 = vsub.f32 %v1982, %v2005
        %v2022 = vsub.f32 %v1985, %v2008
        %v2023 = vsub.f32 %v1987, %v2011
        %v2024 = vsub.f32 %v1990, %v2014
        %v2025 = vsub.f32 %v1992, %v2017
        %v2026 = vmul.f32 %v2018, 1.442695
        %v2027 = vpow.pop %v2026
        %v2028 = vmul.f32 %v2019, 1.442695
        %v2029 = vpow.pop %v2028
        %v2030 = vmul.f32 %v2020, 1.442695
        %v2031 = vpow.pop %v2030
        %v2032 = vmul.f32 %v2021, 1.442695
        %v2033 = vpow.pop %v2032
        %v2034 = vmul.f32 %v2022, 1.442695
        %v2035 = vpow.pop %v2034
        %v2036 = vmul.f32 %v2023, 1.442695
        %v2037 = vpow.pop %v2036
        %v2038 = vmul.f32 %v2024, 1.442695
        %v2039 = vpow.pop %v2038
        %v2040 = vmul.f32 %v2025, 1.442695
        %v2041 = vpow.pop %v2040
        %v2042 = vsel %vm880, %v2027, 0.0
        %2043 = vadd.xlane.f32.xlu0 %v2042
        %v2044 = vpop.xlane.xlu0 %2043
        %v2045 = vsel %vm880, %v2029, 0.0
        %2046 = vadd.xlane.f32.xlu0 %v2045
        %v2047 = vpop.xlane.xlu0 %2046
        %v2048 = vsel %vm880, %v2031, 0.0
        %2049 = vadd.xlane.f32.xlu0 %v2048
        %v2050 = vpop.xlane.xlu0 %2049
        %v2051 = vsel %vm880, %v2033, 0.0
        %2052 = vadd.xlane.f32.xlu0 %v2051
        %v2053 = vpop.xlane.xlu0 %2052
        %v2054 = vsel %vm880, %v2035, 0.0
        %2055 = vadd.xlane.f32.xlu0 %v2054
        %v2056 = vpop.xlane.xlu0 %2055
        %v2057 = vsel %vm880, %v2037, 0.0
        %2058 = vadd.xlane.f32.xlu0 %v2057
        %v2059 = vpop.xlane.xlu0 %2058
        %v2060 = vsel %vm880, %v2039, 0.0
        %2061 = vadd.xlane.f32.xlu0 %v2060
        %v2062 = vpop.xlane.xlu0 %2061
        %v2063 = vsel %vm880, %v2041, 0.0
        %2064 = vadd.xlane.f32.xlu0 %v2063
        %v2065 = vpop.xlane.xlu0 %2064
        %v2066 = vrcp.pop %v2044
        %v2067 = vrcp.pop %v2047
        %v2068 = vrcp.pop %v2050
        %v2069 = vrcp.pop %v2053
        %v2070 = vrcp.pop %v2056
        %v2071 = vrcp.pop %v2059
        %v2072 = vrcp.pop %v2062
        %v2073 = vrcp.pop %v2065
        %v2074 = vmul.f32 %v2027, %v2066
        %v2075 = vmul.f32 %v2029, %v2067
        %v2076 = vmul.f32 %v2031, %v2068
        %v2077 = vmul.f32 %v2033, %v2069
        %v2078 = vmul.f32 %v2035, %v2070
        %v2079 = vmul.f32 %v2037, %v2071
        %v2080 = vmul.f32 %v2039, %v2072
        %v2081 = vmul.f32 %v2041, %v2073
        %v2082 = vpack.c.bf16 %v2075, %v2074
        %v2083 = vpack.c.bf16 %v2077, %v2076
        %v2084 = vpack.c.bf16 %v2079, %v2078
        %v2085 = vpack.c.bf16 %v2081, %v2080
        %v2086 = vpack.c.bf16 %v1916, %v1914
        %v2087 = vpack.c.bf16 %v1921, %v1919
        %v2088 = vpack.c.bf16 %v1926, %v1924
        %v2089 = vpack.c.bf16 %v1931, %v1929
        %v2091 = vsel %vm880, %v2082, 0
        %v2094 = vsel %vm880, %v2083, 0
        %v2097 = vsel %vm880, %v2084, 0
        %v2100 = vsel %vm880, %v2085, 0
        %2102 = vmatpush.bf16.msra.mxu0 0
        %2103 = vmatpush.bf16.msra.mxu0 0
        %2104 = vmatpush.bf16.msra.mxu0 0
        %2105 = vmatpush.bf16.msra.mxu0 0
        %2106 = vmatpush.bf16.msra.mxu0 %v2089
        %2107 = vmatpush.bf16.msra.mxu0 %v2088
        %2108 = vmatpush.bf16.msra.mxu0 %v2087
        %2109 = vmatpush.bf16.msra.mxu0 %v2086
        %2110 = vmatmul.bf16.gmra.mxu0 %v2091
        %v2111 = vpop.f32.mrf.mxu0
        %v2112 = vadd.f32 0.0, %v2111
        %v2113 = vpop.f32.mrf.mxu0
        %v2114 = vadd.f32 0.0, %v2113
        %2115 = vmatmul.bf16.gmra.mxu0 %v2094
        %v2116 = vpop.f32.mrf.mxu0
        %v2117 = vadd.f32 0.0, %v2116
        %v2118 = vpop.f32.mrf.mxu0
        %v2119 = vadd.f32 0.0, %v2118
        %2120 = vmatmul.bf16.gmra.mxu0 %v2097
        %v2121 = vpop.f32.mrf.mxu0
        %v2122 = vadd.f32 0.0, %v2121
        %v2123 = vpop.f32.mrf.mxu0
        %v2124 = vadd.f32 0.0, %v2123
        %2125 = vmatmul.bf16.gmra.mxu0 %v2100
        %v2126 = vpop.f32.mrf.mxu0
        %v2127 = vadd.f32 0.0, %v2126
        %v2128 = vpop.f32.mrf.mxu0
        %v2129 = vadd.f32 0.0, %v2128
        %2130 = vdwg.mxu0
        %v2131 = vpack.c.bf16 %v2114, %v2112
        %v2132 = vpack.c.bf16 %v2119, %v2117
        %v2133 = vpack.c.bf16 %v2124, %v2122
        %v2134 = vpack.c.bf16 %v2129, %v2127
        %s2135 = scalar_lea.vmem %s9, 16
        %v2136 = vld [vmem:[%s2135] sm:$0xf]
        %v2137 = vld [vmem:[%s2135 + $0x4] sm:$0xf]
        %v2140 = vunpack.c.l.b16 %v2136
        %v2141 = vunpack.c.l.b16 %v2137
        %v2142 = vpack.c.b16 %v2141, %v2140
        %v2145 = vsel %vm826, %v2131, 0
        %v2148 = vsel %vm826, %v2132, 0
        %v2151 = vsel %vm826, %v2133, 0
        %v2154 = vsel %vm826, %v2134, 0
        %2156 = vmatpush.bf16.msra.mxu0 0
        %2157 = vmatpush.bf16.msra.mxu0 0
        %2158 = vmatpush.bf16.msra.mxu0 0
        %2159 = vmatpush.bf16.msra.mxu0 0
        %2160 = vmatpush.bf16.msra.mxu0 0
        %2161 = vmatpush.bf16.msra.mxu0 0
        %2162 = vmatpush.bf16.msra.mxu0 0
        %2163 = vmatpush.bf16.msra.mxu0 %v2142
        %2164 = vmatmul.bf16.gmra.mxu0 %v2145
        %v2165 = vpop.f32.mrf.mxu0
        %v2166 = vadd.f32 0.0, %v2165
        %v2167 = vpop.f32.mrf.mxu0
        %v2168 = vadd.f32 0.0, %v2167
        %2169 = vmatmul.bf16.gmra.mxu0 %v2148
        %v2170 = vpop.f32.mrf.mxu0
        %v2171 = vadd.f32 0.0, %v2170
        %v2172 = vpop.f32.mrf.mxu0
        %v2173 = vadd.f32 0.0, %v2172
        %2174 = vmatmul.bf16.gmra.mxu0 %v2151
        %v2175 = vpop.f32.mrf.mxu0
        %v2176 = vadd.f32 0.0, %v2175
        %v2177 = vpop.f32.mrf.mxu0
        %v2178 = vadd.f32 0.0, %v2177
        %2179 = vmatmul.bf16.gmra.mxu0 %v2154
        %v2180 = vpop.f32.mrf.mxu0
        %v2181 = vadd.f32 0.0, %v2180
        %v2182 = vpop.f32.mrf.mxu0
        %v2183 = vadd.f32 0.0, %v2182
        %2184 = vdwg.mxu0
        %v2185 = vadd.f32 %v1628, %v2166
        %v2186 = vadd.f32 %v1629, %v2168
        %v2187 = vadd.f32 %v1630, %v2171
        %v2188 = vadd.f32 %v1631, %v2173
        %v2189 = vadd.f32 %v1632, %v2176
        %v2190 = vadd.f32 %v1633, %v2178
        %v2191 = vadd.f32 %v1634, %v2181
        %v2192 = vadd.f32 %v1635, %v2183
        %s2193 = scalar_lea.vmem %s3, 192
        %v2194 = vld [vmem:[%s2193] sm:$0xf]
        %v2195 = vld [vmem:[%s2193 + $0x4] sm:$0xf]
        %v2196 = vld [vmem:[%s2193 + $0x8] sm:$0xf]
        %v2197 = vld [vmem:[%s2193 + $0xc] sm:$0xf]
        %v2198 = vld [vmem:[%s2193 + $0x10] sm:$0xf]
        %v2199 = vld [vmem:[%s2193 + $0x14] sm:$0xf]
        %v2200 = vld [vmem:[%s2193 + $0x18] sm:$0xf]
        %v2201 = vld [vmem:[%s2193 + $0x1c] sm:$0xf]
        %v2202 = vld [vmem:[%s2193 + $0x20] sm:$0xf]
        %v2203 = vld [vmem:[%s2193 + $0x24] sm:$0xf]
        %v2204 = vld [vmem:[%s2193 + $0x28] sm:$0xf]
        %v2205 = vld [vmem:[%s2193 + $0x2c] sm:$0xf]
        %v2206 = vld [vmem:[%s2193 + $0x30] sm:$0xf]
        %v2207 = vld [vmem:[%s2193 + $0x34] sm:$0xf]
        %v2208 = vld [vmem:[%s2193 + $0x38] sm:$0xf]
        %v2209 = vld [vmem:[%s2193 + $0x3c] sm:$0xf]
        %s2210 = scalar_lea.vmem %s4, 3
        %v2211 = vld [vmem:[%s2210] sm:$0x1]
        %v2213 = vperm.slane %v2211, 0
        %v2231 = vunpack.c.l.b16 %v2194
        %v2232 = vunpack.c.l.b16 %v2195
        %v2233 = vunpack.c.l.b16 %v2196
        %v2234 = vunpack.c.l.b16 %v2197
        %v2235 = vunpack.c.l.b16 %v2198
        %v2236 = vunpack.c.l.b16 %v2199
        %v2237 = vunpack.c.l.b16 %v2200
        %v2238 = vunpack.c.l.b16 %v2201
        %v2239 = vunpack.c.l.b16 %v2202
        %v2240 = vunpack.c.l.b16 %v2203
        %v2241 = vunpack.c.l.b16 %v2204
        %v2242 = vunpack.c.l.b16 %v2205
        %v2243 = vunpack.c.l.b16 %v2206
        %v2244 = vunpack.c.l.b16 %v2207
        %v2245 = vunpack.c.l.b16 %v2208
        %v2246 = vunpack.c.l.b16 %v2209
        %v2247 = vpack.c.b16 %v2232, %v2231
        %v2248 = vpack.c.b16 %v2234, %v2233
        %v2249 = vpack.c.b16 %v2236, %v2235
        %v2250 = vpack.c.b16 %v2238, %v2237
        %v2251 = vpack.c.b16 %v2240, %v2239
        %v2252 = vpack.c.b16 %v2242, %v2241
        %v2253 = vpack.c.b16 %v2244, %v2243
        %v2254 = vpack.c.b16 %v2246, %v2245
        %2263 = vmatpush.bf16.msra.mxu0 %v2254
        %2264 = vmatpush.bf16.msra.mxu0 %v2253
        %2265 = vmatpush.bf16.msra.mxu0 %v2252
        %2266 = vmatpush.bf16.msra.mxu0 %v2251
        %2267 = vmatpush.bf16.msra.mxu0 %v2250
        %2268 = vmatpush.bf16.msra.mxu0 %v2249
        %2269 = vmatpush.bf16.msra.mxu0 %v2248
        %2270 = vmatpush.bf16.msra.mxu0 %v2247
        %2271 = vmatmul.bf16.gmra.mxu0 %v491
        %v2272 = vpop.f32.mrf.mxu0
        %v2273 = vadd.f32 %v2213, %v2272
        %v2274 = vpop.f32.mrf.mxu0
        %v2275 = vadd.f32 %v2213, %v2274
        %2276 = vmatmul.bf16.gmra.mxu0 %v492
        %v2277 = vpop.f32.mrf.mxu0
        %v2278 = vadd.f32 %v2213, %v2277
        %v2279 = vpop.f32.mrf.mxu0
        %v2280 = vadd.f32 %v2213, %v2279
        %2281 = vmatmul.bf16.gmra.mxu0 %v493
        %v2282 = vpop.f32.mrf.mxu0
        %v2283 = vadd.f32 %v2213, %v2282
        %v2284 = vpop.f32.mrf.mxu0
        %v2285 = vadd.f32 %v2213, %v2284
        %2286 = vmatmul.bf16.gmra.mxu0 %v494
        %v2287 = vpop.f32.mrf.mxu0
        %v2288 = vadd.f32 %v2213, %v2287
        %v2289 = vpop.f32.mrf.mxu0
        %v2290 = vadd.f32 %v2213, %v2289
        %2291 = vdwg.mxu0
        %s2292 = scalar_lea.vmem %s5, 192
        %v2293 = vld [vmem:[%s2292] sm:$0xf]
        %v2294 = vld [vmem:[%s2292 + $0x4] sm:$0xf]
        %v2295 = vld [vmem:[%s2292 + $0x8] sm:$0xf]
        %v2296 = vld [vmem:[%s2292 + $0xc] sm:$0xf]
        %v2297 = vld [vmem:[%s2292 + $0x10] sm:$0xf]
        %v2298 = vld [vmem:[%s2292 + $0x14] sm:$0xf]
        %v2299 = vld [vmem:[%s2292 + $0x18] sm:$0xf]
        %v2300 = vld [vmem:[%s2292 + $0x1c] sm:$0xf]
        %v2301 = vld [vmem:[%s2292 + $0x20] sm:$0xf]
        %v2302 = vld [vmem:[%s2292 + $0x24] sm:$0xf]
        %v2303 = vld [vmem:[%s2292 + $0x28] sm:$0xf]
        %v2304 = vld [vmem:[%s2292 + $0x2c] sm:$0xf]
        %v2305 = vld [vmem:[%s2292 + $0x30] sm:$0xf]
        %v2306 = vld [vmem:[%s2292 + $0x34] sm:$0xf]
        %v2307 = vld [vmem:[%s2292 + $0x38] sm:$0xf]
        %v2308 = vld [vmem:[%s2292 + $0x3c] sm:$0xf]
        %s2309 = scalar_lea.vmem %s6, 3
        %v2310 = vld [vmem:[%s2309] sm:$0x1]
        %v2312 = vperm.slane %v2310, 0
        %v2330 = vunpack.c.l.b16 %v2293
        %v2331 = vunpack.c.l.b16 %v2294
        %v2332 = vunpack.c.l.b16 %v2295
        %v2333 = vunpack.c.l.b16 %v2296
        %v2334 = vunpack.c.l.b16 %v2297
        %v2335 = vunpack.c.l.b16 %v2298
        %v2336 = vunpack.c.l.b16 %v2299
        %v2337 = vunpack.c.l.b16 %v2300
        %v2338 = vunpack.c.l.b16 %v2301
        %v2339 = vunpack.c.l.b16 %v2302
        %v2340 = vunpack.c.l.b16 %v2303
        %v2341 = vunpack.c.l.b16 %v2304
        %v2342 = vunpack.c.l.b16 %v2305
        %v2343 = vunpack.c.l.b16 %v2306
        %v2344 = vunpack.c.l.b16 %v2307
        %v2345 = vunpack.c.l.b16 %v2308
        %v2346 = vpack.c.b16 %v2331, %v2330
        %v2347 = vpack.c.b16 %v2333, %v2332
        %v2348 = vpack.c.b16 %v2335, %v2334
        %v2349 = vpack.c.b16 %v2337, %v2336
        %v2350 = vpack.c.b16 %v2339, %v2338
        %v2351 = vpack.c.b16 %v2341, %v2340
        %v2352 = vpack.c.b16 %v2343, %v2342
        %v2353 = vpack.c.b16 %v2345, %v2344
        %2362 = vmatpush.bf16.msra.mxu0 %v2353
        %2363 = vmatpush.bf16.msra.mxu0 %v2352
        %2364 = vmatpush.bf16.msra.mxu0 %v2351
        %2365 = vmatpush.bf16.msra.mxu0 %v2350
        %2366 = vmatpush.bf16.msra.mxu0 %v2349
        %2367 = vmatpush.bf16.msra.mxu0 %v2348
        %2368 = vmatpush.bf16.msra.mxu0 %v2347
        %2369 = vmatpush.bf16.msra.mxu0 %v2346
        %2370 = vmatmul.bf16.gmra.mxu0 %v612
        %v2371 = vpop.f32.mrf.mxu0
        %v2372 = vadd.f32 %v2312, %v2371
        %v2373 = vpop.f32.mrf.mxu0
        %v2374 = vadd.f32 %v2312, %v2373
        %2375 = vmatmul.bf16.gmra.mxu0 %v613
        %v2376 = vpop.f32.mrf.mxu0
        %v2377 = vadd.f32 %v2312, %v2376
        %v2378 = vpop.f32.mrf.mxu0
        %v2379 = vadd.f32 %v2312, %v2378
        %2380 = vmatmul.bf16.gmra.mxu0 %v614
        %v2381 = vpop.f32.mrf.mxu0
        %v2382 = vadd.f32 %v2312, %v2381
        %v2383 = vpop.f32.mrf.mxu0
        %v2384 = vadd.f32 %v2312, %v2383
        %2385 = vmatmul.bf16.gmra.mxu0 %v615
        %v2386 = vpop.f32.mrf.mxu0
        %v2387 = vadd.f32 %v2312, %v2386
        %v2388 = vpop.f32.mrf.mxu0
        %v2389 = vadd.f32 %v2312, %v2388
        %2390 = vdwg.mxu0
        %s2391 = scalar_lea.vmem %s7, 192
        %v2392 = vld [vmem:[%s2391] sm:$0xf]
        %v2393 = vld [vmem:[%s2391 + $0x4] sm:$0xf]
        %v2394 = vld [vmem:[%s2391 + $0x8] sm:$0xf]
        %v2395 = vld [vmem:[%s2391 + $0xc] sm:$0xf]
        %v2396 = vld [vmem:[%s2391 + $0x10] sm:$0xf]
        %v2397 = vld [vmem:[%s2391 + $0x14] sm:$0xf]
        %v2398 = vld [vmem:[%s2391 + $0x18] sm:$0xf]
        %v2399 = vld [vmem:[%s2391 + $0x1c] sm:$0xf]
        %v2400 = vld [vmem:[%s2391 + $0x20] sm:$0xf]
        %v2401 = vld [vmem:[%s2391 + $0x24] sm:$0xf]
        %v2402 = vld [vmem:[%s2391 + $0x28] sm:$0xf]
        %v2403 = vld [vmem:[%s2391 + $0x2c] sm:$0xf]
        %v2404 = vld [vmem:[%s2391 + $0x30] sm:$0xf]
        %v2405 = vld [vmem:[%s2391 + $0x34] sm:$0xf]
        %v2406 = vld [vmem:[%s2391 + $0x38] sm:$0xf]
        %v2407 = vld [vmem:[%s2391 + $0x3c] sm:$0xf]
        %s2408 = scalar_lea.vmem %s8, 3
        %v2409 = vld [vmem:[%s2408] sm:$0x1]
        %v2411 = vperm.slane %v2409, 0
        %v2429 = vunpack.c.l.b16 %v2392
        %v2430 = vunpack.c.l.b16 %v2393
        %v2431 = vunpack.c.l.b16 %v2394
        %v2432 = vunpack.c.l.b16 %v2395
        %v2433 = vunpack.c.l.b16 %v2396
        %v2434 = vunpack.c.l.b16 %v2397
        %v2435 = vunpack.c.l.b16 %v2398
        %v2436 = vunpack.c.l.b16 %v2399
        %v2437 = vunpack.c.l.b16 %v2400
        %v2438 = vunpack.c.l.b16 %v2401
        %v2439 = vunpack.c.l.b16 %v2402
        %v2440 = vunpack.c.l.b16 %v2403
        %v2441 = vunpack.c.l.b16 %v2404
        %v2442 = vunpack.c.l.b16 %v2405
        %v2443 = vunpack.c.l.b16 %v2406
        %v2444 = vunpack.c.l.b16 %v2407
        %v2445 = vpack.c.b16 %v2430, %v2429
        %v2446 = vpack.c.b16 %v2432, %v2431
        %v2447 = vpack.c.b16 %v2434, %v2433
        %v2448 = vpack.c.b16 %v2436, %v2435
        %v2449 = vpack.c.b16 %v2438, %v2437
        %v2450 = vpack.c.b16 %v2440, %v2439
        %v2451 = vpack.c.b16 %v2442, %v2441
        %v2452 = vpack.c.b16 %v2444, %v2443
        %2461 = vmatpush.bf16.msra.mxu0 %v2452
        %2462 = vmatpush.bf16.msra.mxu0 %v2451
        %2463 = vmatpush.bf16.msra.mxu0 %v2450
        %2464 = vmatpush.bf16.msra.mxu0 %v2449
        %2465 = vmatpush.bf16.msra.mxu0 %v2448
        %2466 = vmatpush.bf16.msra.mxu0 %v2447
        %2467 = vmatpush.bf16.msra.mxu0 %v2446
        %2468 = vmatpush.bf16.msra.mxu0 %v2445
        %2469 = vmatmul.bf16.gmra.mxu0 %v733
        %v2470 = vpop.f32.mrf.mxu0
        %v2471 = vadd.f32 %v2411, %v2470
        %v2472 = vpop.f32.mrf.mxu0
        %v2473 = vadd.f32 %v2411, %v2472
        %2474 = vmatmul.bf16.gmra.mxu0 %v734
        %v2475 = vpop.f32.mrf.mxu0
        %v2476 = vadd.f32 %v2411, %v2475
        %v2477 = vpop.f32.mrf.mxu0
        %v2478 = vadd.f32 %v2411, %v2477
        %2479 = vmatmul.bf16.gmra.mxu0 %v735
        %v2480 = vpop.f32.mrf.mxu0
        %v2481 = vadd.f32 %v2411, %v2480
        %v2482 = vpop.f32.mrf.mxu0
        %v2483 = vadd.f32 %v2411, %v2482
        %2484 = vmatmul.bf16.gmra.mxu0 %v736
        %v2485 = vpop.f32.mrf.mxu0
        %v2486 = vadd.f32 %v2411, %v2485
        %v2487 = vpop.f32.mrf.mxu0
        %v2488 = vadd.f32 %v2411, %v2487
        %2489 = vdwg.mxu0
        %v2490 = vpack.c.bf16 %v2275, %v2273
        %v2491 = vpack.c.bf16 %v2280, %v2278
        %v2492 = vpack.c.bf16 %v2285, %v2283
        %v2493 = vpack.c.bf16 %v2290, %v2288
        %v2494 = vpack.c.bf16 %v2374, %v2372
        %v2495 = vpack.c.bf16 %v2379, %v2377
        %v2496 = vpack.c.bf16 %v2384, %v2382
        %v2497 = vpack.c.bf16 %v2389, %v2387
        %v2499 = vsel %vm826, %v2490, 0
        %v2502 = vsel %vm826, %v2491, 0
        %v2505 = vsel %vm826, %v2492, 0
        %v2508 = vsel %vm826, %v2493, 0
        %v2511 = vsel %vm826, %v2494, 0
        %v2514 = vsel %vm826, %v2495, 0
        %v2517 = vsel %vm826, %v2496, 0
        %v2520 = vsel %vm826, %v2497, 0
        %2522 = vmatpush.bf16.xpose.msra.mxu0 0
        %2523 = vmatpush.bf16.xpose.msra.mxu0 0
        %2524 = vmatpush.bf16.xpose.msra.mxu0 0
        %2525 = vmatpush.bf16.xpose.msra.mxu0 0
        %2526 = vmatpush.bf16.xpose.msra.mxu0 %v2520
        %2527 = vmatpush.bf16.xpose.msra.mxu0 %v2517
        %2528 = vmatpush.bf16.xpose.msra.mxu0 %v2514
        %2529 = vmatpush.bf16.xpose.msra.mxu0 %v2511
        %2530 = vmatmul.bf16.gmra.mxu0 %v2499
        %v2531 = vpop.f32.mrf.mxu0
        %v2532 = vadd.f32 0.0, %v2531
        %v2533 = vpop.f32.mrf.mxu0
        %v2534 = vadd.f32 0.0, %v2533
        %2535 = vmatmul.bf16.gmra.mxu0 %v2502
        %v2536 = vpop.f32.mrf.mxu0
        %v2537 = vadd.f32 0.0, %v2536
        %v2538 = vpop.f32.mrf.mxu0
        %v2539 = vadd.f32 0.0, %v2538
        %2540 = vmatmul.bf16.gmra.mxu0 %v2505
        %v2541 = vpop.f32.mrf.mxu0
        %v2542 = vadd.f32 0.0, %v2541
        %v2543 = vpop.f32.mrf.mxu0
        %v2544 = vadd.f32 0.0, %v2543
        %2545 = vmatmul.bf16.gmra.mxu0 %v2508
        %v2546 = vpop.f32.mrf.mxu0
        %v2547 = vadd.f32 0.0, %v2546
        %v2548 = vpop.f32.mrf.mxu0
        %v2549 = vadd.f32 0.0, %v2548
        %2550 = vdwg.mxu0
        %v2551 = vsel %vm880, %v2532, -inf
        %2552 = vmax.xlane.f32.xlu0 %v2551
        %v2553 = vpop.xlane.xlu0 %2552
        %v2554 = vsel %vm880, %v2534, -inf
        %2555 = vmax.xlane.f32.xlu0 %v2554
        %v2556 = vpop.xlane.xlu0 %2555
        %v2557 = vsel %vm880, %v2537, -inf
        %2558 = vmax.xlane.f32.xlu0 %v2557
        %v2559 = vpop.xlane.xlu0 %2558
        %v2560 = vsel %vm880, %v2539, -inf
        %2561 = vmax.xlane.f32.xlu0 %v2560
        %v2562 = vpop.xlane.xlu0 %2561
        %v2563 = vsel %vm880, %v2542, -inf
        %2564 = vmax.xlane.f32.xlu0 %v2563
        %v2565 = vpop.xlane.xlu0 %2564
        %v2566 = vsel %vm880, %v2544, -inf
        %2567 = vmax.xlane.f32.xlu0 %v2566
        %v2568 = vpop.xlane.xlu0 %2567
        %v2569 = vsel %vm880, %v2547, -inf
        %2570 = vmax.xlane.f32.xlu0 %v2569
        %v2571 = vpop.xlane.xlu0 %2570
        %v2572 = vsel %vm880, %v2549, -inf
        %2573 = vmax.xlane.f32.xlu0 %v2572
        %v2574 = vpop.xlane.xlu0 %2573
        %v2575 = vsub.f32 %v2532, %v2553
        %v2576 = vsub.f32 %v2534, %v2556
        %v2577 = vsub.f32 %v2537, %v2559
        %v2578 = vsub.f32 %v2539, %v2562
        %v2579 = vsub.f32 %v2542, %v2565
        %v2580 = vsub.f32 %v2544, %v2568
        %v2581 = vsub.f32 %v2547, %v2571
        %v2582 = vsub.f32 %v2549, %v2574
        %v2583 = vmul.f32 %v2575, 1.442695
        %v2584 = vpow.pop %v2583
        %v2585 = vmul.f32 %v2576, 1.442695
        %v2586 = vpow.pop %v2585
        %v2587 = vmul.f32 %v2577, 1.442695
        %v2588 = vpow.pop %v2587
        %v2589 = vmul.f32 %v2578, 1.442695
        %v2590 = vpow.pop %v2589
        %v2591 = vmul.f32 %v2579, 1.442695
        %v2592 = vpow.pop %v2591
        %v2593 = vmul.f32 %v2580, 1.442695
        %v2594 = vpow.pop %v2593
        %v2595 = vmul.f32 %v2581, 1.442695
        %v2596 = vpow.pop %v2595
        %v2597 = vmul.f32 %v2582, 1.442695
        %v2598 = vpow.pop %v2597
        %v2599 = vsel %vm880, %v2584, 0.0
        %2600 = vadd.xlane.f32.xlu0 %v2599
        %v2601 = vpop.xlane.xlu0 %2600
        %v2602 = vsel %vm880, %v2586, 0.0
        %2603 = vadd.xlane.f32.xlu0 %v2602
        %v2604 = vpop.xlane.xlu0 %2603
        %v2605 = vsel %vm880, %v2588, 0.0
        %2606 = vadd.xlane.f32.xlu0 %v2605
        %v2607 = vpop.xlane.xlu0 %2606
        %v2608 = vsel %vm880, %v2590, 0.0
        %2609 = vadd.xlane.f32.xlu0 %v2608
        %v2610 = vpop.xlane.xlu0 %2609
        %v2611 = vsel %vm880, %v2592, 0.0
        %2612 = vadd.xlane.f32.xlu0 %v2611
        %v2613 = vpop.xlane.xlu0 %2612
        %v2614 = vsel %vm880, %v2594, 0.0
        %2615 = vadd.xlane.f32.xlu0 %v2614
        %v2616 = vpop.xlane.xlu0 %2615
        %v2617 = vsel %vm880, %v2596, 0.0
        %2618 = vadd.xlane.f32.xlu0 %v2617
        %v2619 = vpop.xlane.xlu0 %2618
        %v2620 = vsel %vm880, %v2598, 0.0
        %2621 = vadd.xlane.f32.xlu0 %v2620
        %v2622 = vpop.xlane.xlu0 %2621
        %v2623 = vrcp.pop %v2601
        %v2624 = vrcp.pop %v2604
        %v2625 = vrcp.pop %v2607
        %v2626 = vrcp.pop %v2610
        %v2627 = vrcp.pop %v2613
        %v2628 = vrcp.pop %v2616
        %v2629 = vrcp.pop %v2619
        %v2630 = vrcp.pop %v2622
        %v2631 = vmul.f32 %v2584, %v2623
        %v2632 = vmul.f32 %v2586, %v2624
        %v2633 = vmul.f32 %v2588, %v2625
        %v2634 = vmul.f32 %v2590, %v2626
        %v2635 = vmul.f32 %v2592, %v2627
        %v2636 = vmul.f32 %v2594, %v2628
        %v2637 = vmul.f32 %v2596, %v2629
        %v2638 = vmul.f32 %v2598, %v2630
        %v2639 = vpack.c.bf16 %v2632, %v2631
        %v2640 = vpack.c.bf16 %v2634, %v2633
        %v2641 = vpack.c.bf16 %v2636, %v2635
        %v2642 = vpack.c.bf16 %v2638, %v2637
        %v2643 = vpack.c.bf16 %v2473, %v2471
        %v2644 = vpack.c.bf16 %v2478, %v2476
        %v2645 = vpack.c.bf16 %v2483, %v2481
        %v2646 = vpack.c.bf16 %v2488, %v2486
        %v2648 = vsel %vm880, %v2639, 0
        %v2651 = vsel %vm880, %v2640, 0
        %v2654 = vsel %vm880, %v2641, 0
        %v2657 = vsel %vm880, %v2642, 0
        %2659 = vmatpush.bf16.msra.mxu0 0
        %2660 = vmatpush.bf16.msra.mxu0 0
        %2661 = vmatpush.bf16.msra.mxu0 0
        %2662 = vmatpush.bf16.msra.mxu0 0
        %2663 = vmatpush.bf16.msra.mxu0 %v2646
        %2664 = vmatpush.bf16.msra.mxu0 %v2645
        %2665 = vmatpush.bf16.msra.mxu0 %v2644
        %2666 = vmatpush.bf16.msra.mxu0 %v2643
        %2667 = vmatmul.bf16.gmra.mxu0 %v2648
        %v2668 = vpop.f32.mrf.mxu0
        %v2669 = vadd.f32 0.0, %v2668
        %v2670 = vpop.f32.mrf.mxu0
        %v2671 = vadd.f32 0.0, %v2670
        %2672 = vmatmul.bf16.gmra.mxu0 %v2651
        %v2673 = vpop.f32.mrf.mxu0
        %v2674 = vadd.f32 0.0, %v2673
        %v2675 = vpop.f32.mrf.mxu0
        %v2676 = vadd.f32 0.0, %v2675
        %2677 = vmatmul.bf16.gmra.mxu0 %v2654
        %v2678 = vpop.f32.mrf.mxu0
        %v2679 = vadd.f32 0.0, %v2678
        %v2680 = vpop.f32.mrf.mxu0
        %v2681 = vadd.f32 0.0, %v2680
        %2682 = vmatmul.bf16.gmra.mxu0 %v2657
        %v2683 = vpop.f32.mrf.mxu0
        %v2684 = vadd.f32 0.0, %v2683
        %v2685 = vpop.f32.mrf.mxu0
        %v2686 = vadd.f32 0.0, %v2685
        %2687 = vdwg.mxu0
        %v2688 = vpack.c.bf16 %v2671, %v2669
        %v2689 = vpack.c.bf16 %v2676, %v2674
        %v2690 = vpack.c.bf16 %v2681, %v2679
        %v2691 = vpack.c.bf16 %v2686, %v2684
        %s2692 = scalar_lea.vmem %s9, 24
        %v2693 = vld [vmem:[%s2692] sm:$0xf]
        %v2694 = vld [vmem:[%s2692 + $0x4] sm:$0xf]
        %v2697 = vunpack.c.l.b16 %v2693
        %v2698 = vunpack.c.l.b16 %v2694
        %v2699 = vpack.c.b16 %v2698, %v2697
        %v2702 = vsel %vm826, %v2688, 0
        %v2705 = vsel %vm826, %v2689, 0
        %v2708 = vsel %vm826, %v2690, 0
        %v2711 = vsel %vm826, %v2691, 0
        %2713 = vmatpush.bf16.msra.mxu0 0
        %2714 = vmatpush.bf16.msra.mxu0 0
        %2715 = vmatpush.bf16.msra.mxu0 0
        %2716 = vmatpush.bf16.msra.mxu0 0
        %2717 = vmatpush.bf16.msra.mxu0 0
        %2718 = vmatpush.bf16.msra.mxu0 0
        %2719 = vmatpush.bf16.msra.mxu0 0
        %2720 = vmatpush.bf16.msra.mxu0 %v2699
        %2721 = vmatmul.bf16.gmra.mxu0 %v2702
        %v2722 = vpop.f32.mrf.mxu0
        %v2723 = vadd.f32 0.0, %v2722
        %v2724 = vpop.f32.mrf.mxu0
        %v2725 = vadd.f32 0.0, %v2724
        %2726 = vmatmul.bf16.gmra.mxu0 %v2705
        %v2727 = vpop.f32.mrf.mxu0
        %v2728 = vadd.f32 0.0, %v2727
        %v2729 = vpop.f32.mrf.mxu0
        %v2730 = vadd.f32 0.0, %v2729
        %2731 = vmatmul.bf16.gmra.mxu0 %v2708
        %v2732 = vpop.f32.mrf.mxu0
        %v2733 = vadd.f32 0.0, %v2732
        %v2734 = vpop.f32.mrf.mxu0
        %v2735 = vadd.f32 0.0, %v2734
        %2736 = vmatmul.bf16.gmra.mxu0 %v2711
        %v2737 = vpop.f32.mrf.mxu0
        %v2738 = vadd.f32 0.0, %v2737
        %v2739 = vpop.f32.mrf.mxu0
        %v2740 = vadd.f32 0.0, %v2739
        %2741 = vdwg.mxu0
        %v2742 = vadd.f32 %v2185, %v2723
        %v2743 = vadd.f32 %v2186, %v2725
        %v2744 = vadd.f32 %v2187, %v2728
        %v2745 = vadd.f32 %v2188, %v2730
        %v2746 = vadd.f32 %v2189, %v2733
        %v2747 = vadd.f32 %v2190, %v2735
        %v2748 = vadd.f32 %v2191, %v2738
        %v2749 = vadd.f32 %v2192, %v2740
        %s2750 = scalar_lea.vmem %s3, 256
        %v2751 = vld [vmem:[%s2750] sm:$0xf]
        %v2752 = vld [vmem:[%s2750 + $0x4] sm:$0xf]
        %v2753 = vld [vmem:[%s2750 + $0x8] sm:$0xf]
        %v2754 = vld [vmem:[%s2750 + $0xc] sm:$0xf]
        %v2755 = vld [vmem:[%s2750 + $0x10] sm:$0xf]
        %v2756 = vld [vmem:[%s2750 + $0x14] sm:$0xf]
        %v2757 = vld [vmem:[%s2750 + $0x18] sm:$0xf]
        %v2758 = vld [vmem:[%s2750 + $0x1c] sm:$0xf]
        %v2759 = vld [vmem:[%s2750 + $0x20] sm:$0xf]
        %v2760 = vld [vmem:[%s2750 + $0x24] sm:$0xf]
        %v2761 = vld [vmem:[%s2750 + $0x28] sm:$0xf]
        %v2762 = vld [vmem:[%s2750 + $0x2c] sm:$0xf]
        %v2763 = vld [vmem:[%s2750 + $0x30] sm:$0xf]
        %v2764 = vld [vmem:[%s2750 + $0x34] sm:$0xf]
        %v2765 = vld [vmem:[%s2750 + $0x38] sm:$0xf]
        %v2766 = vld [vmem:[%s2750 + $0x3c] sm:$0xf]
        %s2767 = scalar_lea.vmem %s4, 4
        %v2768 = vld [vmem:[%s2767] sm:$0x1]
        %v2770 = vperm.slane %v2768, 0
        %v2788 = vunpack.c.l.b16 %v2751
        %v2789 = vunpack.c.l.b16 %v2752
        %v2790 = vunpack.c.l.b16 %v2753
        %v2791 = vunpack.c.l.b16 %v2754
        %v2792 = vunpack.c.l.b16 %v2755
        %v2793 = vunpack.c.l.b16 %v2756
        %v2794 = vunpack.c.l.b16 %v2757
        %v2795 = vunpack.c.l.b16 %v2758
        %v2796 = vunpack.c.l.b16 %v2759
        %v2797 = vunpack.c.l.b16 %v2760
        %v2798 = vunpack.c.l.b16 %v2761
        %v2799 = vunpack.c.l.b16 %v2762
        %v2800 = vunpack.c.l.b16 %v2763
        %v2801 = vunpack.c.l.b16 %v2764
        %v2802 = vunpack.c.l.b16 %v2765
        %v2803 = vunpack.c.l.b16 %v2766
        %v2804 = vpack.c.b16 %v2789, %v2788
        %v2805 = vpack.c.b16 %v2791, %v2790
        %v2806 = vpack.c.b16 %v2793, %v2792
        %v2807 = vpack.c.b16 %v2795, %v2794
        %v2808 = vpack.c.b16 %v2797, %v2796
        %v2809 = vpack.c.b16 %v2799, %v2798
        %v2810 = vpack.c.b16 %v2801, %v2800
        %v2811 = vpack.c.b16 %v2803, %v2802
        %2820 = vmatpush.bf16.msra.mxu0 %v2811
        %2821 = vmatpush.bf16.msra.mxu0 %v2810
        %2822 = vmatpush.bf16.msra.mxu0 %v2809
        %2823 = vmatpush.bf16.msra.mxu0 %v2808
        %2824 = vmatpush.bf16.msra.mxu0 %v2807
        %2825 = vmatpush.bf16.msra.mxu0 %v2806
        %2826 = vmatpush.bf16.msra.mxu0 %v2805
        %2827 = vmatpush.bf16.msra.mxu0 %v2804
        %2828 = vmatmul.bf16.gmra.mxu0 %v491
        %v2829 = vpop.f32.mrf.mxu0
        %v2830 = vadd.f32 %v2770, %v2829
        %v2831 = vpop.f32.mrf.mxu0
        %v2832 = vadd.f32 %v2770, %v2831
        %2833 = vmatmul.bf16.gmra.mxu0 %v492
        %v2834 = vpop.f32.mrf.mxu0
        %v2835 = vadd.f32 %v2770, %v2834
        %v2836 = vpop.f32.mrf.mxu0
        %v2837 = vadd.f32 %v2770, %v2836
        %2838 = vmatmul.bf16.gmra.mxu0 %v493
        %v2839 = vpop.f32.mrf.mxu0
        %v2840 = vadd.f32 %v2770, %v2839
        %v2841 = vpop.f32.mrf.mxu0
        %v2842 = vadd.f32 %v2770, %v2841
        %2843 = vmatmul.bf16.gmra.mxu0 %v494
        %v2844 = vpop.f32.mrf.mxu0
        %v2845 = vadd.f32 %v2770, %v2844
        %v2846 = vpop.f32.mrf.mxu0
        %v2847 = vadd.f32 %v2770, %v2846
        %2848 = vdwg.mxu0
        %s2849 = scalar_lea.vmem %s5, 256
        %v2850 = vld [vmem:[%s2849] sm:$0xf]
        %v2851 = vld [vmem:[%s2849 + $0x4] sm:$0xf]
        %v2852 = vld [vmem:[%s2849 + $0x8] sm:$0xf]
        %v2853 = vld [vmem:[%s2849 + $0xc] sm:$0xf]
        %v2854 = vld [vmem:[%s2849 + $0x10] sm:$0xf]
        %v2855 = vld [vmem:[%s2849 + $0x14] sm:$0xf]
        %v2856 = vld [vmem:[%s2849 + $0x18] sm:$0xf]
        %v2857 = vld [vmem:[%s2849 + $0x1c] sm:$0xf]
        %v2858 = vld [vmem:[%s2849 + $0x20] sm:$0xf]
        %v2859 = vld [vmem:[%s2849 + $0x24] sm:$0xf]
        %v2860 = vld [vmem:[%s2849 + $0x28] sm:$0xf]
        %v2861 = vld [vmem:[%s2849 + $0x2c] sm:$0xf]
        %v2862 = vld [vmem:[%s2849 + $0x30] sm:$0xf]
        %v2863 = vld [vmem:[%s2849 + $0x34] sm:$0xf]
        %v2864 = vld [vmem:[%s2849 + $0x38] sm:$0xf]
        %v2865 = vld [vmem:[%s2849 + $0x3c] sm:$0xf]
        %s2866 = scalar_lea.vmem %s6, 4
        %v2867 = vld [vmem:[%s2866] sm:$0x1]
        %v2869 = vperm.slane %v2867, 0
        %v2887 = vunpack.c.l.b16 %v2850
        %v2888 = vunpack.c.l.b16 %v2851
        %v2889 = vunpack.c.l.b16 %v2852
        %v2890 = vunpack.c.l.b16 %v2853
        %v2891 = vunpack.c.l.b16 %v2854
        %v2892 = vunpack.c.l.b16 %v2855
        %v2893 = vunpack.c.l.b16 %v2856
        %v2894 = vunpack.c.l.b16 %v2857
        %v2895 = vunpack.c.l.b16 %v2858
        %v2896 = vunpack.c.l.b16 %v2859
        %v2897 = vunpack.c.l.b16 %v2860
        %v2898 = vunpack.c.l.b16 %v2861
        %v2899 = vunpack.c.l.b16 %v2862
        %v2900 = vunpack.c.l.b16 %v2863
        %v2901 = vunpack.c.l.b16 %v2864
        %v2902 = vunpack.c.l.b16 %v2865
        %v2903 = vpack.c.b16 %v2888, %v2887
        %v2904 = vpack.c.b16 %v2890, %v2889
        %v2905 = vpack.c.b16 %v2892, %v2891
        %v2906 = vpack.c.b16 %v2894, %v2893
        %v2907 = vpack.c.b16 %v2896, %v2895
        %v2908 = vpack.c.b16 %v2898, %v2897
        %v2909 = vpack.c.b16 %v2900, %v2899
        %v2910 = vpack.c.b16 %v2902, %v2901
        %2919 = vmatpush.bf16.msra.mxu0 %v2910
        %2920 = vmatpush.bf16.msra.mxu0 %v2909
        %2921 = vmatpush.bf16.msra.mxu0 %v2908
        %2922 = vmatpush.bf16.msra.mxu0 %v2907
        %2923 = vmatpush.bf16.msra.mxu0 %v2906
        %2924 = vmatpush.bf16.msra.mxu0 %v2905
        %2925 = vmatpush.bf16.msra.mxu0 %v2904
        %2926 = vmatpush.bf16.msra.mxu0 %v2903
        %2927 = vmatmul.bf16.gmra.mxu0 %v612
        %v2928 = vpop.f32.mrf.mxu0
        %v2929 = vadd.f32 %v2869, %v2928
        %v2930 = vpop.f32.mrf.mxu0
        %v2931 = vadd.f32 %v2869, %v2930
        %2932 = vmatmul.bf16.gmra.mxu0 %v613
        %v2933 = vpop.f32.mrf.mxu0
        %v2934 = vadd.f32 %v2869, %v2933
        %v2935 = vpop.f32.mrf.mxu0
        %v2936 = vadd.f32 %v2869, %v2935
        %2937 = vmatmul.bf16.gmra.mxu0 %v614
        %v2938 = vpop.f32.mrf.mxu0
        %v2939 = vadd.f32 %v2869, %v2938
        %v2940 = vpop.f32.mrf.mxu0
        %v2941 = vadd.f32 %v2869, %v2940
        %2942 = vmatmul.bf16.gmra.mxu0 %v615
        %v2943 = vpop.f32.mrf.mxu0
        %v2944 = vadd.f32 %v2869, %v2943
        %v2945 = vpop.f32.mrf.mxu0
        %v2946 = vadd.f32 %v2869, %v2945
        %2947 = vdwg.mxu0
        %s2948 = scalar_lea.vmem %s7, 256
        %v2949 = vld [vmem:[%s2948] sm:$0xf]
        %v2950 = vld [vmem:[%s2948 + $0x4] sm:$0xf]
        %v2951 = vld [vmem:[%s2948 + $0x8] sm:$0xf]
        %v2952 = vld [vmem:[%s2948 + $0xc] sm:$0xf]
        %v2953 = vld [vmem:[%s2948 + $0x10] sm:$0xf]
        %v2954 = vld [vmem:[%s2948 + $0x14] sm:$0xf]
        %v2955 = vld [vmem:[%s2948 + $0x18] sm:$0xf]
        %v2956 = vld [vmem:[%s2948 + $0x1c] sm:$0xf]
        %v2957 = vld [vmem:[%s2948 + $0x20] sm:$0xf]
        %v2958 = vld [vmem:[%s2948 + $0x24] sm:$0xf]
        %v2959 = vld [vmem:[%s2948 + $0x28] sm:$0xf]
        %v2960 = vld [vmem:[%s2948 + $0x2c] sm:$0xf]
        %v2961 = vld [vmem:[%s2948 + $0x30] sm:$0xf]
        %v2962 = vld [vmem:[%s2948 + $0x34] sm:$0xf]
        %v2963 = vld [vmem:[%s2948 + $0x38] sm:$0xf]
        %v2964 = vld [vmem:[%s2948 + $0x3c] sm:$0xf]
        %s2965 = scalar_lea.vmem %s8, 4
        %v2966 = vld [vmem:[%s2965] sm:$0x1]
        %v2968 = vperm.slane %v2966, 0
        %v2986 = vunpack.c.l.b16 %v2949
        %v2987 = vunpack.c.l.b16 %v2950
        %v2988 = vunpack.c.l.b16 %v2951
        %v2989 = vunpack.c.l.b16 %v2952
        %v2990 = vunpack.c.l.b16 %v2953
        %v2991 = vunpack.c.l.b16 %v2954
        %v2992 = vunpack.c.l.b16 %v2955
        %v2993 = vunpack.c.l.b16 %v2956
        %v2994 = vunpack.c.l.b16 %v2957
        %v2995 = vunpack.c.l.b16 %v2958
        %v2996 = vunpack.c.l.b16 %v2959
        %v2997 = vunpack.c.l.b16 %v2960
        %v2998 = vunpack.c.l.b16 %v2961
        %v2999 = vunpack.c.l.b16 %v2962
        %v3000 = vunpack.c.l.b16 %v2963
        %v3001 = vunpack.c.l.b16 %v2964
        %v3002 = vpack.c.b16 %v2987, %v2986
        %v3003 = vpack.c.b16 %v2989, %v2988
        %v3004 = vpack.c.b16 %v2991, %v2990
        %v3005 = vpack.c.b16 %v2993, %v2992
        %v3006 = vpack.c.b16 %v2995, %v2994
        %v3007 = vpack.c.b16 %v2997, %v2996
        %v3008 = vpack.c.b16 %v2999, %v2998
        %v3009 = vpack.c.b16 %v3001, %v3000
        %3018 = vmatpush.bf16.msra.mxu0 %v3009
        %3019 = vmatpush.bf16.msra.mxu0 %v3008
        %3020 = vmatpush.bf16.msra.mxu0 %v3007
        %3021 = vmatpush.bf16.msra.mxu0 %v3006
        %3022 = vmatpush.bf16.msra.mxu0 %v3005
        %3023 = vmatpush.bf16.msra.mxu0 %v3004
        %3024 = vmatpush.bf16.msra.mxu0 %v3003
        %3025 = vmatpush.bf16.msra.mxu0 %v3002
        %3026 = vmatmul.bf16.gmra.mxu0 %v733
        %v3027 = vpop.f32.mrf.mxu0
        %v3028 = vadd.f32 %v2968, %v3027
        %v3029 = vpop.f32.mrf.mxu0
        %v3030 = vadd.f32 %v2968, %v3029
        %3031 = vmatmul.bf16.gmra.mxu0 %v734
        %v3032 = vpop.f32.mrf.mxu0
        %v3033 = vadd.f32 %v2968, %v3032
        %v3034 = vpop.f32.mrf.mxu0
        %v3035 = vadd.f32 %v2968, %v3034
        %3036 = vmatmul.bf16.gmra.mxu0 %v735
        %v3037 = vpop.f32.mrf.mxu0
        %v3038 = vadd.f32 %v2968, %v3037
        %v3039 = vpop.f32.mrf.mxu0
        %v3040 = vadd.f32 %v2968, %v3039
        %3041 = vmatmul.bf16.gmra.mxu0 %v736
        %v3042 = vpop.f32.mrf.mxu0
        %v3043 = vadd.f32 %v2968, %v3042
        %v3044 = vpop.f32.mrf.mxu0
        %v3045 = vadd.f32 %v2968, %v3044
        %3046 = vdwg.mxu0
        %v3047 = vpack.c.bf16 %v2832, %v2830
        %v3048 = vpack.c.bf16 %v2837, %v2835
        %v3049 = vpack.c.bf16 %v2842, %v2840
        %v3050 = vpack.c.bf16 %v2847, %v2845
        %v3051 = vpack.c.bf16 %v2931, %v2929
        %v3052 = vpack.c.bf16 %v2936, %v2934
        %v3053 = vpack.c.bf16 %v2941, %v2939
        %v3054 = vpack.c.bf16 %v2946, %v2944
        %v3056 = vsel %vm826, %v3047, 0
        %v3059 = vsel %vm826, %v3048, 0
        %v3062 = vsel %vm826, %v3049, 0
        %v3065 = vsel %vm826, %v3050, 0
        %v3068 = vsel %vm826, %v3051, 0
        %v3071 = vsel %vm826, %v3052, 0
        %v3074 = vsel %vm826, %v3053, 0
        %v3077 = vsel %vm826, %v3054, 0
        %3079 = vmatpush.bf16.xpose.msra.mxu0 0
        %3080 = vmatpush.bf16.xpose.msra.mxu0 0
        %3081 = vmatpush.bf16.xpose.msra.mxu0 0
        %3082 = vmatpush.bf16.xpose.msra.mxu0 0
        %3083 = vmatpush.bf16.xpose.msra.mxu0 %v3077
        %3084 = vmatpush.bf16.xpose.msra.mxu0 %v3074
        %3085 = vmatpush.bf16.xpose.msra.mxu0 %v3071
        %3086 = vmatpush.bf16.xpose.msra.mxu0 %v3068
        %3087 = vmatmul.bf16.gmra.mxu0 %v3056
        %v3088 = vpop.f32.mrf.mxu0
        %v3089 = vadd.f32 0.0, %v3088
        %v3090 = vpop.f32.mrf.mxu0
        %v3091 = vadd.f32 0.0, %v3090
        %3092 = vmatmul.bf16.gmra.mxu0 %v3059
        %v3093 = vpop.f32.mrf.mxu0
        %v3094 = vadd.f32 0.0, %v3093
        %v3095 = vpop.f32.mrf.mxu0
        %v3096 = vadd.f32 0.0, %v3095
        %3097 = vmatmul.bf16.gmra.mxu0 %v3062
        %v3098 = vpop.f32.mrf.mxu0
        %v3099 = vadd.f32 0.0, %v3098
        %v3100 = vpop.f32.mrf.mxu0
        %v3101 = vadd.f32 0.0, %v3100
        %3102 = vmatmul.bf16.gmra.mxu0 %v3065
        %v3103 = vpop.f32.mrf.mxu0
        %v3104 = vadd.f32 0.0, %v3103
        %v3105 = vpop.f32.mrf.mxu0
        %v3106 = vadd.f32 0.0, %v3105
        %3107 = vdwg.mxu0
        %v3108 = vsel %vm880, %v3089, -inf
        %3109 = vmax.xlane.f32.xlu0 %v3108
        %v3110 = vpop.xlane.xlu0 %3109
        %v3111 = vsel %vm880, %v3091, -inf
        %3112 = vmax.xlane.f32.xlu0 %v3111
        %v3113 = vpop.xlane.xlu0 %3112
        %v3114 = vsel %vm880, %v3094, -inf
        %3115 = vmax.xlane.f32.xlu0 %v3114
        %v3116 = vpop.xlane.xlu0 %3115
        %v3117 = vsel %vm880, %v3096, -inf
        %3118 = vmax.xlane.f32.xlu0 %v3117
        %v3119 = vpop.xlane.xlu0 %3118
        %v3120 = vsel %vm880, %v3099, -inf
        %3121 = vmax.xlane.f32.xlu0 %v3120
        %v3122 = vpop.xlane.xlu0 %3121
        %v3123 = vsel %vm880, %v3101, -inf
        %3124 = vmax.xlane.f32.xlu0 %v3123
        %v3125 = vpop.xlane.xlu0 %3124
        %v3126 = vsel %vm880, %v3104, -inf
        %3127 = vmax.xlane.f32.xlu0 %v3126
        %v3128 = vpop.xlane.xlu0 %3127
        %v3129 = vsel %vm880, %v3106, -inf
        %3130 = vmax.xlane.f32.xlu0 %v3129
        %v3131 = vpop.xlane.xlu0 %3130
        %v3132 = vsub.f32 %v3089, %v3110
        %v3133 = vsub.f32 %v3091, %v3113
        %v3134 = vsub.f32 %v3094, %v3116
        %v3135 = vsub.f32 %v3096, %v3119
        %v3136 = vsub.f32 %v3099, %v3122
        %v3137 = vsub.f32 %v3101, %v3125
        %v3138 = vsub.f32 %v3104, %v3128
        %v3139 = vsub.f32 %v3106, %v3131
        %v3140 = vmul.f32 %v3132, 1.442695
        %v3141 = vpow.pop %v3140
        %v3142 = vmul.f32 %v3133, 1.442695
        %v3143 = vpow.pop %v3142
        %v3144 = vmul.f32 %v3134, 1.442695
        %v3145 = vpow.pop %v3144
        %v3146 = vmul.f32 %v3135, 1.442695
        %v3147 = vpow.pop %v3146
        %v3148 = vmul.f32 %v3136, 1.442695
        %v3149 = vpow.pop %v3148
        %v3150 = vmul.f32 %v3137, 1.442695
        %v3151 = vpow.pop %v3150
        %v3152 = vmul.f32 %v3138, 1.442695
        %v3153 = vpow.pop %v3152
        %v3154 = vmul.f32 %v3139, 1.442695
        %v3155 = vpow.pop %v3154
        %v3156 = vsel %vm880, %v3141, 0.0
        %3157 = vadd.xlane.f32.xlu0 %v3156
        %v3158 = vpop.xlane.xlu0 %3157
        %v3159 = vsel %vm880, %v3143, 0.0
        %3160 = vadd.xlane.f32.xlu0 %v3159
        %v3161 = vpop.xlane.xlu0 %3160
        %v3162 = vsel %vm880, %v3145, 0.0
        %3163 = vadd.xlane.f32.xlu0 %v3162
        %v3164 = vpop.xlane.xlu0 %3163
        %v3165 = vsel %vm880, %v3147, 0.0
        %3166 = vadd.xlane.f32.xlu0 %v3165
        %v3167 = vpop.xlane.xlu0 %3166
        %v3168 = vsel %vm880, %v3149, 0.0
        %3169 = vadd.xlane.f32.xlu0 %v3168
        %v3170 = vpop.xlane.xlu0 %3169
        %v3171 = vsel %vm880, %v3151, 0.0
        %3172 = vadd.xlane.f32.xlu0 %v3171
        %v3173 = vpop.xlane.xlu0 %3172
        %v3174 = vsel %vm880, %v3153, 0.0
        %3175 = vadd.xlane.f32.xlu0 %v3174
        %v3176 = vpop.xlane.xlu0 %3175
        %v3177 = vsel %vm880, %v3155, 0.0
        %3178 = vadd.xlane.f32.xlu0 %v3177
        %v3179 = vpop.xlane.xlu0 %3178
        %v3180 = vrcp.pop %v3158
        %v3181 = vrcp.pop %v3161
        %v3182 = vrcp.pop %v3164
        %v3183 = vrcp.pop %v3167
        %v3184 = vrcp.pop %v3170
        %v3185 = vrcp.pop %v3173
        %v3186 = vrcp.pop %v3176
        %v3187 = vrcp.pop %v3179
        %v3188 = vmul.f32 %v3141, %v3180
        %v3189 = vmul.f32 %v3143, %v3181
        %v3190 = vmul.f32 %v3145, %v3182
        %v3191 = vmul.f32 %v3147, %v3183
        %v3192 = vmul.f32 %v3149, %v3184
        %v3193 = vmul.f32 %v3151, %v3185
        %v3194 = vmul.f32 %v3153, %v3186
        %v3195 = vmul.f32 %v3155, %v3187
        %v3196 = vpack.c.bf16 %v3189, %v3188
        %v3197 = vpack.c.bf16 %v3191, %v3190
        %v3198 = vpack.c.bf16 %v3193, %v3192
        %v3199 = vpack.c.bf16 %v3195, %v3194
        %v3200 = vpack.c.bf16 %v3030, %v3028
        %v3201 = vpack.c.bf16 %v3035, %v3033
        %v3202 = vpack.c.bf16 %v3040, %v3038
        %v3203 = vpack.c.bf16 %v3045, %v3043
        %v3205 = vsel %vm880, %v3196, 0
        %v3208 = vsel %vm880, %v3197, 0
        %v3211 = vsel %vm880, %v3198, 0
        %v3214 = vsel %vm880, %v3199, 0
        %3216 = vmatpush.bf16.msra.mxu0 0
        %3217 = vmatpush.bf16.msra.mxu0 0
        %3218 = vmatpush.bf16.msra.mxu0 0
        %3219 = vmatpush.bf16.msra.mxu0 0
        %3220 = vmatpush.bf16.msra.mxu0 %v3203
        %3221 = vmatpush.bf16.msra.mxu0 %v3202
        %3222 = vmatpush.bf16.msra.mxu0 %v3201
        %3223 = vmatpush.bf16.msra.mxu0 %v3200
        %3224 = vmatmul.bf16.gmra.mxu0 %v3205
        %v3225 = vpop.f32.mrf.mxu0
        %v3226 = vadd.f32 0.0, %v3225
        %v3227 = vpop.f32.mrf.mxu0
        %v3228 = vadd.f32 0.0, %v3227
        %3229 = vmatmul.bf16.gmra.mxu0 %v3208
        %v3230 = vpop.f32.mrf.mxu0
        %v3231 = vadd.f32 0.0, %v3230
        %v3232 = vpop.f32.mrf.mxu0
        %v3233 = vadd.f32 0.0, %v3232
        %3234 = vmatmul.bf16.gmra.mxu0 %v3211
        %v3235 = vpop.f32.mrf.mxu0
        %v3236 = vadd.f32 0.0, %v3235
        %v3237 = vpop.f32.mrf.mxu0
        %v3238 = vadd.f32 0.0, %v3237
        %3239 = vmatmul.bf16.gmra.mxu0 %v3214
        %v3240 = vpop.f32.mrf.mxu0
        %v3241 = vadd.f32 0.0, %v3240
        %v3242 = vpop.f32.mrf.mxu0
        %v3243 = vadd.f32 0.0, %v3242
        %3244 = vdwg.mxu0
        %v3245 = vpack.c.bf16 %v3228, %v3226
        %v3246 = vpack.c.bf16 %v3233, %v3231
        %v3247 = vpack.c.bf16 %v3238, %v3236
        %v3248 = vpack.c.bf16 %v3243, %v3241
        %s3249 = scalar_lea.vmem %s9, 32
        %v3250 = vld [vmem:[%s3249] sm:$0xf]
        %v3251 = vld [vmem:[%s3249 + $0x4] sm:$0xf]
        %v3254 = vunpack.c.l.b16 %v3250
        %v3255 = vunpack.c.l.b16 %v3251
        %v3256 = vpack.c.b16 %v3255, %v3254
        %v3259 = vsel %vm826, %v3245, 0
        %v3262 = vsel %vm826, %v3246, 0
        %v3265 = vsel %vm826, %v3247, 0
        %v3268 = vsel %vm826, %v3248, 0
        %3270 = vmatpush.bf16.msra.mxu0 0
        %3271 = vmatpush.bf16.msra.mxu0 0
        %3272 = vmatpush.bf16.msra.mxu0 0
        %3273 = vmatpush.bf16.msra.mxu0 0
        %3274 = vmatpush.bf16.msra.mxu0 0
        %3275 = vmatpush.bf16.msra.mxu0 0
        %3276 = vmatpush.bf16.msra.mxu0 0
        %3277 = vmatpush.bf16.msra.mxu0 %v3256
        %3278 = vmatmul.bf16.gmra.mxu0 %v3259
        %v3279 = vpop.f32.mrf.mxu0
        %v3280 = vadd.f32 0.0, %v3279
        %v3281 = vpop.f32.mrf.mxu0
        %v3282 = vadd.f32 0.0, %v3281
        %3283 = vmatmul.bf16.gmra.mxu0 %v3262
        %v3284 = vpop.f32.mrf.mxu0
        %v3285 = vadd.f32 0.0, %v3284
        %v3286 = vpop.f32.mrf.mxu0
        %v3287 = vadd.f32 0.0, %v3286
        %3288 = vmatmul.bf16.gmra.mxu0 %v3265
        %v3289 = vpop.f32.mrf.mxu0
        %v3290 = vadd.f32 0.0, %v3289
        %v3291 = vpop.f32.mrf.mxu0
        %v3292 = vadd.f32 0.0, %v3291
        %3293 = vmatmul.bf16.gmra.mxu0 %v3268
        %v3294 = vpop.f32.mrf.mxu0
        %v3295 = vadd.f32 0.0, %v3294
        %v3296 = vpop.f32.mrf.mxu0
        %v3297 = vadd.f32 0.0, %v3296
        %3298 = vdwg.mxu0
        %v3299 = vadd.f32 %v2742, %v3280
        %v3300 = vadd.f32 %v2743, %v3282
        %v3301 = vadd.f32 %v2744, %v3285
        %v3302 = vadd.f32 %v2745, %v3287
        %v3303 = vadd.f32 %v2746, %v3290
        %v3304 = vadd.f32 %v2747, %v3292
        %v3305 = vadd.f32 %v2748, %v3295
        %v3306 = vadd.f32 %v2749, %v3297
        %s3307 = scalar_lea.vmem %s3, 320
        %v3308 = vld [vmem:[%s3307] sm:$0xf]
        %v3309 = vld [vmem:[%s3307 + $0x4] sm:$0xf]
        %v3310 = vld [vmem:[%s3307 + $0x8] sm:$0xf]
        %v3311 = vld [vmem:[%s3307 + $0xc] sm:$0xf]
        %v3312 = vld [vmem:[%s3307 + $0x10] sm:$0xf]
        %v3313 = vld [vmem:[%s3307 + $0x14] sm:$0xf]
        %v3314 = vld [vmem:[%s3307 + $0x18] sm:$0xf]
        %v3315 = vld [vmem:[%s3307 + $0x1c] sm:$0xf]
        %v3316 = vld [vmem:[%s3307 + $0x20] sm:$0xf]
        %v3317 = vld [vmem:[%s3307 + $0x24] sm:$0xf]
        %v3318 = vld [vmem:[%s3307 + $0x28] sm:$0xf]
        %v3319 = vld [vmem:[%s3307 + $0x2c] sm:$0xf]
        %v3320 = vld [vmem:[%s3307 + $0x30] sm:$0xf]
        %v3321 = vld [vmem:[%s3307 + $0x34] sm:$0xf]
        %v3322 = vld [vmem:[%s3307 + $0x38] sm:$0xf]
        %v3323 = vld [vmem:[%s3307 + $0x3c] sm:$0xf]
        %s3324 = scalar_lea.vmem %s4, 5
        %v3325 = vld [vmem:[%s3324] sm:$0x1]
        %v3327 = vperm.slane %v3325, 0
        %v3345 = vunpack.c.l.b16 %v3308
        %v3346 = vunpack.c.l.b16 %v3309
        %v3347 = vunpack.c.l.b16 %v3310
        %v3348 = vunpack.c.l.b16 %v3311
        %v3349 = vunpack.c.l.b16 %v3312
        %v3350 = vunpack.c.l.b16 %v3313
        %v3351 = vunpack.c.l.b16 %v3314
        %v3352 = vunpack.c.l.b16 %v3315
        %v3353 = vunpack.c.l.b16 %v3316
        %v3354 = vunpack.c.l.b16 %v3317
        %v3355 = vunpack.c.l.b16 %v3318
        %v3356 = vunpack.c.l.b16 %v3319
        %v3357 = vunpack.c.l.b16 %v3320
        %v3358 = vunpack.c.l.b16 %v3321
        %v3359 = vunpack.c.l.b16 %v3322
        %v3360 = vunpack.c.l.b16 %v3323
        %v3361 = vpack.c.b16 %v3346, %v3345
        %v3362 = vpack.c.b16 %v3348, %v3347
        %v3363 = vpack.c.b16 %v3350, %v3349
        %v3364 = vpack.c.b16 %v3352, %v3351
        %v3365 = vpack.c.b16 %v3354, %v3353
        %v3366 = vpack.c.b16 %v3356, %v3355
        %v3367 = vpack.c.b16 %v3358, %v3357
        %v3368 = vpack.c.b16 %v3360, %v3359
        %3377 = vmatpush.bf16.msra.mxu0 %v3368
        %3378 = vmatpush.bf16.msra.mxu0 %v3367
        %3379 = vmatpush.bf16.msra.mxu0 %v3366
        %3380 = vmatpush.bf16.msra.mxu0 %v3365
        %3381 = vmatpush.bf16.msra.mxu0 %v3364
        %3382 = vmatpush.bf16.msra.mxu0 %v3363
        %3383 = vmatpush.bf16.msra.mxu0 %v3362
        %3384 = vmatpush.bf16.msra.mxu0 %v3361
        %3385 = vmatmul.bf16.gmra.mxu0 %v491
        %v3386 = vpop.f32.mrf.mxu0
        %v3387 = vadd.f32 %v3327, %v3386
        %v3388 = vpop.f32.mrf.mxu0
        %v3389 = vadd.f32 %v3327, %v3388
        %3390 = vmatmul.bf16.gmra.mxu0 %v492
        %v3391 = vpop.f32.mrf.mxu0
        %v3392 = vadd.f32 %v3327, %v3391
        %v3393 = vpop.f32.mrf.mxu0
        %v3394 = vadd.f32 %v3327, %v3393
        %3395 = vmatmul.bf16.gmra.mxu0 %v493
        %v3396 = vpop.f32.mrf.mxu0
        %v3397 = vadd.f32 %v3327, %v3396
        %v3398 = vpop.f32.mrf.mxu0
        %v3399 = vadd.f32 %v3327, %v3398
        %3400 = vmatmul.bf16.gmra.mxu0 %v494
        %v3401 = vpop.f32.mrf.mxu0
        %v3402 = vadd.f32 %v3327, %v3401
        %v3403 = vpop.f32.mrf.mxu0
        %v3404 = vadd.f32 %v3327, %v3403
        %3405 = vdwg.mxu0
        %s3406 = scalar_lea.vmem %s5, 320
        %v3407 = vld [vmem:[%s3406] sm:$0xf]
        %v3408 = vld [vmem:[%s3406 + $0x4] sm:$0xf]
        %v3409 = vld [vmem:[%s3406 + $0x8] sm:$0xf]
        %v3410 = vld [vmem:[%s3406 + $0xc] sm:$0xf]
        %v3411 = vld [vmem:[%s3406 + $0x10] sm:$0xf]
        %v3412 = vld [vmem:[%s3406 + $0x14] sm:$0xf]
        %v3413 = vld [vmem:[%s3406 + $0x18] sm:$0xf]
        %v3414 = vld [vmem:[%s3406 + $0x1c] sm:$0xf]
        %v3415 = vld [vmem:[%s3406 + $0x20] sm:$0xf]
        %v3416 = vld [vmem:[%s3406 + $0x24] sm:$0xf]
        %v3417 = vld [vmem:[%s3406 + $0x28] sm:$0xf]
        %v3418 = vld [vmem:[%s3406 + $0x2c] sm:$0xf]
        %v3419 = vld [vmem:[%s3406 + $0x30] sm:$0xf]
        %v3420 = vld [vmem:[%s3406 + $0x34] sm:$0xf]
        %v3421 = vld [vmem:[%s3406 + $0x38] sm:$0xf]
        %v3422 = vld [vmem:[%s3406 + $0x3c] sm:$0xf]
        %s3423 = scalar_lea.vmem %s6, 5
        %v3424 = vld [vmem:[%s3423] sm:$0x1]
        %v3426 = vperm.slane %v3424, 0
        %v3444 = vunpack.c.l.b16 %v3407
        %v3445 = vunpack.c.l.b16 %v3408
        %v3446 = vunpack.c.l.b16 %v3409
        %v3447 = vunpack.c.l.b16 %v3410
        %v3448 = vunpack.c.l.b16 %v3411
        %v3449 = vunpack.c.l.b16 %v3412
        %v3450 = vunpack.c.l.b16 %v3413
        %v3451 = vunpack.c.l.b16 %v3414
        %v3452 = vunpack.c.l.b16 %v3415
        %v3453 = vunpack.c.l.b16 %v3416
        %v3454 = vunpack.c.l.b16 %v3417
        %v3455 = vunpack.c.l.b16 %v3418
        %v3456 = vunpack.c.l.b16 %v3419
        %v3457 = vunpack.c.l.b16 %v3420
        %v3458 = vunpack.c.l.b16 %v3421
        %v3459 = vunpack.c.l.b16 %v3422
        %v3460 = vpack.c.b16 %v3445, %v3444
        %v3461 = vpack.c.b16 %v3447, %v3446
        %v3462 = vpack.c.b16 %v3449, %v3448
        %v3463 = vpack.c.b16 %v3451, %v3450
        %v3464 = vpack.c.b16 %v3453, %v3452
        %v3465 = vpack.c.b16 %v3455, %v3454
        %v3466 = vpack.c.b16 %v3457, %v3456
        %v3467 = vpack.c.b16 %v3459, %v3458
        %3476 = vmatpush.bf16.msra.mxu0 %v3467
        %3477 = vmatpush.bf16.msra.mxu0 %v3466
        %3478 = vmatpush.bf16.msra.mxu0 %v3465
        %3479 = vmatpush.bf16.msra.mxu0 %v3464
        %3480 = vmatpush.bf16.msra.mxu0 %v3463
        %3481 = vmatpush.bf16.msra.mxu0 %v3462
        %3482 = vmatpush.bf16.msra.mxu0 %v3461
        %3483 = vmatpush.bf16.msra.mxu0 %v3460
        %3484 = vmatmul.bf16.gmra.mxu0 %v612
        %v3485 = vpop.f32.mrf.mxu0
        %v3486 = vadd.f32 %v3426, %v3485
        %v3487 = vpop.f32.mrf.mxu0
        %v3488 = vadd.f32 %v3426, %v3487
        %3489 = vmatmul.bf16.gmra.mxu0 %v613
        %v3490 = vpop.f32.mrf.mxu0
        %v3491 = vadd.f32 %v3426, %v3490
        %v3492 = vpop.f32.mrf.mxu0
        %v3493 = vadd.f32 %v3426, %v3492
        %3494 = vmatmul.bf16.gmra.mxu0 %v614
        %v3495 = vpop.f32.mrf.mxu0
        %v3496 = vadd.f32 %v3426, %v3495
        %v3497 = vpop.f32.mrf.mxu0
        %v3498 = vadd.f32 %v3426, %v3497
        %3499 = vmatmul.bf16.gmra.mxu0 %v615
        %v3500 = vpop.f32.mrf.mxu0
        %v3501 = vadd.f32 %v3426, %v3500
        %v3502 = vpop.f32.mrf.mxu0
        %v3503 = vadd.f32 %v3426, %v3502
        %3504 = vdwg.mxu0
        %s3505 = scalar_lea.vmem %s7, 320
        %v3506 = vld [vmem:[%s3505] sm:$0xf]
        %v3507 = vld [vmem:[%s3505 + $0x4] sm:$0xf]
        %v3508 = vld [vmem:[%s3505 + $0x8] sm:$0xf]
        %v3509 = vld [vmem:[%s3505 + $0xc] sm:$0xf]
        %v3510 = vld [vmem:[%s3505 + $0x10] sm:$0xf]
        %v3511 = vld [vmem:[%s3505 + $0x14] sm:$0xf]
        %v3512 = vld [vmem:[%s3505 + $0x18] sm:$0xf]
        %v3513 = vld [vmem:[%s3505 + $0x1c] sm:$0xf]
        %v3514 = vld [vmem:[%s3505 + $0x20] sm:$0xf]
        %v3515 = vld [vmem:[%s3505 + $0x24] sm:$0xf]
        %v3516 = vld [vmem:[%s3505 + $0x28] sm:$0xf]
        %v3517 = vld [vmem:[%s3505 + $0x2c] sm:$0xf]
        %v3518 = vld [vmem:[%s3505 + $0x30] sm:$0xf]
        %v3519 = vld [vmem:[%s3505 + $0x34] sm:$0xf]
        %v3520 = vld [vmem:[%s3505 + $0x38] sm:$0xf]
        %v3521 = vld [vmem:[%s3505 + $0x3c] sm:$0xf]
        %s3522 = scalar_lea.vmem %s8, 5
        %v3523 = vld [vmem:[%s3522] sm:$0x1]
        %v3525 = vperm.slane %v3523, 0
        %v3543 = vunpack.c.l.b16 %v3506
        %v3544 = vunpack.c.l.b16 %v3507
        %v3545 = vunpack.c.l.b16 %v3508
        %v3546 = vunpack.c.l.b16 %v3509
        %v3547 = vunpack.c.l.b16 %v3510
        %v3548 = vunpack.c.l.b16 %v3511
        %v3549 = vunpack.c.l.b16 %v3512
        %v3550 = vunpack.c.l.b16 %v3513
        %v3551 = vunpack.c.l.b16 %v3514
        %v3552 = vunpack.c.l.b16 %v3515
        %v3553 = vunpack.c.l.b16 %v3516
        %v3554 = vunpack.c.l.b16 %v3517
        %v3555 = vunpack.c.l.b16 %v3518
        %v3556 = vunpack.c.l.b16 %v3519
        %v3557 = vunpack.c.l.b16 %v3520
        %v3558 = vunpack.c.l.b16 %v3521
        %v3559 = vpack.c.b16 %v3544, %v3543
        %v3560 = vpack.c.b16 %v3546, %v3545
        %v3561 = vpack.c.b16 %v3548, %v3547
        %v3562 = vpack.c.b16 %v3550, %v3549
        %v3563 = vpack.c.b16 %v3552, %v3551
        %v3564 = vpack.c.b16 %v3554, %v3553
        %v3565 = vpack.c.b16 %v3556, %v3555
        %v3566 = vpack.c.b16 %v3558, %v3557
        %3575 = vmatpush.bf16.msra.mxu0 %v3566
        %3576 = vmatpush.bf16.msra.mxu0 %v3565
        %3577 = vmatpush.bf16.msra.mxu0 %v3564
        %3578 = vmatpush.bf16.msra.mxu0 %v3563
        %3579 = vmatpush.bf16.msra.mxu0 %v3562
        %3580 = vmatpush.bf16.msra.mxu0 %v3561
        %3581 = vmatpush.bf16.msra.mxu0 %v3560
        %3582 = vmatpush.bf16.msra.mxu0 %v3559
        %3583 = vmatmul.bf16.gmra.mxu0 %v733
        %v3584 = vpop.f32.mrf.mxu0
        %v3585 = vadd.f32 %v3525, %v3584
        %v3586 = vpop.f32.mrf.mxu0
        %v3587 = vadd.f32 %v3525, %v3586
        %3588 = vmatmul.bf16.gmra.mxu0 %v734
        %v3589 = vpop.f32.mrf.mxu0
        %v3590 = vadd.f32 %v3525, %v3589
        %v3591 = vpop.f32.mrf.mxu0
        %v3592 = vadd.f32 %v3525, %v3591
        %3593 = vmatmul.bf16.gmra.mxu0 %v735
        %v3594 = vpop.f32.mrf.mxu0
        %v3595 = vadd.f32 %v3525, %v3594
        %v3596 = vpop.f32.mrf.mxu0
        %v3597 = vadd.f32 %v3525, %v3596
        %3598 = vmatmul.bf16.gmra.mxu0 %v736
        %v3599 = vpop.f32.mrf.mxu0
        %v3600 = vadd.f32 %v3525, %v3599
        %v3601 = vpop.f32.mrf.mxu0
        %v3602 = vadd.f32 %v3525, %v3601
        %3603 = vdwg.mxu0
        %v3604 = vpack.c.bf16 %v3389, %v3387
        %v3605 = vpack.c.bf16 %v3394, %v3392
        %v3606 = vpack.c.bf16 %v3399, %v3397
        %v3607 = vpack.c.bf16 %v3404, %v3402
        %v3608 = vpack.c.bf16 %v3488, %v3486
        %v3609 = vpack.c.bf16 %v3493, %v3491
        %v3610 = vpack.c.bf16 %v3498, %v3496
        %v3611 = vpack.c.bf16 %v3503, %v3501
        %v3613 = vsel %vm826, %v3604, 0
        %v3616 = vsel %vm826, %v3605, 0
        %v3619 = vsel %vm826, %v3606, 0
        %v3622 = vsel %vm826, %v3607, 0
        %v3625 = vsel %vm826, %v3608, 0
        %v3628 = vsel %vm826, %v3609, 0
        %v3631 = vsel %vm826, %v3610, 0
        %v3634 = vsel %vm826, %v3611, 0
        %3636 = vmatpush.bf16.xpose.msra.mxu0 0
        %3637 = vmatpush.bf16.xpose.msra.mxu0 0
        %3638 = vmatpush.bf16.xpose.msra.mxu0 0
        %3639 = vmatpush.bf16.xpose.msra.mxu0 0
        %3640 = vmatpush.bf16.xpose.msra.mxu0 %v3634
        %3641 = vmatpush.bf16.xpose.msra.mxu0 %v3631
        %3642 = vmatpush.bf16.xpose.msra.mxu0 %v3628
        %3643 = vmatpush.bf16.xpose.msra.mxu0 %v3625
        %3644 = vmatmul.bf16.gmra.mxu0 %v3613
        %v3645 = vpop.f32.mrf.mxu0
        %v3646 = vadd.f32 0.0, %v3645
        %v3647 = vpop.f32.mrf.mxu0
        %v3648 = vadd.f32 0.0, %v3647
        %3649 = vmatmul.bf16.gmra.mxu0 %v3616
        %v3650 = vpop.f32.mrf.mxu0
        %v3651 = vadd.f32 0.0, %v3650
        %v3652 = vpop.f32.mrf.mxu0
        %v3653 = vadd.f32 0.0, %v3652
        %3654 = vmatmul.bf16.gmra.mxu0 %v3619
        %v3655 = vpop.f32.mrf.mxu0
        %v3656 = vadd.f32 0.0, %v3655
        %v3657 = vpop.f32.mrf.mxu0
        %v3658 = vadd.f32 0.0, %v3657
        %3659 = vmatmul.bf16.gmra.mxu0 %v3622
        %v3660 = vpop.f32.mrf.mxu0
        %v3661 = vadd.f32 0.0, %v3660
        %v3662 = vpop.f32.mrf.mxu0
        %v3663 = vadd.f32 0.0, %v3662
        %3664 = vdwg.mxu0
        %v3665 = vsel %vm880, %v3646, -inf
        %3666 = vmax.xlane.f32.xlu0 %v3665
        %v3667 = vpop.xlane.xlu0 %3666
        %v3668 = vsel %vm880, %v3648, -inf
        %3669 = vmax.xlane.f32.xlu0 %v3668
        %v3670 = vpop.xlane.xlu0 %3669
        %v3671 = vsel %vm880, %v3651, -inf
        %3672 = vmax.xlane.f32.xlu0 %v3671
        %v3673 = vpop.xlane.xlu0 %3672
        %v3674 = vsel %vm880, %v3653, -inf
        %3675 = vmax.xlane.f32.xlu0 %v3674
        %v3676 = vpop.xlane.xlu0 %3675
        %v3677 = vsel %vm880, %v3656, -inf
        %3678 = vmax.xlane.f32.xlu0 %v3677
        %v3679 = vpop.xlane.xlu0 %3678
        %v3680 = vsel %vm880, %v3658, -inf
        %3681 = vmax.xlane.f32.xlu0 %v3680
        %v3682 = vpop.xlane.xlu0 %3681
        %v3683 = vsel %vm880, %v3661, -inf
        %3684 = vmax.xlane.f32.xlu0 %v3683
        %v3685 = vpop.xlane.xlu0 %3684
        %v3686 = vsel %vm880, %v3663, -inf
        %3687 = vmax.xlane.f32.xlu0 %v3686
        %v3688 = vpop.xlane.xlu0 %3687
        %v3689 = vsub.f32 %v3646, %v3667
        %v3690 = vsub.f32 %v3648, %v3670
        %v3691 = vsub.f32 %v3651, %v3673
        %v3692 = vsub.f32 %v3653, %v3676
        %v3693 = vsub.f32 %v3656, %v3679
        %v3694 = vsub.f32 %v3658, %v3682
        %v3695 = vsub.f32 %v3661, %v3685
        %v3696 = vsub.f32 %v3663, %v3688
        %v3697 = vmul.f32 %v3689, 1.442695
        %v3698 = vpow.pop %v3697
        %v3699 = vmul.f32 %v3690, 1.442695
        %v3700 = vpow.pop %v3699
        %v3701 = vmul.f32 %v3691, 1.442695
        %v3702 = vpow.pop %v3701
        %v3703 = vmul.f32 %v3692, 1.442695
        %v3704 = vpow.pop %v3703
        %v3705 = vmul.f32 %v3693, 1.442695
        %v3706 = vpow.pop %v3705
        %v3707 = vmul.f32 %v3694, 1.442695
        %v3708 = vpow.pop %v3707
        %v3709 = vmul.f32 %v3695, 1.442695
        %v3710 = vpow.pop %v3709
        %v3711 = vmul.f32 %v3696, 1.442695
        %v3712 = vpow.pop %v3711
        %v3713 = vsel %vm880, %v3698, 0.0
        %3714 = vadd.xlane.f32.xlu0 %v3713
        %v3715 = vpop.xlane.xlu0 %3714
        %v3716 = vsel %vm880, %v3700, 0.0
        %3717 = vadd.xlane.f32.xlu0 %v3716
        %v3718 = vpop.xlane.xlu0 %3717
        %v3719 = vsel %vm880, %v3702, 0.0
        %3720 = vadd.xlane.f32.xlu0 %v3719
        %v3721 = vpop.xlane.xlu0 %3720
        %v3722 = vsel %vm880, %v3704, 0.0
        %3723 = vadd.xlane.f32.xlu0 %v3722
        %v3724 = vpop.xlane.xlu0 %3723
        %v3725 = vsel %vm880, %v3706, 0.0
        %3726 = vadd.xlane.f32.xlu0 %v3725
        %v3727 = vpop.xlane.xlu0 %3726
        %v3728 = vsel %vm880, %v3708, 0.0
        %3729 = vadd.xlane.f32.xlu0 %v3728
        %v3730 = vpop.xlane.xlu0 %3729
        %v3731 = vsel %vm880, %v3710, 0.0
        %3732 = vadd.xlane.f32.xlu0 %v3731
        %v3733 = vpop.xlane.xlu0 %3732
        %v3734 = vsel %vm880, %v3712, 0.0
        %3735 = vadd.xlane.f32.xlu0 %v3734
        %v3736 = vpop.xlane.xlu0 %3735
        %v3737 = vrcp.pop %v3715
        %v3738 = vrcp.pop %v3718
        %v3739 = vrcp.pop %v3721
        %v3740 = vrcp.pop %v3724
        %v3741 = vrcp.pop %v3727
        %v3742 = vrcp.pop %v3730
        %v3743 = vrcp.pop %v3733
        %v3744 = vrcp.pop %v3736
        %v3745 = vmul.f32 %v3698, %v3737
        %v3746 = vmul.f32 %v3700, %v3738
        %v3747 = vmul.f32 %v3702, %v3739
        %v3748 = vmul.f32 %v3704, %v3740
        %v3749 = vmul.f32 %v3706, %v3741
        %v3750 = vmul.f32 %v3708, %v3742
        %v3751 = vmul.f32 %v3710, %v3743
        %v3752 = vmul.f32 %v3712, %v3744
        %v3753 = vpack.c.bf16 %v3746, %v3745
        %v3754 = vpack.c.bf16 %v3748, %v3747
        %v3755 = vpack.c.bf16 %v3750, %v3749
        %v3756 = vpack.c.bf16 %v3752, %v3751
        %v3757 = vpack.c.bf16 %v3587, %v3585
        %v3758 = vpack.c.bf16 %v3592, %v3590
        %v3759 = vpack.c.bf16 %v3597, %v3595
        %v3760 = vpack.c.bf16 %v3602, %v3600
        %v3762 = vsel %vm880, %v3753, 0
        %v3765 = vsel %vm880, %v3754, 0
        %v3768 = vsel %vm880, %v3755, 0
        %v3771 = vsel %vm880, %v3756, 0
        %3773 = vmatpush.bf16.msra.mxu0 0
        %3774 = vmatpush.bf16.msra.mxu0 0
        %3775 = vmatpush.bf16.msra.mxu0 0
        %3776 = vmatpush.bf16.msra.mxu0 0
        %3777 = vmatpush.bf16.msra.mxu0 %v3760
        %3778 = vmatpush.bf16.msra.mxu0 %v3759
        %3779 = vmatpush.bf16.msra.mxu0 %v3758
        %3780 = vmatpush.bf16.msra.mxu0 %v3757
        %3781 = vmatmul.bf16.gmra.mxu0 %v3762
        %v3782 = vpop.f32.mrf.mxu0
        %v3783 = vadd.f32 0.0, %v3782
        %v3784 = vpop.f32.mrf.mxu0
        %v3785 = vadd.f32 0.0, %v3784
        %3786 = vmatmul.bf16.gmra.mxu0 %v3765
        %v3787 = vpop.f32.mrf.mxu0
        %v3788 = vadd.f32 0.0, %v3787
        %v3789 = vpop.f32.mrf.mxu0
        %v3790 = vadd.f32 0.0, %v3789
        %3791 = vmatmul.bf16.gmra.mxu0 %v3768
        %v3792 = vpop.f32.mrf.mxu0
        %v3793 = vadd.f32 0.0, %v3792
        %v3794 = vpop.f32.mrf.mxu0
        %v3795 = vadd.f32 0.0, %v3794
        %3796 = vmatmul.bf16.gmra.mxu0 %v3771
        %v3797 = vpop.f32.mrf.mxu0
        %v3798 = vadd.f32 0.0, %v3797
        %v3799 = vpop.f32.mrf.mxu0
        %v3800 = vadd.f32 0.0, %v3799
        %3801 = vdwg.mxu0
        %v3802 = vpack.c.bf16 %v3785, %v3783
        %v3803 = vpack.c.bf16 %v3790, %v3788
        %v3804 = vpack.c.bf16 %v3795, %v3793
        %v3805 = vpack.c.bf16 %v3800, %v3798
        %s3806 = scalar_lea.vmem %s9, 40
        %v3807 = vld [vmem:[%s3806] sm:$0xf]
        %v3808 = vld [vmem:[%s3806 + $0x4] sm:$0xf]
        %v3811 = vunpack.c.l.b16 %v3807
        %v3812 = vunpack.c.l.b16 %v3808
        %v3813 = vpack.c.b16 %v3812, %v3811
        %v3816 = vsel %vm826, %v3802, 0
        %v3819 = vsel %vm826, %v3803, 0
        %v3822 = vsel %vm826, %v3804, 0
        %v3825 = vsel %vm826, %v3805, 0
        %3827 = vmatpush.bf16.msra.mxu0 0
        %3828 = vmatpush.bf16.msra.mxu0 0
        %3829 = vmatpush.bf16.msra.mxu0 0
        %3830 = vmatpush.bf16.msra.mxu0 0
        %3831 = vmatpush.bf16.msra.mxu0 0
        %3832 = vmatpush.bf16.msra.mxu0 0
        %3833 = vmatpush.bf16.msra.mxu0 0
        %3834 = vmatpush.bf16.msra.mxu0 %v3813
        %3835 = vmatmul.bf16.gmra.mxu0 %v3816
        %v3836 = vpop.f32.mrf.mxu0
        %v3837 = vadd.f32 0.0, %v3836
        %v3838 = vpop.f32.mrf.mxu0
        %v3839 = vadd.f32 0.0, %v3838
        %3840 = vmatmul.bf16.gmra.mxu0 %v3819
        %v3841 = vpop.f32.mrf.mxu0
        %v3842 = vadd.f32 0.0, %v3841
        %v3843 = vpop.f32.mrf.mxu0
        %v3844 = vadd.f32 0.0, %v3843
        %3845 = vmatmul.bf16.gmra.mxu0 %v3822
        %v3846 = vpop.f32.mrf.mxu0
        %v3847 = vadd.f32 0.0, %v3846
        %v3848 = vpop.f32.mrf.mxu0
        %v3849 = vadd.f32 0.0, %v3848
        %3850 = vmatmul.bf16.gmra.mxu0 %v3825
        %v3851 = vpop.f32.mrf.mxu0
        %v3852 = vadd.f32 0.0, %v3851
        %v3853 = vpop.f32.mrf.mxu0
        %v3854 = vadd.f32 0.0, %v3853
        %3855 = vdwg.mxu0
        %v3856 = vadd.f32 %v3299, %v3837
        %v3857 = vadd.f32 %v3300, %v3839
        %v3858 = vadd.f32 %v3301, %v3842
        %v3859 = vadd.f32 %v3302, %v3844
        %v3860 = vadd.f32 %v3303, %v3847
        %v3861 = vadd.f32 %v3304, %v3849
        %v3862 = vadd.f32 %v3305, %v3852
        %v3863 = vadd.f32 %v3306, %v3854
        %s3864 = scalar_lea.vmem %s3, 384
        %v3865 = vld [vmem:[%s3864] sm:$0xf]
        %v3866 = vld [vmem:[%s3864 + $0x4] sm:$0xf]
        %v3867 = vld [vmem:[%s3864 + $0x8] sm:$0xf]
        %v3868 = vld [vmem:[%s3864 + $0xc] sm:$0xf]
        %v3869 = vld [vmem:[%s3864 + $0x10] sm:$0xf]
        %v3870 = vld [vmem:[%s3864 + $0x14] sm:$0xf]
        %v3871 = vld [vmem:[%s3864 + $0x18] sm:$0xf]
        %v3872 = vld [vmem:[%s3864 + $0x1c] sm:$0xf]
        %v3873 = vld [vmem:[%s3864 + $0x20] sm:$0xf]
        %v3874 = vld [vmem:[%s3864 + $0x24] sm:$0xf]
        %v3875 = vld [vmem:[%s3864 + $0x28] sm:$0xf]
        %v3876 = vld [vmem:[%s3864 + $0x2c] sm:$0xf]
        %v3877 = vld [vmem:[%s3864 + $0x30] sm:$0xf]
        %v3878 = vld [vmem:[%s3864 + $0x34] sm:$0xf]
        %v3879 = vld [vmem:[%s3864 + $0x38] sm:$0xf]
        %v3880 = vld [vmem:[%s3864 + $0x3c] sm:$0xf]
        %s3881 = scalar_lea.vmem %s4, 6
        %v3882 = vld [vmem:[%s3881] sm:$0x1]
        %v3884 = vperm.slane %v3882, 0
        %v3902 = vunpack.c.l.b16 %v3865
        %v3903 = vunpack.c.l.b16 %v3866
        %v3904 = vunpack.c.l.b16 %v3867
        %v3905 = vunpack.c.l.b16 %v3868
        %v3906 = vunpack.c.l.b16 %v3869
        %v3907 = vunpack.c.l.b16 %v3870
        %v3908 = vunpack.c.l.b16 %v3871
        %v3909 = vunpack.c.l.b16 %v3872
        %v3910 = vunpack.c.l.b16 %v3873
        %v3911 = vunpack.c.l.b16 %v3874
        %v3912 = vunpack.c.l.b16 %v3875
        %v3913 = vunpack.c.l.b16 %v3876
        %v3914 = vunpack.c.l.b16 %v3877
        %v3915 = vunpack.c.l.b16 %v3878
        %v3916 = vunpack.c.l.b16 %v3879
        %v3917 = vunpack.c.l.b16 %v3880
        %v3918 = vpack.c.b16 %v3903, %v3902
        %v3919 = vpack.c.b16 %v3905, %v3904
        %v3920 = vpack.c.b16 %v3907, %v3906
        %v3921 = vpack.c.b16 %v3909, %v3908
        %v3922 = vpack.c.b16 %v3911, %v3910
        %v3923 = vpack.c.b16 %v3913, %v3912
        %v3924 = vpack.c.b16 %v3915, %v3914
        %v3925 = vpack.c.b16 %v3917, %v3916
        %3934 = vmatpush.bf16.msra.mxu0 %v3925
        %3935 = vmatpush.bf16.msra.mxu0 %v3924
        %3936 = vmatpush.bf16.msra.mxu0 %v3923
        %3937 = vmatpush.bf16.msra.mxu0 %v3922
        %3938 = vmatpush.bf16.msra.mxu0 %v3921
        %3939 = vmatpush.bf16.msra.mxu0 %v3920
        %3940 = vmatpush.bf16.msra.mxu0 %v3919
        %3941 = vmatpush.bf16.msra.mxu0 %v3918
        %3942 = vmatmul.bf16.gmra.mxu0 %v491
        %v3943 = vpop.f32.mrf.mxu0
        %v3944 = vadd.f32 %v3884, %v3943
        %v3945 = vpop.f32.mrf.mxu0
        %v3946 = vadd.f32 %v3884, %v3945
        %3947 = vmatmul.bf16.gmra.mxu0 %v492
        %v3948 = vpop.f32.mrf.mxu0
        %v3949 = vadd.f32 %v3884, %v3948
        %v3950 = vpop.f32.mrf.mxu0
        %v3951 = vadd.f32 %v3884, %v3950
        %3952 = vmatmul.bf16.gmra.mxu0 %v493
        %v3953 = vpop.f32.mrf.mxu0
        %v3954 = vadd.f32 %v3884, %v3953
        %v3955 = vpop.f32.mrf.mxu0
        %v3956 = vadd.f32 %v3884, %v3955
        %3957 = vmatmul.bf16.gmra.mxu0 %v494
        %v3958 = vpop.f32.mrf.mxu0
        %v3959 = vadd.f32 %v3884, %v3958
        %v3960 = vpop.f32.mrf.mxu0
        %v3961 = vadd.f32 %v3884, %v3960
        %3962 = vdwg.mxu0
        %s3963 = scalar_lea.vmem %s5, 384
        %v3964 = vld [vmem:[%s3963] sm:$0xf]
        %v3965 = vld [vmem:[%s3963 + $0x4] sm:$0xf]
        %v3966 = vld [vmem:[%s3963 + $0x8] sm:$0xf]
        %v3967 = vld [vmem:[%s3963 + $0xc] sm:$0xf]
        %v3968 = vld [vmem:[%s3963 + $0x10] sm:$0xf]
        %v3969 = vld [vmem:[%s3963 + $0x14] sm:$0xf]
        %v3970 = vld [vmem:[%s3963 + $0x18] sm:$0xf]
        %v3971 = vld [vmem:[%s3963 + $0x1c] sm:$0xf]
        %v3972 = vld [vmem:[%s3963 + $0x20] sm:$0xf]
        %v3973 = vld [vmem:[%s3963 + $0x24] sm:$0xf]
        %v3974 = vld [vmem:[%s3963 + $0x28] sm:$0xf]
        %v3975 = vld [vmem:[%s3963 + $0x2c] sm:$0xf]
        %v3976 = vld [vmem:[%s3963 + $0x30] sm:$0xf]
        %v3977 = vld [vmem:[%s3963 + $0x34] sm:$0xf]
        %v3978 = vld [vmem:[%s3963 + $0x38] sm:$0xf]
        %v3979 = vld [vmem:[%s3963 + $0x3c] sm:$0xf]
        %s3980 = scalar_lea.vmem %s6, 6
        %v3981 = vld [vmem:[%s3980] sm:$0x1]
        %v3983 = vperm.slane %v3981, 0
        %v4001 = vunpack.c.l.b16 %v3964
        %v4002 = vunpack.c.l.b16 %v3965
        %v4003 = vunpack.c.l.b16 %v3966
        %v4004 = vunpack.c.l.b16 %v3967
        %v4005 = vunpack.c.l.b16 %v3968
        %v4006 = vunpack.c.l.b16 %v3969
        %v4007 = vunpack.c.l.b16 %v3970
        %v4008 = vunpack.c.l.b16 %v3971
        %v4009 = vunpack.c.l.b16 %v3972
        %v4010 = vunpack.c.l.b16 %v3973
        %v4011 = vunpack.c.l.b16 %v3974
        %v4012 = vunpack.c.l.b16 %v3975
        %v4013 = vunpack.c.l.b16 %v3976
        %v4014 = vunpack.c.l.b16 %v3977
        %v4015 = vunpack.c.l.b16 %v3978
        %v4016 = vunpack.c.l.b16 %v3979
        %v4017 = vpack.c.b16 %v4002, %v4001
        %v4018 = vpack.c.b16 %v4004, %v4003
        %v4019 = vpack.c.b16 %v4006, %v4005
        %v4020 = vpack.c.b16 %v4008, %v4007
        %v4021 = vpack.c.b16 %v4010, %v4009
        %v4022 = vpack.c.b16 %v4012, %v4011
        %v4023 = vpack.c.b16 %v4014, %v4013
        %v4024 = vpack.c.b16 %v4016, %v4015
        %4033 = vmatpush.bf16.msra.mxu0 %v4024
        %4034 = vmatpush.bf16.msra.mxu0 %v4023
        %4035 = vmatpush.bf16.msra.mxu0 %v4022
        %4036 = vmatpush.bf16.msra.mxu0 %v4021
        %4037 = vmatpush.bf16.msra.mxu0 %v4020
        %4038 = vmatpush.bf16.msra.mxu0 %v4019
        %4039 = vmatpush.bf16.msra.mxu0 %v4018
        %4040 = vmatpush.bf16.msra.mxu0 %v4017
        %4041 = vmatmul.bf16.gmra.mxu0 %v612
        %v4042 = vpop.f32.mrf.mxu0
        %v4043 = vadd.f32 %v3983, %v4042
        %v4044 = vpop.f32.mrf.mxu0
        %v4045 = vadd.f32 %v3983, %v4044
        %4046 = vmatmul.bf16.gmra.mxu0 %v613
        %v4047 = vpop.f32.mrf.mxu0
        %v4048 = vadd.f32 %v3983, %v4047
        %v4049 = vpop.f32.mrf.mxu0
        %v4050 = vadd.f32 %v3983, %v4049
        %4051 = vmatmul.bf16.gmra.mxu0 %v614
        %v4052 = vpop.f32.mrf.mxu0
        %v4053 = vadd.f32 %v3983, %v4052
        %v4054 = vpop.f32.mrf.mxu0
        %v4055 = vadd.f32 %v3983, %v4054
        %4056 = vmatmul.bf16.gmra.mxu0 %v615
        %v4057 = vpop.f32.mrf.mxu0
        %v4058 = vadd.f32 %v3983, %v4057
        %v4059 = vpop.f32.mrf.mxu0
        %v4060 = vadd.f32 %v3983, %v4059
        %4061 = vdwg.mxu0
        %s4062 = scalar_lea.vmem %s7, 384
        %v4063 = vld [vmem:[%s4062] sm:$0xf]
        %v4064 = vld [vmem:[%s4062 + $0x4] sm:$0xf]
        %v4065 = vld [vmem:[%s4062 + $0x8] sm:$0xf]
        %v4066 = vld [vmem:[%s4062 + $0xc] sm:$0xf]
        %v4067 = vld [vmem:[%s4062 + $0x10] sm:$0xf]
        %v4068 = vld [vmem:[%s4062 + $0x14] sm:$0xf]
        %v4069 = vld [vmem:[%s4062 + $0x18] sm:$0xf]
        %v4070 = vld [vmem:[%s4062 + $0x1c] sm:$0xf]
        %v4071 = vld [vmem:[%s4062 + $0x20] sm:$0xf]
        %v4072 = vld [vmem:[%s4062 + $0x24] sm:$0xf]
        %v4073 = vld [vmem:[%s4062 + $0x28] sm:$0xf]
        %v4074 = vld [vmem:[%s4062 + $0x2c] sm:$0xf]
        %v4075 = vld [vmem:[%s4062 + $0x30] sm:$0xf]
        %v4076 = vld [vmem:[%s4062 + $0x34] sm:$0xf]
        %v4077 = vld [vmem:[%s4062 + $0x38] sm:$0xf]
        %v4078 = vld [vmem:[%s4062 + $0x3c] sm:$0xf]
        %s4079 = scalar_lea.vmem %s8, 6
        %v4080 = vld [vmem:[%s4079] sm:$0x1]
        %v4082 = vperm.slane %v4080, 0
        %v4100 = vunpack.c.l.b16 %v4063
        %v4101 = vunpack.c.l.b16 %v4064
        %v4102 = vunpack.c.l.b16 %v4065
        %v4103 = vunpack.c.l.b16 %v4066
        %v4104 = vunpack.c.l.b16 %v4067
        %v4105 = vunpack.c.l.b16 %v4068
        %v4106 = vunpack.c.l.b16 %v4069
        %v4107 = vunpack.c.l.b16 %v4070
        %v4108 = vunpack.c.l.b16 %v4071
        %v4109 = vunpack.c.l.b16 %v4072
        %v4110 = vunpack.c.l.b16 %v4073
        %v4111 = vunpack.c.l.b16 %v4074
        %v4112 = vunpack.c.l.b16 %v4075
        %v4113 = vunpack.c.l.b16 %v4076
        %v4114 = vunpack.c.l.b16 %v4077
        %v4115 = vunpack.c.l.b16 %v4078
        %v4116 = vpack.c.b16 %v4101, %v4100
        %v4117 = vpack.c.b16 %v4103, %v4102
        %v4118 = vpack.c.b16 %v4105, %v4104
        %v4119 = vpack.c.b16 %v4107, %v4106
        %v4120 = vpack.c.b16 %v4109, %v4108
        %v4121 = vpack.c.b16 %v4111, %v4110
        %v4122 = vpack.c.b16 %v4113, %v4112
        %v4123 = vpack.c.b16 %v4115, %v4114
        %4132 = vmatpush.bf16.msra.mxu0 %v4123
        %4133 = vmatpush.bf16.msra.mxu0 %v4122
        %4134 = vmatpush.bf16.msra.mxu0 %v4121
        %4135 = vmatpush.bf16.msra.mxu0 %v4120
        %4136 = vmatpush.bf16.msra.mxu0 %v4119
        %4137 = vmatpush.bf16.msra.mxu0 %v4118
        %4138 = vmatpush.bf16.msra.mxu0 %v4117
        %4139 = vmatpush.bf16.msra.mxu0 %v4116
        %4140 = vmatmul.bf16.gmra.mxu0 %v733
        %v4141 = vpop.f32.mrf.mxu0
        %v4142 = vadd.f32 %v4082, %v4141
        %v4143 = vpop.f32.mrf.mxu0
        %v4144 = vadd.f32 %v4082, %v4143
        %4145 = vmatmul.bf16.gmra.mxu0 %v734
        %v4146 = vpop.f32.mrf.mxu0
        %v4147 = vadd.f32 %v4082, %v4146
        %v4148 = vpop.f32.mrf.mxu0
        %v4149 = vadd.f32 %v4082, %v4148
        %4150 = vmatmul.bf16.gmra.mxu0 %v735
        %v4151 = vpop.f32.mrf.mxu0
        %v4152 = vadd.f32 %v4082, %v4151
        %v4153 = vpop.f32.mrf.mxu0
        %v4154 = vadd.f32 %v4082, %v4153
        %4155 = vmatmul.bf16.gmra.mxu0 %v736
        %v4156 = vpop.f32.mrf.mxu0
        %v4157 = vadd.f32 %v4082, %v4156
        %v4158 = vpop.f32.mrf.mxu0
        %v4159 = vadd.f32 %v4082, %v4158
        %4160 = vdwg.mxu0
        %v4161 = vpack.c.bf16 %v3946, %v3944
        %v4162 = vpack.c.bf16 %v3951, %v3949
        %v4163 = vpack.c.bf16 %v3956, %v3954
        %v4164 = vpack.c.bf16 %v3961, %v3959
        %v4165 = vpack.c.bf16 %v4045, %v4043
        %v4166 = vpack.c.bf16 %v4050, %v4048
        %v4167 = vpack.c.bf16 %v4055, %v4053
        %v4168 = vpack.c.bf16 %v4060, %v4058
        %v4170 = vsel %vm826, %v4161, 0
        %v4173 = vsel %vm826, %v4162, 0
        %v4176 = vsel %vm826, %v4163, 0
        %v4179 = vsel %vm826, %v4164, 0
        %v4182 = vsel %vm826, %v4165, 0
        %v4185 = vsel %vm826, %v4166, 0
        %v4188 = vsel %vm826, %v4167, 0
        %v4191 = vsel %vm826, %v4168, 0
        %4193 = vmatpush.bf16.xpose.msra.mxu0 0
        %4194 = vmatpush.bf16.xpose.msra.mxu0 0
        %4195 = vmatpush.bf16.xpose.msra.mxu0 0
        %4196 = vmatpush.bf16.xpose.msra.mxu0 0
        %4197 = vmatpush.bf16.xpose.msra.mxu0 %v4191
        %4198 = vmatpush.bf16.xpose.msra.mxu0 %v4188
        %4199 = vmatpush.bf16.xpose.msra.mxu0 %v4185
        %4200 = vmatpush.bf16.xpose.msra.mxu0 %v4182
        %4201 = vmatmul.bf16.gmra.mxu0 %v4170
        %v4202 = vpop.f32.mrf.mxu0
        %v4203 = vadd.f32 0.0, %v4202
        %v4204 = vpop.f32.mrf.mxu0
        %v4205 = vadd.f32 0.0, %v4204
        %4206 = vmatmul.bf16.gmra.mxu0 %v4173
        %v4207 = vpop.f32.mrf.mxu0
        %v4208 = vadd.f32 0.0, %v4207
        %v4209 = vpop.f32.mrf.mxu0
        %v4210 = vadd.f32 0.0, %v4209
        %4211 = vmatmul.bf16.gmra.mxu0 %v4176
        %v4212 = vpop.f32.mrf.mxu0
        %v4213 = vadd.f32 0.0, %v4212
        %v4214 = vpop.f32.mrf.mxu0
        %v4215 = vadd.f32 0.0, %v4214
        %4216 = vmatmul.bf16.gmra.mxu0 %v4179
        %v4217 = vpop.f32.mrf.mxu0
        %v4218 = vadd.f32 0.0, %v4217
        %v4219 = vpop.f32.mrf.mxu0
        %v4220 = vadd.f32 0.0, %v4219
        %4221 = vdwg.mxu0
        %v4222 = vsel %vm880, %v4203, -inf
        %4223 = vmax.xlane.f32.xlu0 %v4222
        %v4224 = vpop.xlane.xlu0 %4223
        %v4225 = vsel %vm880, %v4205, -inf
        %4226 = vmax.xlane.f32.xlu0 %v4225
        %v4227 = vpop.xlane.xlu0 %4226
        %v4228 = vsel %vm880, %v4208, -inf
        %4229 = vmax.xlane.f32.xlu0 %v4228
        %v4230 = vpop.xlane.xlu0 %4229
        %v4231 = vsel %vm880, %v4210, -inf
        %4232 = vmax.xlane.f32.xlu0 %v4231
        %v4233 = vpop.xlane.xlu0 %4232
        %v4234 = vsel %vm880, %v4213, -inf
        %4235 = vmax.xlane.f32.xlu0 %v4234
        %v4236 = vpop.xlane.xlu0 %4235
        %v4237 = vsel %vm880, %v4215, -inf
        %4238 = vmax.xlane.f32.xlu0 %v4237
        %v4239 = vpop.xlane.xlu0 %4238
        %v4240 = vsel %vm880, %v4218, -inf
        %4241 = vmax.xlane.f32.xlu0 %v4240
        %v4242 = vpop.xlane.xlu0 %4241
        %v4243 = vsel %vm880, %v4220, -inf
        %4244 = vmax.xlane.f32.xlu0 %v4243
        %v4245 = vpop.xlane.xlu0 %4244
        %v4246 = vsub.f32 %v4203, %v4224
        %v4247 = vsub.f32 %v4205, %v4227
        %v4248 = vsub.f32 %v4208, %v4230
        %v4249 = vsub.f32 %v4210, %v4233
        %v4250 = vsub.f32 %v4213, %v4236
        %v4251 = vsub.f32 %v4215, %v4239
        %v4252 = vsub.f32 %v4218, %v4242
        %v4253 = vsub.f32 %v4220, %v4245
        %v4254 = vmul.f32 %v4246, 1.442695
        %v4255 = vpow.pop %v4254
        %v4256 = vmul.f32 %v4247, 1.442695
        %v4257 = vpow.pop %v4256
        %v4258 = vmul.f32 %v4248, 1.442695
        %v4259 = vpow.pop %v4258
        %v4260 = vmul.f32 %v4249, 1.442695
        %v4261 = vpow.pop %v4260
        %v4262 = vmul.f32 %v4250, 1.442695
        %v4263 = vpow.pop %v4262
        %v4264 = vmul.f32 %v4251, 1.442695
        %v4265 = vpow.pop %v4264
        %v4266 = vmul.f32 %v4252, 1.442695
        %v4267 = vpow.pop %v4266
        %v4268 = vmul.f32 %v4253, 1.442695
        %v4269 = vpow.pop %v4268
        %v4270 = vsel %vm880, %v4255, 0.0
        %4271 = vadd.xlane.f32.xlu0 %v4270
        %v4272 = vpop.xlane.xlu0 %4271
        %v4273 = vsel %vm880, %v4257, 0.0
        %4274 = vadd.xlane.f32.xlu0 %v4273
        %v4275 = vpop.xlane.xlu0 %4274
        %v4276 = vsel %vm880, %v4259, 0.0
        %4277 = vadd.xlane.f32.xlu0 %v4276
        %v4278 = vpop.xlane.xlu0 %4277
        %v4279 = vsel %vm880, %v4261, 0.0
        %4280 = vadd.xlane.f32.xlu0 %v4279
        %v4281 = vpop.xlane.xlu0 %4280
        %v4282 = vsel %vm880, %v4263, 0.0
        %4283 = vadd.xlane.f32.xlu0 %v4282
        %v4284 = vpop.xlane.xlu0 %4283
        %v4285 = vsel %vm880, %v4265, 0.0
        %4286 = vadd.xlane.f32.xlu0 %v4285
        %v4287 = vpop.xlane.xlu0 %4286
        %v4288 = vsel %vm880, %v4267, 0.0
        %4289 = vadd.xlane.f32.xlu0 %v4288
        %v4290 = vpop.xlane.xlu0 %4289
        %v4291 = vsel %vm880, %v4269, 0.0
        %4292 = vadd.xlane.f32.xlu0 %v4291
        %v4293 = vpop.xlane.xlu0 %4292
        %v4294 = vrcp.pop %v4272
        %v4295 = vrcp.pop %v4275
        %v4296 = vrcp.pop %v4278
        %v4297 = vrcp.pop %v4281
        %v4298 = vrcp.pop %v4284
        %v4299 = vrcp.pop %v4287
        %v4300 = vrcp.pop %v4290
        %v4301 = vrcp.pop %v4293
        %v4302 = vmul.f32 %v4255, %v4294
        %v4303 = vmul.f32 %v4257, %v4295
        %v4304 = vmul.f32 %v4259, %v4296
        %v4305 = vmul.f32 %v4261, %v4297
        %v4306 = vmul.f32 %v4263, %v4298
        %v4307 = vmul.f32 %v4265, %v4299
        %v4308 = vmul.f32 %v4267, %v4300
        %v4309 = vmul.f32 %v4269, %v4301
        %v4310 = vpack.c.bf16 %v4303, %v4302
        %v4311 = vpack.c.bf16 %v4305, %v4304
        %v4312 = vpack.c.bf16 %v4307, %v4306
        %v4313 = vpack.c.bf16 %v4309, %v4308
        %v4314 = vpack.c.bf16 %v4144, %v4142
        %v4315 = vpack.c.bf16 %v4149, %v4147
        %v4316 = vpack.c.bf16 %v4154, %v4152
        %v4317 = vpack.c.bf16 %v4159, %v4157
        %v4319 = vsel %vm880, %v4310, 0
        %v4322 = vsel %vm880, %v4311, 0
        %v4325 = vsel %vm880, %v4312, 0
        %v4328 = vsel %vm880, %v4313, 0
        %4330 = vmatpush.bf16.msra.mxu0 0
        %4331 = vmatpush.bf16.msra.mxu0 0
        %4332 = vmatpush.bf16.msra.mxu0 0
        %4333 = vmatpush.bf16.msra.mxu0 0
        %4334 = vmatpush.bf16.msra.mxu0 %v4317
        %4335 = vmatpush.bf16.msra.mxu0 %v4316
        %4336 = vmatpush.bf16.msra.mxu0 %v4315
        %4337 = vmatpush.bf16.msra.mxu0 %v4314
        %4338 = vmatmul.bf16.gmra.mxu0 %v4319
        %v4339 = vpop.f32.mrf.mxu0
        %v4340 = vadd.f32 0.0, %v4339
        %v4341 = vpop.f32.mrf.mxu0
        %v4342 = vadd.f32 0.0, %v4341
        %4343 = vmatmul.bf16.gmra.mxu0 %v4322
        %v4344 = vpop.f32.mrf.mxu0
        %v4345 = vadd.f32 0.0, %v4344
        %v4346 = vpop.f32.mrf.mxu0
        %v4347 = vadd.f32 0.0, %v4346
        %4348 = vmatmul.bf16.gmra.mxu0 %v4325
        %v4349 = vpop.f32.mrf.mxu0
        %v4350 = vadd.f32 0.0, %v4349
        %v4351 = vpop.f32.mrf.mxu0
        %v4352 = vadd.f32 0.0, %v4351
        %4353 = vmatmul.bf16.gmra.mxu0 %v4328
        %v4354 = vpop.f32.mrf.mxu0
        %v4355 = vadd.f32 0.0, %v4354
        %v4356 = vpop.f32.mrf.mxu0
        %v4357 = vadd.f32 0.0, %v4356
        %4358 = vdwg.mxu0
        %v4359 = vpack.c.bf16 %v4342, %v4340
        %v4360 = vpack.c.bf16 %v4347, %v4345
        %v4361 = vpack.c.bf16 %v4352, %v4350
        %v4362 = vpack.c.bf16 %v4357, %v4355
        %s4363 = scalar_lea.vmem %s9, 48
        %v4364 = vld [vmem:[%s4363] sm:$0xf]
        %v4365 = vld [vmem:[%s4363 + $0x4] sm:$0xf]
        %v4368 = vunpack.c.l.b16 %v4364
        %v4369 = vunpack.c.l.b16 %v4365
        %v4370 = vpack.c.b16 %v4369, %v4368
        %v4373 = vsel %vm826, %v4359, 0
        %v4376 = vsel %vm826, %v4360, 0
        %v4379 = vsel %vm826, %v4361, 0
        %v4382 = vsel %vm826, %v4362, 0
        %4384 = vmatpush.bf16.msra.mxu0 0
        %4385 = vmatpush.bf16.msra.mxu0 0
        %4386 = vmatpush.bf16.msra.mxu0 0
        %4387 = vmatpush.bf16.msra.mxu0 0
        %4388 = vmatpush.bf16.msra.mxu0 0
        %4389 = vmatpush.bf16.msra.mxu0 0
        %4390 = vmatpush.bf16.msra.mxu0 0
        %4391 = vmatpush.bf16.msra.mxu0 %v4370
        %4392 = vmatmul.bf16.gmra.mxu0 %v4373
        %v4393 = vpop.f32.mrf.mxu0
        %v4394 = vadd.f32 0.0, %v4393
        %v4395 = vpop.f32.mrf.mxu0
        %v4396 = vadd.f32 0.0, %v4395
        %4397 = vmatmul.bf16.gmra.mxu0 %v4376
        %v4398 = vpop.f32.mrf.mxu0
        %v4399 = vadd.f32 0.0, %v4398
        %v4400 = vpop.f32.mrf.mxu0
        %v4401 = vadd.f32 0.0, %v4400
        %4402 = vmatmul.bf16.gmra.mxu0 %v4379
        %v4403 = vpop.f32.mrf.mxu0
        %v4404 = vadd.f32 0.0, %v4403
        %v4405 = vpop.f32.mrf.mxu0
        %v4406 = vadd.f32 0.0, %v4405
        %4407 = vmatmul.bf16.gmra.mxu0 %v4382
        %v4408 = vpop.f32.mrf.mxu0
        %v4409 = vadd.f32 0.0, %v4408
        %v4410 = vpop.f32.mrf.mxu0
        %v4411 = vadd.f32 0.0, %v4410
        %4412 = vdwg.mxu0
        %v4413 = vadd.f32 %v3856, %v4394
        %v4414 = vadd.f32 %v3857, %v4396
        %v4415 = vadd.f32 %v3858, %v4399
        %v4416 = vadd.f32 %v3859, %v4401
        %v4417 = vadd.f32 %v3860, %v4404
        %v4418 = vadd.f32 %v3861, %v4406
        %v4419 = vadd.f32 %v3862, %v4409
        %v4420 = vadd.f32 %v3863, %v4411
        %s4421 = scalar_lea.vmem %s3, 448
        %v4422 = vld [vmem:[%s4421] sm:$0xf]
        %v4423 = vld [vmem:[%s4421 + $0x4] sm:$0xf]
        %v4424 = vld [vmem:[%s4421 + $0x8] sm:$0xf]
        %v4425 = vld [vmem:[%s4421 + $0xc] sm:$0xf]
        %v4426 = vld [vmem:[%s4421 + $0x10] sm:$0xf]
        %v4427 = vld [vmem:[%s4421 + $0x14] sm:$0xf]
        %v4428 = vld [vmem:[%s4421 + $0x18] sm:$0xf]
        %v4429 = vld [vmem:[%s4421 + $0x1c] sm:$0xf]
        %v4430 = vld [vmem:[%s4421 + $0x20] sm:$0xf]
        %v4431 = vld [vmem:[%s4421 + $0x24] sm:$0xf]
        %v4432 = vld [vmem:[%s4421 + $0x28] sm:$0xf]
        %v4433 = vld [vmem:[%s4421 + $0x2c] sm:$0xf]
        %v4434 = vld [vmem:[%s4421 + $0x30] sm:$0xf]
        %v4435 = vld [vmem:[%s4421 + $0x34] sm:$0xf]
        %v4436 = vld [vmem:[%s4421 + $0x38] sm:$0xf]
        %v4437 = vld [vmem:[%s4421 + $0x3c] sm:$0xf]
        %s4438 = scalar_lea.vmem %s4, 7
        %v4439 = vld [vmem:[%s4438] sm:$0x1]
        %v4441 = vperm.slane %v4439, 0
        %v4459 = vunpack.c.l.b16 %v4422
        %v4460 = vunpack.c.l.b16 %v4423
        %v4461 = vunpack.c.l.b16 %v4424
        %v4462 = vunpack.c.l.b16 %v4425
        %v4463 = vunpack.c.l.b16 %v4426
        %v4464 = vunpack.c.l.b16 %v4427
        %v4465 = vunpack.c.l.b16 %v4428
        %v4466 = vunpack.c.l.b16 %v4429
        %v4467 = vunpack.c.l.b16 %v4430
        %v4468 = vunpack.c.l.b16 %v4431
        %v4469 = vunpack.c.l.b16 %v4432
        %v4470 = vunpack.c.l.b16 %v4433
        %v4471 = vunpack.c.l.b16 %v4434
        %v4472 = vunpack.c.l.b16 %v4435
        %v4473 = vunpack.c.l.b16 %v4436
        %v4474 = vunpack.c.l.b16 %v4437
        %v4475 = vpack.c.b16 %v4460, %v4459
        %v4476 = vpack.c.b16 %v4462, %v4461
        %v4477 = vpack.c.b16 %v4464, %v4463
        %v4478 = vpack.c.b16 %v4466, %v4465
        %v4479 = vpack.c.b16 %v4468, %v4467
        %v4480 = vpack.c.b16 %v4470, %v4469
        %v4481 = vpack.c.b16 %v4472, %v4471
        %v4482 = vpack.c.b16 %v4474, %v4473
        %4491 = vmatpush.bf16.msra.mxu0 %v4482
        %4492 = vmatpush.bf16.msra.mxu0 %v4481
        %4493 = vmatpush.bf16.msra.mxu0 %v4480
        %4494 = vmatpush.bf16.msra.mxu0 %v4479
        %4495 = vmatpush.bf16.msra.mxu0 %v4478
        %4496 = vmatpush.bf16.msra.mxu0 %v4477
        %4497 = vmatpush.bf16.msra.mxu0 %v4476
        %4498 = vmatpush.bf16.msra.mxu0 %v4475
        %4499 = vmatmul.bf16.gmra.mxu0 %v491
        %v4500 = vpop.f32.mrf.mxu0
        %v4501 = vadd.f32 %v4441, %v4500
        %v4502 = vpop.f32.mrf.mxu0
        %v4503 = vadd.f32 %v4441, %v4502
        %4504 = vmatmul.bf16.gmra.mxu0 %v492
        %v4505 = vpop.f32.mrf.mxu0
        %v4506 = vadd.f32 %v4441, %v4505
        %v4507 = vpop.f32.mrf.mxu0
        %v4508 = vadd.f32 %v4441, %v4507
        %4509 = vmatmul.bf16.gmra.mxu0 %v493
        %v4510 = vpop.f32.mrf.mxu0
        %v4511 = vadd.f32 %v4441, %v4510
        %v4512 = vpop.f32.mrf.mxu0
        %v4513 = vadd.f32 %v4441, %v4512
        %4514 = vmatmul.bf16.gmra.mxu0 %v494
        %v4515 = vpop.f32.mrf.mxu0
        %v4516 = vadd.f32 %v4441, %v4515
        %v4517 = vpop.f32.mrf.mxu0
        %v4518 = vadd.f32 %v4441, %v4517
        %4519 = vdwg.mxu0
        %s4520 = scalar_lea.vmem %s5, 448
        %v4521 = vld [vmem:[%s4520] sm:$0xf]
        %v4522 = vld [vmem:[%s4520 + $0x4] sm:$0xf]
        %v4523 = vld [vmem:[%s4520 + $0x8] sm:$0xf]
        %v4524 = vld [vmem:[%s4520 + $0xc] sm:$0xf]
        %v4525 = vld [vmem:[%s4520 + $0x10] sm:$0xf]
        %v4526 = vld [vmem:[%s4520 + $0x14] sm:$0xf]
        %v4527 = vld [vmem:[%s4520 + $0x18] sm:$0xf]
        %v4528 = vld [vmem:[%s4520 + $0x1c] sm:$0xf]
        %v4529 = vld [vmem:[%s4520 + $0x20] sm:$0xf]
        %v4530 = vld [vmem:[%s4520 + $0x24] sm:$0xf]
        %v4531 = vld [vmem:[%s4520 + $0x28] sm:$0xf]
        %v4532 = vld [vmem:[%s4520 + $0x2c] sm:$0xf]
        %v4533 = vld [vmem:[%s4520 + $0x30] sm:$0xf]
        %v4534 = vld [vmem:[%s4520 + $0x34] sm:$0xf]
        %v4535 = vld [vmem:[%s4520 + $0x38] sm:$0xf]
        %v4536 = vld [vmem:[%s4520 + $0x3c] sm:$0xf]
        %s4537 = scalar_lea.vmem %s6, 7
        %v4538 = vld [vmem:[%s4537] sm:$0x1]
        %v4540 = vperm.slane %v4538, 0
        %v4558 = vunpack.c.l.b16 %v4521
        %v4559 = vunpack.c.l.b16 %v4522
        %v4560 = vunpack.c.l.b16 %v4523
        %v4561 = vunpack.c.l.b16 %v4524
        %v4562 = vunpack.c.l.b16 %v4525
        %v4563 = vunpack.c.l.b16 %v4526
        %v4564 = vunpack.c.l.b16 %v4527
        %v4565 = vunpack.c.l.b16 %v4528
        %v4566 = vunpack.c.l.b16 %v4529
        %v4567 = vunpack.c.l.b16 %v4530
        %v4568 = vunpack.c.l.b16 %v4531
        %v4569 = vunpack.c.l.b16 %v4532
        %v4570 = vunpack.c.l.b16 %v4533
        %v4571 = vunpack.c.l.b16 %v4534
        %v4572 = vunpack.c.l.b16 %v4535
        %v4573 = vunpack.c.l.b16 %v4536
        %v4574 = vpack.c.b16 %v4559, %v4558
        %v4575 = vpack.c.b16 %v4561, %v4560
        %v4576 = vpack.c.b16 %v4563, %v4562
        %v4577 = vpack.c.b16 %v4565, %v4564
        %v4578 = vpack.c.b16 %v4567, %v4566
        %v4579 = vpack.c.b16 %v4569, %v4568
        %v4580 = vpack.c.b16 %v4571, %v4570
        %v4581 = vpack.c.b16 %v4573, %v4572
        %4590 = vmatpush.bf16.msra.mxu0 %v4581
        %4591 = vmatpush.bf16.msra.mxu0 %v4580
        %4592 = vmatpush.bf16.msra.mxu0 %v4579
        %4593 = vmatpush.bf16.msra.mxu0 %v4578
        %4594 = vmatpush.bf16.msra.mxu0 %v4577
        %4595 = vmatpush.bf16.msra.mxu0 %v4576
        %4596 = vmatpush.bf16.msra.mxu0 %v4575
        %4597 = vmatpush.bf16.msra.mxu0 %v4574
        %4598 = vmatmul.bf16.gmra.mxu0 %v612
        %v4599 = vpop.f32.mrf.mxu0
        %v4600 = vadd.f32 %v4540, %v4599
        %v4601 = vpop.f32.mrf.mxu0
        %v4602 = vadd.f32 %v4540, %v4601
        %4603 = vmatmul.bf16.gmra.mxu0 %v613
        %v4604 = vpop.f32.mrf.mxu0
        %v4605 = vadd.f32 %v4540, %v4604
        %v4606 = vpop.f32.mrf.mxu0
        %v4607 = vadd.f32 %v4540, %v4606
        %4608 = vmatmul.bf16.gmra.mxu0 %v614
        %v4609 = vpop.f32.mrf.mxu0
        %v4610 = vadd.f32 %v4540, %v4609
        %v4611 = vpop.f32.mrf.mxu0
        %v4612 = vadd.f32 %v4540, %v4611
        %4613 = vmatmul.bf16.gmra.mxu0 %v615
        %v4614 = vpop.f32.mrf.mxu0
        %v4615 = vadd.f32 %v4540, %v4614
        %v4616 = vpop.f32.mrf.mxu0
        %v4617 = vadd.f32 %v4540, %v4616
        %4618 = vdwg.mxu0
        %s4619 = scalar_lea.vmem %s7, 448
        %v4620 = vld [vmem:[%s4619] sm:$0xf]
        %v4621 = vld [vmem:[%s4619 + $0x4] sm:$0xf]
        %v4622 = vld [vmem:[%s4619 + $0x8] sm:$0xf]
        %v4623 = vld [vmem:[%s4619 + $0xc] sm:$0xf]
        %v4624 = vld [vmem:[%s4619 + $0x10] sm:$0xf]
        %v4625 = vld [vmem:[%s4619 + $0x14] sm:$0xf]
        %v4626 = vld [vmem:[%s4619 + $0x18] sm:$0xf]
        %v4627 = vld [vmem:[%s4619 + $0x1c] sm:$0xf]
        %v4628 = vld [vmem:[%s4619 + $0x20] sm:$0xf]
        %v4629 = vld [vmem:[%s4619 + $0x24] sm:$0xf]
        %v4630 = vld [vmem:[%s4619 + $0x28] sm:$0xf]
        %v4631 = vld [vmem:[%s4619 + $0x2c] sm:$0xf]
        %v4632 = vld [vmem:[%s4619 + $0x30] sm:$0xf]
        %v4633 = vld [vmem:[%s4619 + $0x34] sm:$0xf]
        %v4634 = vld [vmem:[%s4619 + $0x38] sm:$0xf]
        %v4635 = vld [vmem:[%s4619 + $0x3c] sm:$0xf]
        %s4636 = scalar_lea.vmem %s8, 7
        %v4637 = vld [vmem:[%s4636] sm:$0x1]
        %v4639 = vperm.slane %v4637, 0
        %v4657 = vunpack.c.l.b16 %v4620
        %v4658 = vunpack.c.l.b16 %v4621
        %v4659 = vunpack.c.l.b16 %v4622
        %v4660 = vunpack.c.l.b16 %v4623
        %v4661 = vunpack.c.l.b16 %v4624
        %v4662 = vunpack.c.l.b16 %v4625
        %v4663 = vunpack.c.l.b16 %v4626
        %v4664 = vunpack.c.l.b16 %v4627
        %v4665 = vunpack.c.l.b16 %v4628
        %v4666 = vunpack.c.l.b16 %v4629
        %v4667 = vunpack.c.l.b16 %v4630
        %v4668 = vunpack.c.l.b16 %v4631
        %v4669 = vunpack.c.l.b16 %v4632
        %v4670 = vunpack.c.l.b16 %v4633
        %v4671 = vunpack.c.l.b16 %v4634
        %v4672 = vunpack.c.l.b16 %v4635
        %v4673 = vpack.c.b16 %v4658, %v4657
        %v4674 = vpack.c.b16 %v4660, %v4659
        %v4675 = vpack.c.b16 %v4662, %v4661
        %v4676 = vpack.c.b16 %v4664, %v4663
        %v4677 = vpack.c.b16 %v4666, %v4665
        %v4678 = vpack.c.b16 %v4668, %v4667
        %v4679 = vpack.c.b16 %v4670, %v4669
        %v4680 = vpack.c.b16 %v4672, %v4671
        %4689 = vmatpush.bf16.msra.mxu0 %v4680
        %4690 = vmatpush.bf16.msra.mxu0 %v4679
        %4691 = vmatpush.bf16.msra.mxu0 %v4678
        %4692 = vmatpush.bf16.msra.mxu0 %v4677
        %4693 = vmatpush.bf16.msra.mxu0 %v4676
        %4694 = vmatpush.bf16.msra.mxu0 %v4675
        %4695 = vmatpush.bf16.msra.mxu0 %v4674
        %4696 = vmatpush.bf16.msra.mxu0 %v4673
        %4697 = vmatmul.bf16.gmra.mxu0 %v733
        %v4698 = vpop.f32.mrf.mxu0
        %v4699 = vadd.f32 %v4639, %v4698
        %v4700 = vpop.f32.mrf.mxu0
        %v4701 = vadd.f32 %v4639, %v4700
        %4702 = vmatmul.bf16.gmra.mxu0 %v734
        %v4703 = vpop.f32.mrf.mxu0
        %v4704 = vadd.f32 %v4639, %v4703
        %v4705 = vpop.f32.mrf.mxu0
        %v4706 = vadd.f32 %v4639, %v4705
        %4707 = vmatmul.bf16.gmra.mxu0 %v735
        %v4708 = vpop.f32.mrf.mxu0
        %v4709 = vadd.f32 %v4639, %v4708
        %v4710 = vpop.f32.mrf.mxu0
        %v4711 = vadd.f32 %v4639, %v4710
        %4712 = vmatmul.bf16.gmra.mxu0 %v736
        %v4713 = vpop.f32.mrf.mxu0
        %v4714 = vadd.f32 %v4639, %v4713
        %v4715 = vpop.f32.mrf.mxu0
        %v4716 = vadd.f32 %v4639, %v4715
        %4717 = vdwg.mxu0
        %v4718 = vpack.c.bf16 %v4503, %v4501
        %v4719 = vpack.c.bf16 %v4508, %v4506
        %v4720 = vpack.c.bf16 %v4513, %v4511
        %v4721 = vpack.c.bf16 %v4518, %v4516
        %v4722 = vpack.c.bf16 %v4602, %v4600
        %v4723 = vpack.c.bf16 %v4607, %v4605
        %v4724 = vpack.c.bf16 %v4612, %v4610
        %v4725 = vpack.c.bf16 %v4617, %v4615
        %v4727 = vsel %vm826, %v4718, 0
        %v4730 = vsel %vm826, %v4719, 0
        %v4733 = vsel %vm826, %v4720, 0
        %v4736 = vsel %vm826, %v4721, 0
        %v4739 = vsel %vm826, %v4722, 0
        %v4742 = vsel %vm826, %v4723, 0
        %v4745 = vsel %vm826, %v4724, 0
        %v4748 = vsel %vm826, %v4725, 0
        %4750 = vmatpush.bf16.xpose.msra.mxu0 0
        %4751 = vmatpush.bf16.xpose.msra.mxu0 0
        %4752 = vmatpush.bf16.xpose.msra.mxu0 0
        %4753 = vmatpush.bf16.xpose.msra.mxu0 0
        %4754 = vmatpush.bf16.xpose.msra.mxu0 %v4748
        %4755 = vmatpush.bf16.xpose.msra.mxu0 %v4745
        %4756 = vmatpush.bf16.xpose.msra.mxu0 %v4742
        %4757 = vmatpush.bf16.xpose.msra.mxu0 %v4739
        %4758 = vmatmul.bf16.gmra.mxu0 %v4727
        %v4759 = vpop.f32.mrf.mxu0
        %v4760 = vadd.f32 0.0, %v4759
        %v4761 = vpop.f32.mrf.mxu0
        %v4762 = vadd.f32 0.0, %v4761
        %4763 = vmatmul.bf16.gmra.mxu0 %v4730
        %v4764 = vpop.f32.mrf.mxu0
        %v4765 = vadd.f32 0.0, %v4764
        %v4766 = vpop.f32.mrf.mxu0
        %v4767 = vadd.f32 0.0, %v4766
        %4768 = vmatmul.bf16.gmra.mxu0 %v4733
        %v4769 = vpop.f32.mrf.mxu0
        %v4770 = vadd.f32 0.0, %v4769
        %v4771 = vpop.f32.mrf.mxu0
        %v4772 = vadd.f32 0.0, %v4771
        %4773 = vmatmul.bf16.gmra.mxu0 %v4736
        %v4774 = vpop.f32.mrf.mxu0
        %v4775 = vadd.f32 0.0, %v4774
        %v4776 = vpop.f32.mrf.mxu0
        %v4777 = vadd.f32 0.0, %v4776
        %4778 = vdwg.mxu0
        %v4779 = vsel %vm880, %v4760, -inf
        %4780 = vmax.xlane.f32.xlu0 %v4779
        %v4781 = vpop.xlane.xlu0 %4780
        %v4782 = vsel %vm880, %v4762, -inf
        %4783 = vmax.xlane.f32.xlu0 %v4782
        %v4784 = vpop.xlane.xlu0 %4783
        %v4785 = vsel %vm880, %v4765, -inf
        %4786 = vmax.xlane.f32.xlu0 %v4785
        %v4787 = vpop.xlane.xlu0 %4786
        %v4788 = vsel %vm880, %v4767, -inf
        %4789 = vmax.xlane.f32.xlu0 %v4788
        %v4790 = vpop.xlane.xlu0 %4789
        %v4791 = vsel %vm880, %v4770, -inf
        %4792 = vmax.xlane.f32.xlu0 %v4791
        %v4793 = vpop.xlane.xlu0 %4792
        %v4794 = vsel %vm880, %v4772, -inf
        %4795 = vmax.xlane.f32.xlu0 %v4794
        %v4796 = vpop.xlane.xlu0 %4795
        %v4797 = vsel %vm880, %v4775, -inf
        %4798 = vmax.xlane.f32.xlu0 %v4797
        %v4799 = vpop.xlane.xlu0 %4798
        %v4800 = vsel %vm880, %v4777, -inf
        %4801 = vmax.xlane.f32.xlu0 %v4800
        %v4802 = vpop.xlane.xlu0 %4801
        %v4803 = vsub.f32 %v4760, %v4781
        %v4804 = vsub.f32 %v4762, %v4784
        %v4805 = vsub.f32 %v4765, %v4787
        %v4806 = vsub.f32 %v4767, %v4790
        %v4807 = vsub.f32 %v4770, %v4793
        %v4808 = vsub.f32 %v4772, %v4796
        %v4809 = vsub.f32 %v4775, %v4799
        %v4810 = vsub.f32 %v4777, %v4802
        %v4811 = vmul.f32 %v4803, 1.442695
        %v4812 = vpow.pop %v4811
        %v4813 = vmul.f32 %v4804, 1.442695
        %v4814 = vpow.pop %v4813
        %v4815 = vmul.f32 %v4805, 1.442695
        %v4816 = vpow.pop %v4815
        %v4817 = vmul.f32 %v4806, 1.442695
        %v4818 = vpow.pop %v4817
        %v4819 = vmul.f32 %v4807, 1.442695
        %v4820 = vpow.pop %v4819
        %v4821 = vmul.f32 %v4808, 1.442695
        %v4822 = vpow.pop %v4821
        %v4823 = vmul.f32 %v4809, 1.442695
        %v4824 = vpow.pop %v4823
        %v4825 = vmul.f32 %v4810, 1.442695
        %v4826 = vpow.pop %v4825
        %v4827 = vsel %vm880, %v4812, 0.0
        %4828 = vadd.xlane.f32.xlu0 %v4827
        %v4829 = vpop.xlane.xlu0 %4828
        %v4830 = vsel %vm880, %v4814, 0.0
        %4831 = vadd.xlane.f32.xlu0 %v4830
        %v4832 = vpop.xlane.xlu0 %4831
        %v4833 = vsel %vm880, %v4816, 0.0
        %4834 = vadd.xlane.f32.xlu0 %v4833
        %v4835 = vpop.xlane.xlu0 %4834
        %v4836 = vsel %vm880, %v4818, 0.0
        %4837 = vadd.xlane.f32.xlu0 %v4836
        %v4838 = vpop.xlane.xlu0 %4837
        %v4839 = vsel %vm880, %v4820, 0.0
        %4840 = vadd.xlane.f32.xlu0 %v4839
        %v4841 = vpop.xlane.xlu0 %4840
        %v4842 = vsel %vm880, %v4822, 0.0
        %4843 = vadd.xlane.f32.xlu0 %v4842
        %v4844 = vpop.xlane.xlu0 %4843
        %v4845 = vsel %vm880, %v4824, 0.0
        %4846 = vadd.xlane.f32.xlu0 %v4845
        %v4847 = vpop.xlane.xlu0 %4846
        %v4848 = vsel %vm880, %v4826, 0.0
        %4849 = vadd.xlane.f32.xlu0 %v4848
        %v4850 = vpop.xlane.xlu0 %4849
        %v4851 = vrcp.pop %v4829
        %v4852 = vrcp.pop %v4832
        %v4853 = vrcp.pop %v4835
        %v4854 = vrcp.pop %v4838
        %v4855 = vrcp.pop %v4841
        %v4856 = vrcp.pop %v4844
        %v4857 = vrcp.pop %v4847
        %v4858 = vrcp.pop %v4850
        %v4859 = vmul.f32 %v4812, %v4851
        %v4860 = vmul.f32 %v4814, %v4852
        %v4861 = vmul.f32 %v4816, %v4853
        %v4862 = vmul.f32 %v4818, %v4854
        %v4863 = vmul.f32 %v4820, %v4855
        %v4864 = vmul.f32 %v4822, %v4856
        %v4865 = vmul.f32 %v4824, %v4857
        %v4866 = vmul.f32 %v4826, %v4858
        %v4867 = vpack.c.bf16 %v4860, %v4859
        %v4868 = vpack.c.bf16 %v4862, %v4861
        %v4869 = vpack.c.bf16 %v4864, %v4863
        %v4870 = vpack.c.bf16 %v4866, %v4865
        %v4871 = vpack.c.bf16 %v4701, %v4699
        %v4872 = vpack.c.bf16 %v4706, %v4704
        %v4873 = vpack.c.bf16 %v4711, %v4709
        %v4874 = vpack.c.bf16 %v4716, %v4714
        %v4876 = vsel %vm880, %v4867, 0
        %v4879 = vsel %vm880, %v4868, 0
        %v4882 = vsel %vm880, %v4869, 0
        %v4885 = vsel %vm880, %v4870, 0
        %4887 = vmatpush.bf16.msra.mxu0 0
        %4888 = vmatpush.bf16.msra.mxu0 0
        %4889 = vmatpush.bf16.msra.mxu0 0
        %4890 = vmatpush.bf16.msra.mxu0 0
        %4891 = vmatpush.bf16.msra.mxu0 %v4874
        %4892 = vmatpush.bf16.msra.mxu0 %v4873
        %4893 = vmatpush.bf16.msra.mxu0 %v4872
        %4894 = vmatpush.bf16.msra.mxu0 %v4871
        %4895 = vmatmul.bf16.gmra.mxu0 %v4876
        %v4896 = vpop.f32.mrf.mxu0
        %v4897 = vadd.f32 0.0, %v4896
        %v4898 = vpop.f32.mrf.mxu0
        %v4899 = vadd.f32 0.0, %v4898
        %4900 = vmatmul.bf16.gmra.mxu0 %v4879
        %v4901 = vpop.f32.mrf.mxu0
        %v4902 = vadd.f32 0.0, %v4901
        %v4903 = vpop.f32.mrf.mxu0
        %v4904 = vadd.f32 0.0, %v4903
        %4905 = vmatmul.bf16.gmra.mxu0 %v4882
        %v4906 = vpop.f32.mrf.mxu0
        %v4907 = vadd.f32 0.0, %v4906
        %v4908 = vpop.f32.mrf.mxu0
        %v4909 = vadd.f32 0.0, %v4908
        %4910 = vmatmul.bf16.gmra.mxu0 %v4885
        %v4911 = vpop.f32.mrf.mxu0
        %v4912 = vadd.f32 0.0, %v4911
        %v4913 = vpop.f32.mrf.mxu0
        %v4914 = vadd.f32 0.0, %v4913
        %4915 = vdwg.mxu0
        %v4916 = vpack.c.bf16 %v4899, %v4897
        %v4917 = vpack.c.bf16 %v4904, %v4902
        %v4918 = vpack.c.bf16 %v4909, %v4907
        %v4919 = vpack.c.bf16 %v4914, %v4912
        %s4920 = scalar_lea.vmem %s9, 56
        %v4921 = vld [vmem:[%s4920] sm:$0xf]
        %v4922 = vld [vmem:[%s4920 + $0x4] sm:$0xf]
        %v4925 = vunpack.c.l.b16 %v4921
        %v4926 = vunpack.c.l.b16 %v4922
        %v4927 = vpack.c.b16 %v4926, %v4925
        %v4930 = vsel %vm826, %v4916, 0
        %v4933 = vsel %vm826, %v4917, 0
        %v4936 = vsel %vm826, %v4918, 0
        %v4939 = vsel %vm826, %v4919, 0
        %4941 = vmatpush.bf16.msra.mxu0 0
        %4942 = vmatpush.bf16.msra.mxu0 0
        %4943 = vmatpush.bf16.msra.mxu0 0
        %4944 = vmatpush.bf16.msra.mxu0 0
        %4945 = vmatpush.bf16.msra.mxu0 0
        %4946 = vmatpush.bf16.msra.mxu0 0
        %4947 = vmatpush.bf16.msra.mxu0 0
        %4948 = vmatpush.bf16.msra.mxu0 %v4927
        %4949 = vmatmul.bf16.gmra.mxu0 %v4930
        %v4950 = vpop.f32.mrf.mxu0
        %v4951 = vadd.f32 0.0, %v4950
        %v4952 = vpop.f32.mrf.mxu0
        %v4953 = vadd.f32 0.0, %v4952
        %4954 = vmatmul.bf16.gmra.mxu0 %v4933
        %v4955 = vpop.f32.mrf.mxu0
        %v4956 = vadd.f32 0.0, %v4955
        %v4957 = vpop.f32.mrf.mxu0
        %v4958 = vadd.f32 0.0, %v4957
        %4959 = vmatmul.bf16.gmra.mxu0 %v4936
        %v4960 = vpop.f32.mrf.mxu0
        %v4961 = vadd.f32 0.0, %v4960
        %v4962 = vpop.f32.mrf.mxu0
        %v4963 = vadd.f32 0.0, %v4962
        %4964 = vmatmul.bf16.gmra.mxu0 %v4939
        %v4965 = vpop.f32.mrf.mxu0
        %v4966 = vadd.f32 0.0, %v4965
        %v4967 = vpop.f32.mrf.mxu0
        %v4968 = vadd.f32 0.0, %v4967
        %4969 = vdwg.mxu0
        %v4970 = vadd.f32 %v4413, %v4951
        %v4971 = vadd.f32 %v4414, %v4953
        %v4972 = vadd.f32 %v4415, %v4956
        %v4973 = vadd.f32 %v4416, %v4958
        %v4974 = vadd.f32 %v4417, %v4961
        %v4975 = vadd.f32 %v4418, %v4963
        %v4976 = vadd.f32 %v4419, %v4966
        %v4977 = vadd.f32 %v4420, %v4968
        %4978 = vst [vmem:[%s409] sm:$0xff] %v4970
        %4979 = vst [vmem:[%s409 + $0x8] sm:$0xff] %v4971
        %4980 = vst [vmem:[%s409 + $0x10] sm:$0xff] %v4972
        %4981 = vst [vmem:[%s409 + $0x18] sm:$0xff] %v4973
        %4982 = vst [vmem:[%s409 + $0x20] sm:$0xff] %v4974
        %4983 = vst [vmem:[%s409 + $0x28] sm:$0xff] %v4975
        %4984 = vst [vmem:[%s409 + $0x30] sm:$0xff] %v4976
        %4985 = vst [vmem:[%s409 + $0x38] sm:$0xff] %v4977
        %s4986 = sand.u32 %s279, 1
        %s4987 = scalar_lea.sflag [#allocation3], %s4986
        %s4988 = sand.u32 %s279, 1
        %s4989 = smul.addr %s4988, 64
        %s4990 = scalar_lea.vmem [#allocation2], %s4989
        // Predicated region
        $region65: #{qkv_attention.1} parent=63 // pred_check
          %p4991 = pneg %p289
        $region66: #{qkv_attention.1} parent=63 // pred_check_branch
          %4993 = sbr.rel (%p4991) target = $region68
        $region67: #{qkv_attention.1} parent=63 // pred_region
          %4995 = vsyncadd %s4987, 0
          %s4996 = smul.addr %s25, 8
          %s4997 = smul.addr %s4996, 8
          %s4998 = scalar_lea.hbm %s11, %s4997
          %s4999 = sshll.u32 %s4990, 4
          %s5000 = int_to_ptr.vmem [resolvable:$true] %s4999
          %s5001 = sshll.u32 %s4998, 4
          %s5002 = int_to_ptr.hbm [resolvable:$true] %s5001
          %5007 = dma.vmem_to_hbm [thread:$0]  %s5000, 1024, %s5002, %s4987, 128, 128, 8
        $region68: #{qkv_attention.1} parent=63 // pred_fallthru
          _
      $region64: #{qkv_attention.1} parent=5 // pred_fallthru
        _
      %p5008 = scmp.le.s32.totalorder 2, %s20
      // Predicated region
      $region69: #{qkv_attention.1} parent=5 // pred_check
        %p5009 = pneg %p5008
      $region70: #{qkv_attention.1} parent=5 // pred_check_branch
        %5011 = sbr.rel (%p5009) target = $region72
      $region71: #{qkv_attention.1} parent=5 // pred_region
        %s5012 = ssub.s32 %s20, 2
        // Predicated region
        $region73: #{qkv_attention.1} parent=71 // pred_check
          %p5013 = pneg %p295
        $region74: #{qkv_attention.1} parent=71 // pred_check_branch
          %5015 = sbr.rel (%p5013) target = $region76
        $region75: #{qkv_attention.1} parent=71 // pred_region
          %s5016 = sand.u32 %s280, 1
          %s5017 = scalar_lea.sflag [#allocation3], %s5016
          %s5018 = sand.u32 %s280, 1
          %s5019 = smul.addr %s5018, 64
          %s5020 = scalar_lea.vmem [#allocation2], %s5019
          %5022 = dma.done %s5017, 1024
        $region76: #{qkv_attention.1} parent=71 // pred_fallthru
          _
      $region72: #{qkv_attention.1} parent=5 // pred_fallthru
        _
    $region6: #{qkv_attention.1} parent=1 // loop_footer
      %s24 = sadd.s32 1, %s20
    $region7: #{qkv_attention.1} parent=1 // loop_footer_branch
      %19 = sbr.rel target = $region3
    $region8: #{qkv_attention.1} parent=1 // loop_exit
      _
    %5023 = vsyncpa [#allocation3], 1
    %s5024 = scalar_lea.sflag [#allocation3], 1
    %5025 = vsyncpa %s5024, 1

</llo_original>
